<compile_context>
chip_gen: v7x
topology: tpu7x:2x2x1
jax: 0.10.0
libtpu: 0.0.40
codegen_flags: <defaults>
</compile_context>

<pallas_src>
import math

import jax
import jax.numpy as jnp
from jax import lax
from jax.experimental import pallas as pl
from jax.experimental.pallas import tpu as pltpu

# --- small synthetic BERT config (config.* in the PyTorch module) -----------
NUM_LAYERS = 2          # config.num_hidden_layers
NUM_HEADS = 4           # config.num_attention_heads
HIDDEN = 32             # config.hidden_size
HEAD_DIM = HIDDEN // NUM_HEADS
INTERMEDIATE = 64       # config.intermediate_size
SEQ = 8
BATCH = 2
TOKENS = BATCH * SEQ
LN_EPS = 1e-12          # config.layer_norm_eps

_ATTN_SCALE = 1.0 / math.sqrt(HEAD_DIM)
_INV_SQRT2 = 1.0 / math.sqrt(2.0)


def _layernorm(x, gamma, beta):
    mu = jnp.mean(x, axis=-1, keepdims=True)
    var = jnp.mean((x - mu) ** 2, axis=-1, keepdims=True)
    return (x - mu) * lax.rsqrt(var + LN_EPS) * gamma + beta


def waypoint_bert_kernel(x_ref, mask_ref,
                         wqkv_ref, wo_ref, wi_ref, wo2_ref, vec_ref,
                         out_ref):
    """Full NUM_LAYERS encoder stack for the whole (T, H) slab, VMEM-resident."""
    h = x_ref[...]                     # (T, H)  with T = B*S
    mask = mask_ref[...]               # (T, T)  block-diagonal additive mask (hoisted)

    for l in range(NUM_LAYERS):        # static layer loop; weights stay in VMEM
        wqkv = wqkv_ref[l]             # (H, 3H)  [Wq | Wk | Wv]
        wo = wo_ref[l]                 # (H, H)
        wi = wi_ref[l]                 # (H, I)
        wo2 = wo2_ref[l]               # (I, H)
        vec = vec_ref[l]               # (8, 128) lane-dense bias / LayerNorm slab

        b_qkv = vec[0:1, :3 * HIDDEN]          # (1, 3H)
        b_o = vec[1:2, :HIDDEN]
        g1 = vec[2:3, :HIDDEN]
        b1 = vec[3:4, :HIDDEN]
        b_i = vec[4:5, :INTERMEDIATE]
        b_o2 = vec[5:6, :HIDDEN]
        g2 = vec[6:7, :HIDDEN]
        b2 = vec[7:8, :HIDDEN]

        # --- CaptionBertSelfAttention: one fused lane-dense QKV projection ---
        qkv = jnp.dot(h, wqkv, preferred_element_type=jnp.float32) + b_qkv   # (T, 3H)

        ctx_parts = []
        for hd in range(NUM_HEADS):    # static head loop (NH=4); slices stay in one lane tile
            q = qkv[:, hd * HEAD_DIM:(hd + 1) * HEAD_DIM]                      # (T, DH)
            k = qkv[:, HIDDEN + hd * HEAD_DIM:HIDDEN + (hd + 1) * HEAD_DIM]
            v = qkv[:, 2 * HIDDEN + hd * HEAD_DIM:2 * HIDDEN + (hd + 1) * HEAD_DIM]

            # scores over ALL tokens; cross-batch / masked keys are -10000 via `mask`.
            s = lax.dot_general(q, k, (((1,), (1,)), ((), ())),
                                preferred_element_type=jnp.float32)
            s = s * _ATTN_SCALE + mask                                         # (T, T)
            # Keep the row-max subtraction: fully-masked rows would otherwise
            # produce sum ~ 0 -> Inf with the approx reciprocal.
            s = s - jnp.max(s, axis=-1, keepdims=True)
            p = jnp.exp(s)
            # EUP-slot reciprocal (tiny deviation vs. exact divide).
            p = p * pl.reciprocal(jnp.sum(p, axis=-1, keepdims=True), approx=True)
            # attention-probs dropout is identity in eval mode.
            ctx_parts.append(jnp.dot(p, v, preferred_element_type=jnp.float32))  # (T, DH)

        # Lane-packed context (head-major along lanes) == torch concat(heads).
        ctx = jnp.concatenate(ctx_parts, axis=-1)                              # (T, H)

        # --- BertSelfOutput: single K=32 matmul (head reduction inside MXU),
        #     dropout(identity), residual LayerNorm ---------------------------
        attn = jnp.dot(ctx, wo, preferred_element_type=jnp.float32) + b_o
        h1 = _layernorm(attn + h, g1, b1)

        # --- BertIntermediate: dense + exact (erf) GELU -----------------------
        inter = jnp.dot(h1, wi, preferred_element_type=jnp.float32) + b_i
        inter = 0.5 * inter * (1.0 + lax.erf(inter * _INV_SQRT2))

        # --- BertOutput: dense + dropout(identity) + residual LayerNorm -------
        h = _layernorm(jnp.dot(inter, wo2, preferred_element_type=jnp.float32)
                       + b_o2 + h1, g2, b2)

    # Single store for the whole fused stack (no per-layer HBM writeback).
    out_ref[...] = h


def waypoint_bert_forward(input_x, attention_mask, stacked_params):
    """WaypointBert.forward (eval mode): full encoder stack in one pallas_call."""
    assert input_x.shape == (BATCH, SEQ, HIDDEN)
    assert attention_mask.shape == (BATCH, SEQ)

    # extended_attention_mask = (1.0 - attention_mask) * -10000.0 (broadcast
    # over heads and query rows) merged with a block-diagonal mask so the
    # whole (T, T) attention can be computed in one shot without a batch loop.
    key_mask = (1.0 - attention_mask.astype(jnp.float32).reshape(TOKENS)) * -10000.0
    batch_idx = jnp.repeat(jnp.arange(BATCH, dtype=jnp.int32), SEQ)
    same_batch = batch_idx[:, None] == batch_idx[None, :]
    mask2d = jnp.where(same_batch, key_mask[None, :], jnp.float32(-10000.0))   # (T, T)

    x2d = input_x.reshape(TOKENS, HIDDEN)       # free, contiguous flatten in wrapper

    vmem = pl.BlockSpec(memory_space=pltpu.MemorySpace.VMEM)   # whole array in VMEM
    out2d = pl.pallas_call(
        waypoint_bert_kernel,
        out_shape=jax.ShapeDtypeStruct((TOKENS, HIDDEN), jnp.float32),
        in_specs=[vmem] * (2 + len(stacked_params)),
        out_specs=vmem,
    )(x2d, mask2d, *stacked_params)

    # TODO(synk): nn.Dropout(config.hidden_dropout_prob) is identity in eval mode;
    # no stochastic dropout is applied.  The last-layer attention scores are not
    # returned by WaypointBert.forward, so they are not materialized.
    return out2d.reshape(BATCH, SEQ, HIDDEN)


# --- parameter construction --------------------------------------------------
def init_layer_params(key, layer_idx):
    """Deterministic synthetic parameters for one CaptionBertLayer (stored (in, out))."""
    k = jax.random.fold_in(key, layer_idx)
    ks = jax.random.split(k, 6)

    def lin(kk, fan_in, fan_out):
        return 0.02 * jax.random.normal(kk, (fan_in, fan_out), jnp.float32)

    wq = lin(ks[0], HIDDEN, HIDDEN);        bq = jnp.zeros((1, HIDDEN), jnp.float32)
    wk = lin(ks[1], HIDDEN, HIDDEN);        bk = jnp.zeros((1, HIDDEN), jnp.float32)
    wv = lin(ks[2], HIDDEN, HIDDEN);        bv = jnp.zeros((1, HIDDEN), jnp.float32)
    wo = lin(ks[3], HIDDEN, HIDDEN);        bo = jnp.zeros((1, HIDDEN), jnp.float32)
    g1 = jnp.ones((1, HIDDEN), jnp.float32); b1 = jnp.zeros((1, HIDDEN), jnp.float32)
    wi = lin(ks[4], HIDDEN, INTERMEDIATE);  bi = jnp.zeros((1, INTERMEDIATE), jnp.float32)
    wo2 = lin(ks[5], INTERMEDIATE, HIDDEN); bo2 = jnp.zeros((1, HIDDEN), jnp.float32)
    g2 = jnp.ones((1, HIDDEN), jnp.float32); b2 = jnp.zeros((1, HIDDEN), jnp.float32)
    return (wq, bq, wk, bk, wv, bv, wo, bo, g1, b1, wi, bi, wo2, bo2, g2, b2)


def prepare_stacked_params(layer_params):
    """Pack per-layer parameters into a few lane-dense slabs (done once in JAX).

    Returns:
      w_qkv : (L, H, 3H)   fused [Wq | Wk | Wv]
      w_o   : (L, H, H)    attention output projection
      w_i   : (L, H, I)    intermediate dense
      w_o2  : (L, I, H)    FFN output dense
      vecs  : (L, 8, 128)  all bias / LayerNorm vectors, one row each, lane-padded
    """
    w_qkv, w_o, w_i, w_o2, vecs = [], [], [], [], []
    for (wq, bq, wk, bk, wv, bv, wo, bo, g1, b1,
         wi, bi, wo2, bo2, g2, b2) in layer_params:
        w_qkv.append(jnp.concatenate([wq, wk, wv], axis=1))            # (H, 3H)
        w_o.append(wo)
        w_i.append(wi)
        w_o2.append(wo2)

        slab = jnp.zeros((8, 128), jnp.float32)
        b_qkv = jnp.concatenate([bq, bk, bv], axis=1)                  # (1, 3H)
        slab = slab.at[0, :3 * HIDDEN].set(b_qkv[0])
        slab = slab.at[1, :HIDDEN].set(bo[0])
        slab = slab.at[2, :HIDDEN].set(g1[0])
        slab = slab.at[3, :HIDDEN].set(b1[0])
        slab = slab.at[4, :INTERMEDIATE].set(bi[0])
        slab = slab.at[5, :HIDDEN].set(bo2[0])
        slab = slab.at[6, :HIDDEN].set(g2[0])
        slab = slab.at[7, :HIDDEN].set(b2[0])
        vecs.append(slab)

    return (jnp.stack(w_qkv), jnp.stack(w_o), jnp.stack(w_i),
            jnp.stack(w_o2), jnp.stack(vecs))


# --- pure-JAX reference (mirrors the PyTorch module) -------------------------
def waypoint_bert_reference(input_x, attention_mask, layer_params):
    B, S, H = input_x.shape
    ext = ((1.0 - attention_mask.astype(jnp.float32)) * -10000.0)[:, None, None, :]
    h = input_x
    for (wq, bq, wk, bk, wv, bv, wo, bo, g1, b1,
         wi, bi, wo2, bo2, g2, b2) in layer_params:
        q = h @ wq + bq
        k = h @ wk + bk
        v = h @ wv + bv

        def heads(t):
            return t.reshape(B, S, NUM_HEADS, HEAD_DIM).transpose(0, 2, 1, 3)

        qh, kh, vh = heads(q), heads(k), heads(v)
        scores = jnp.einsum("bhqd,bhkd->bhqk", qh, kh) / math.sqrt(HEAD_DIM) + ext
        probs = jax.nn.softmax(scores, axis=-1)
        ctx = jnp.einsum("bhqk,bhkd->bhqd", probs, vh)
        ctx = ctx.transpose(0, 2, 1, 3).reshape(B, S, H)
        attn = _layernorm(ctx @ wo + bo + h, g1, b1)
        inter = attn @ wi + bi
        inter = 0.5 * inter * (1.0 + lax.erf(inter * _INV_SQRT2))
        h = _layernorm(inter @ wo2 + bo2 + attn, g2, b2)
    return h


if __name__ == "__main__":
    key = jax.random.PRNGKey(0)
    layer_params = [init_layer_params(key, l) for l in range(NUM_LAYERS)]
    stacked = prepare_stacked_params(layer_params)

    x = jax.random.normal(jax.random.fold_in(key, 1000),
                          (BATCH, SEQ, HIDDEN), jnp.float32)
    attention_mask = jnp.ones((BATCH, SEQ), jnp.float32)

    out = waypoint_bert_forward(x, attention_mask, stacked)
    out = jax.block_until_ready(out)

    assert out.shape == (BATCH, SEQ, HIDDEN) and out.dtype == jnp.float32
    assert bool(jnp.all(jnp.isfinite(out)))

    ref = waypoint_bert_reference(x, attention_mask, layer_params)
    max_diff = float(jnp.max(jnp.abs(out - ref)))
    # Loose bound: covers matmul-precision differences and approx reciprocal,
    # but still catches structural / wiring errors.
    assert max_diff < 5e-2, f"kernel deviates from reference: max|diff|={max_diff}"

    print("KERNEL_OK")
</pallas_src>

<mosaic_0001>
module attributes {stable_mosaic.version = 11 : i64} {
  func.func @waypoint_bert_kernel(%arg0: memref<16x32xf32, #tpu.memory_space<vmem>>, %arg1: memref<16x16xf32, #tpu.memory_space<vmem>>, %arg2: memref<2x32x96xf32, #tpu.memory_space<vmem>>, %arg3: memref<2x32x32xf32, #tpu.memory_space<vmem>>, %arg4: memref<2x32x64xf32, #tpu.memory_space<vmem>>, %arg5: memref<2x64x32xf32, #tpu.memory_space<vmem>>, %arg6: memref<2x8x128xf32, #tpu.memory_space<vmem>>, %arg7: memref<16x32xf32, #tpu.memory_space<vmem>>) attributes {dimension_semantics = [], scalar_prefetch = 0 : i64, scratch_operands = 0 : i64, tpu.core_type = #tpu.core_type<tc>} {
    %c0 = arith.constant 0 : index
    %c0_0 = arith.constant 0 : index
    %0 = vector.load %arg0[%c0, %c0_0] : memref<16x32xf32, #tpu.memory_space<vmem>>, vector<16x32xf32>
    %c0_1 = arith.constant 0 : index
    %c0_2 = arith.constant 0 : index
    %1 = vector.load %arg1[%c0_1, %c0_2] : memref<16x16xf32, #tpu.memory_space<vmem>>, vector<16x16xf32>
    %c0_3 = arith.constant 0 : index
    %c0_4 = arith.constant 0 : index
    %c0_5 = arith.constant 0 : index
    %2 = vector.load %arg2[%c0_3, %c0_4, %c0_5] : memref<2x32x96xf32, #tpu.memory_space<vmem>>, vector<1x32x96xf32>
    %3 = vector.shape_cast %2 : vector<1x32x96xf32> to vector<32x96xf32>
    %c0_6 = arith.constant 0 : index
    %c0_7 = arith.constant 0 : index
    %c0_8 = arith.constant 0 : index
    %4 = vector.load %arg3[%c0_6, %c0_7, %c0_8] : memref<2x32x32xf32, #tpu.memory_space<vmem>>, vector<1x32x32xf32>
    %5 = vector.shape_cast %4 : vector<1x32x32xf32> to vector<32x32xf32>
    %c0_9 = arith.constant 0 : index
    %c0_10 = arith.constant 0 : index
    %c0_11 = arith.constant 0 : index
    %6 = vector.load %arg4[%c0_9, %c0_10, %c0_11] : memref<2x32x64xf32, #tpu.memory_space<vmem>>, vector<1x32x64xf32>
    %7 = vector.shape_cast %6 : vector<1x32x64xf32> to vector<32x64xf32>
    %c0_12 = arith.constant 0 : index
    %c0_13 = arith.constant 0 : index
    %c0_14 = arith.constant 0 : index
    %8 = vector.load %arg5[%c0_12, %c0_13, %c0_14] : memref<2x64x32xf32, #tpu.memory_space<vmem>>, vector<1x64x32xf32>
    %9 = vector.shape_cast %8 : vector<1x64x32xf32> to vector<64x32xf32>
    %c0_15 = arith.constant 0 : index
    %c0_16 = arith.constant 0 : index
    %c0_17 = arith.constant 0 : index
    %10 = vector.load %arg6[%c0_15, %c0_16, %c0_17] : memref<2x8x128xf32, #tpu.memory_space<vmem>>, vector<1x8x128xf32>
    %11 = vector.shape_cast %10 : vector<1x8x128xf32> to vector<8x128xf32>
    %12 = vector.extract_strided_slice %11 {offsets = [0, 0], sizes = [1, 96], strides = [1, 1]} : vector<8x128xf32> to vector<1x96xf32>
    %13 = vector.extract_strided_slice %11 {offsets = [1, 0], sizes = [1, 32], strides = [1, 1]} : vector<8x128xf32> to vector<1x32xf32>
    %14 = vector.extract_strided_slice %11 {offsets = [2, 0], sizes = [1, 32], strides = [1, 1]} : vector<8x128xf32> to vector<1x32xf32>
    %15 = vector.extract_strided_slice %11 {offsets = [3, 0], sizes = [1, 32], strides = [1, 1]} : vector<8x128xf32> to vector<1x32xf32>
    %16 = vector.extract_strided_slice %11 {offsets = [4, 0], sizes = [1, 64], strides = [1, 1]} : vector<8x128xf32> to vector<1x64xf32>
    %17 = vector.extract_strided_slice %11 {offsets = [5, 0], sizes = [1, 32], strides = [1, 1]} : vector<8x128xf32> to vector<1x32xf32>
    %18 = vector.extract_strided_slice %11 {offsets = [6, 0], sizes = [1, 32], strides = [1, 1]} : vector<8x128xf32> to vector<1x32xf32>
    %19 = vector.extract_strided_slice %11 {offsets = [7, 0], sizes = [1, 32], strides = [1, 1]} : vector<8x128xf32> to vector<1x32xf32>
    %cst = arith.constant dense<0.000000e+00> : vector<16x96xf32>
    %20 = tpu.matmul %0, %3, %cst {dimension_numbers = #tpu.dot_dimension_numbers<[1], [0], [0], [1], [0, 0, 1, 1], [], []>} : vector<16x32xf32>, vector<32x96xf32>, vector<16x96xf32> -> vector<16x96xf32>
    %21 = vector.broadcast %12 : vector<1x96xf32> to vector<16x96xf32>
    %22 = arith.addf %20, %21 : vector<16x96xf32>
    %23 = vector.extract_strided_slice %22 {offsets = [0, 0], sizes = [16, 8], strides = [1, 1]} : vector<16x96xf32> to vector<16x8xf32>
    %24 = vector.extract_strided_slice %22 {offsets = [0, 32], sizes = [16, 8], strides = [1, 1]} : vector<16x96xf32> to vector<16x8xf32>
    %25 = vector.extract_strided_slice %22 {offsets = [0, 64], sizes = [16, 8], strides = [1, 1]} : vector<16x96xf32> to vector<16x8xf32>
    %cst_18 = arith.constant dense<0.000000e+00> : vector<16x16xf32>
    %26 = tpu.matmul %23, %24, %cst_18 {dimension_numbers = #tpu.dot_dimension_numbers<[1], [1], [0], [0], [0, 0, 1, 0], [], []>} : vector<16x8xf32>, vector<16x8xf32>, vector<16x16xf32> -> vector<16x16xf32>
    %cst_19 = arith.constant 0.353553385 : f32
    %27 = vector.broadcast %cst_19 : f32 to vector<16x16xf32>
    %28 = arith.mulf %26, %27 : vector<16x16xf32>
    %29 = arith.addf %28, %1 : vector<16x16xf32>
    %cst_20 = arith.constant dense<0xFF800000> : vector<16xf32>
    %30 = vector.multi_reduction <maximumf>, %29, %cst_20 [1] : vector<16x16xf32> to vector<16xf32>
    %31 = vector.shape_cast %30 : vector<16xf32> to vector<16x1xf32>
    %32 = vector.broadcast %31 : vector<16x1xf32> to vector<16x16xf32>
    %33 = arith.subf %29, %32 : vector<16x16xf32>
    %34 = math.exp %33 : vector<16x16xf32>
    %cst_21 = arith.constant dense<0.000000e+00> : vector<16xf32>
    %35 = vector.multi_reduction <add>, %34, %cst_21 [1] : vector<16x16xf32> to vector<16xf32>
    %36 = vector.shape_cast %35 : vector<16xf32> to vector<16x1xf32>
    %37 = tpu.reciprocal %36 {approx = true} : vector<16x1xf32> -> vector<16x1xf32>
    %38 = vector.broadcast %37 : vector<16x1xf32> to vector<16x16xf32>
    %39 = arith.mulf %34, %38 : vector<16x16xf32>
    %cst_22 = arith.constant dense<0.000000e+00> : vector<16x8xf32>
    %40 = tpu.matmul %39, %25, %cst_22 {dimension_numbers = #tpu.dot_dimension_numbers<[1], [0], [0], [1], [0, 0, 1, 1], [], []>} : vector<16x16xf32>, vector<16x8xf32>, vector<16x8xf32> -> vector<16x8xf32>
    %41 = vector.extract_strided_slice %22 {offsets = [0, 8], sizes = [16, 8], strides = [1, 1]} : vector<16x96xf32> to vector<16x8xf32>
    %42 = vector.extract_strided_slice %22 {offsets = [0, 40], sizes = [16, 8], strides = [1, 1]} : vector<16x96xf32> to vector<16x8xf32>
    %43 = vector.extract_strided_slice %22 {offsets = [0, 72], sizes = [16, 8], strides = [1, 1]} : vector<16x96xf32> to vector<16x8xf32>
    %cst_23 = arith.constant dense<0.000000e+00> : vector<16x16xf32>
    %44 = tpu.matmul %41, %42, %cst_23 {dimension_numbers = #tpu.dot_dimension_numbers<[1], [1], [0], [0], [0, 0, 1, 0], [], []>} : vector<16x8xf32>, vector<16x8xf32>, vector<16x16xf32> -> vector<16x16xf32>
    %cst_24 = arith.constant 0.353553385 : f32
    %45 = vector.broadcast %cst_24 : f32 to vector<16x16xf32>
    %46 = arith.mulf %44, %45 : vector<16x16xf32>
    %47 = arith.addf %46, %1 : vector<16x16xf32>
    %cst_25 = arith.constant dense<0xFF800000> : vector<16xf32>
    %48 = vector.multi_reduction <maximumf>, %47, %cst_25 [1] : vector<16x16xf32> to vector<16xf32>
    %49 = vector.shape_cast %48 : vector<16xf32> to vector<16x1xf32>
    %50 = vector.broadcast %49 : vector<16x1xf32> to vector<16x16xf32>
    %51 = arith.subf %47, %50 : vector<16x16xf32>
    %52 = math.exp %51 : vector<16x16xf32>
    %cst_26 = arith.constant dense<0.000000e+00> : vector<16xf32>
    %53 = vector.multi_reduction <add>, %52, %cst_26 [1] : vector<16x16xf32> to vector<16xf32>
    %54 = vector.shape_cast %53 : vector<16xf32> to vector<16x1xf32>
    %55 = tpu.reciprocal %54 {approx = true} : vector<16x1xf32> -> vector<16x1xf32>
    %56 = vector.broadcast %55 : vector<16x1xf32> to vector<16x16xf32>
    %57 = arith.mulf %52, %56 : vector<16x16xf32>
    %cst_27 = arith.constant dense<0.000000e+00> : vector<16x8xf32>
    %58 = tpu.matmul %57, %43, %cst_27 {dimension_numbers = #tpu.dot_dimension_numbers<[1], [0], [0], [1], [0, 0, 1, 1], [], []>} : vector<16x16xf32>, vector<16x8xf32>, vector<16x8xf32> -> vector<16x8xf32>
    %59 = vector.extract_strided_slice %22 {offsets = [0, 16], sizes = [16, 8], strides = [1, 1]} : vector<16x96xf32> to vector<16x8xf32>
    %60 = vector.extract_strided_slice %22 {offsets = [0, 48], sizes = [16, 8], strides = [1, 1]} : vector<16x96xf32> to vector<16x8xf32>
    %61 = vector.extract_strided_slice %22 {offsets = [0, 80], sizes = [16, 8], strides = [1, 1]} : vector<16x96xf32> to vector<16x8xf32>
    %cst_28 = arith.constant dense<0.000000e+00> : vector<16x16xf32>
    %62 = tpu.matmul %59, %60, %cst_28 {dimension_numbers = #tpu.dot_dimension_numbers<[1], [1], [0], [0], [0, 0, 1, 0], [], []>} : vector<16x8xf32>, vector<16x8xf32>, vector<16x16xf32> -> vector<16x16xf32>
    %cst_29 = arith.constant 0.353553385 : f32
    %63 = vector.broadcast %cst_29 : f32 to vector<16x16xf32>
    %64 = arith.mulf %62, %63 : vector<16x16xf32>
    %65 = arith.addf %64, %1 : vector<16x16xf32>
    %cst_30 = arith.constant dense<0xFF800000> : vector<16xf32>
    %66 = vector.multi_reduction <maximumf>, %65, %cst_30 [1] : vector<16x16xf32> to vector<16xf32>
    %67 = vector.shape_cast %66 : vector<16xf32> to vector<16x1xf32>
    %68 = vector.broadcast %67 : vector<16x1xf32> to vector<16x16xf32>
    %69 = arith.subf %65, %68 : vector<16x16xf32>
    %70 = math.exp %69 : vector<16x16xf32>
    %cst_31 = arith.constant dense<0.000000e+00> : vector<16xf32>
    %71 = vector.multi_reduction <add>, %70, %cst_31 [1] : vector<16x16xf32> to vector<16xf32>
    %72 = vector.shape_cast %71 : vector<16xf32> to vector<16x1xf32>
    %73 = tpu.reciprocal %72 {approx = true} : vector<16x1xf32> -> vector<16x1xf32>
    %74 = vector.broadcast %73 : vector<16x1xf32> to vector<16x16xf32>
    %75 = arith.mulf %70, %74 : vector<16x16xf32>
    %cst_32 = arith.constant dense<0.000000e+00> : vector<16x8xf32>
    %76 = tpu.matmul %75, %61, %cst_32 {dimension_numbers = #tpu.dot_dimension_numbers<[1], [0], [0], [1], [0, 0, 1, 1], [], []>} : vector<16x16xf32>, vector<16x8xf32>, vector<16x8xf32> -> vector<16x8xf32>
    %77 = vector.extract_strided_slice %22 {offsets = [0, 24], sizes = [16, 8], strides = [1, 1]} : vector<16x96xf32> to vector<16x8xf32>
    %78 = vector.extract_strided_slice %22 {offsets = [0, 56], sizes = [16, 8], strides = [1, 1]} : vector<16x96xf32> to vector<16x8xf32>
    %79 = vector.extract_strided_slice %22 {offsets = [0, 88], sizes = [16, 8], strides = [1, 1]} : vector<16x96xf32> to vector<16x8xf32>
    %cst_33 = arith.constant dense<0.000000e+00> : vector<16x16xf32>
    %80 = tpu.matmul %77, %78, %cst_33 {dimension_numbers = #tpu.dot_dimension_numbers<[1], [1], [0], [0], [0, 0, 1, 0], [], []>} : vector<16x8xf32>, vector<16x8xf32>, vector<16x16xf32> -> vector<16x16xf32>
    %cst_34 = arith.constant 0.353553385 : f32
    %81 = vector.broadcast %cst_34 : f32 to vector<16x16xf32>
    %82 = arith.mulf %80, %81 : vector<16x16xf32>
    %83 = arith.addf %82, %1 : vector<16x16xf32>
    %cst_35 = arith.constant dense<0xFF800000> : vector<16xf32>
    %84 = vector.multi_reduction <maximumf>, %83, %cst_35 [1] : vector<16x16xf32> to vector<16xf32>
    %85 = vector.shape_cast %84 : vector<16xf32> to vector<16x1xf32>
    %86 = vector.broadcast %85 : vector<16x1xf32> to vector<16x16xf32>
    %87 = arith.subf %83, %86 : vector<16x16xf32>
    %88 = math.exp %87 : vector<16x16xf32>
    %cst_36 = arith.constant dense<0.000000e+00> : vector<16xf32>
    %89 = vector.multi_reduction <add>, %88, %cst_36 [1] : vector<16x16xf32> to vector<16xf32>
    %90 = vector.shape_cast %89 : vector<16xf32> to vector<16x1xf32>
    %91 = tpu.reciprocal %90 {approx = true} : vector<16x1xf32> -> vector<16x1xf32>
    %92 = vector.broadcast %91 : vector<16x1xf32> to vector<16x16xf32>
    %93 = arith.mulf %88, %92 : vector<16x16xf32>
    %cst_37 = arith.constant dense<0.000000e+00> : vector<16x8xf32>
    %94 = tpu.matmul %93, %79, %cst_37 {dimension_numbers = #tpu.dot_dimension_numbers<[1], [0], [0], [1], [0, 0, 1, 1], [], []>} : vector<16x16xf32>, vector<16x8xf32>, vector<16x8xf32> -> vector<16x8xf32>
    %95 = tpu.concatenate %40, %58, %76, %94 in 1 : vector<16x8xf32>, vector<16x8xf32>, vector<16x8xf32>, vector<16x8xf32> -> vector<16x32xf32>
    %cst_38 = arith.constant dense<0.000000e+00> : vector<16x32xf32>
    %96 = tpu.matmul %95, %5, %cst_38 {dimension_numbers = #tpu.dot_dimension_numbers<[1], [0], [0], [1], [0, 0, 1, 1], [], []>} : vector<16x32xf32>, vector<32x32xf32>, vector<16x32xf32> -> vector<16x32xf32>
    %97 = vector.broadcast %13 : vector<1x32xf32> to vector<16x32xf32>
    %98 = arith.addf %96, %97 : vector<16x32xf32>
    %99 = arith.addf %98, %0 : vector<16x32xf32>
    %cst_39 = arith.constant dense<0.000000e+00> : vector<16xf32>
    %100 = vector.multi_reduction <add>, %99, %cst_39 [1] : vector<16x32xf32> to vector<16xf32>
    %101 = vector.shape_cast %100 : vector<16xf32> to vector<16x1xf32>
    %cst_40 = arith.constant 3.200000e+01 : f32
    %102 = vector.broadcast %cst_40 : f32 to vector<16x1xf32>
    %103 = arith.divf %101, %102 : vector<16x1xf32>
    %104 = vector.broadcast %103 : vector<16x1xf32> to vector<16x32xf32>
    %105 = arith.subf %99, %104 : vector<16x32xf32>
    %106 = arith.mulf %105, %105 : vector<16x32xf32>
    %cst_41 = arith.constant dense<0.000000e+00> : vector<16xf32>
    %107 = vector.multi_reduction <add>, %106, %cst_41 [1] : vector<16x32xf32> to vector<16xf32>
    %108 = vector.shape_cast %107 : vector<16xf32> to vector<16x1xf32>
    %cst_42 = arith.constant 3.200000e+01 : f32
    %109 = vector.broadcast %cst_42 : f32 to vector<16x1xf32>
    %110 = arith.divf %108, %109 : vector<16x1xf32>
    %111 = vector.broadcast %103 : vector<16x1xf32> to vector<16x32xf32>
    %112 = arith.subf %99, %111 : vector<16x32xf32>
    %cst_43 = arith.constant 9.99999996E-13 : f32
    %113 = vector.broadcast %cst_43 : f32 to vector<16x1xf32>
    %114 = arith.addf %110, %113 : vector<16x1xf32>
    %115 = math.rsqrt %114 : vector<16x1xf32>
    %116 = vector.broadcast %115 : vector<16x1xf32> to vector<16x32xf32>
    %117 = arith.mulf %112, %116 : vector<16x32xf32>
    %118 = vector.broadcast %14 : vector<1x32xf32> to vector<16x32xf32>
    %119 = arith.mulf %117, %118 : vector<16x32xf32>
    %120 = vector.broadcast %15 : vector<1x32xf32> to vector<16x32xf32>
    %121 = arith.addf %119, %120 : vector<16x32xf32>
    %cst_44 = arith.constant dense<0.000000e+00> : vector<16x64xf32>
    %122 = tpu.matmul %121, %7, %cst_44 {dimension_numbers = #tpu.dot_dimension_numbers<[1], [0], [0], [1], [0, 0, 1, 1], [], []>} : vector<16x32xf32>, vector<32x64xf32>, vector<16x64xf32> -> vector<16x64xf32>
    %123 = vector.broadcast %16 : vector<1x64xf32> to vector<16x64xf32>
    %124 = arith.addf %122, %123 : vector<16x64xf32>
    %cst_45 = arith.constant 5.000000e-01 : f32
    %125 = vector.broadcast %cst_45 : f32 to vector<16x64xf32>
    %126 = arith.mulf %125, %124 : vector<16x64xf32>
    %cst_46 = arith.constant 0.707106769 : f32
    %127 = vector.broadcast %cst_46 : f32 to vector<16x64xf32>
    %128 = arith.mulf %124, %127 : vector<16x64xf32>
    %129 = math.erf %128 : vector<16x64xf32>
    %cst_47 = arith.constant 1.000000e+00 : f32
    %130 = vector.broadcast %cst_47 : f32 to vector<16x64xf32>
    %131 = arith.addf %130, %129 : vector<16x64xf32>
    %132 = arith.mulf %126, %131 : vector<16x64xf32>
    %cst_48 = arith.constant dense<0.000000e+00> : vector<16x32xf32>
    %133 = tpu.matmul %132, %9, %cst_48 {dimension_numbers = #tpu.dot_dimension_numbers<[1], [0], [0], [1], [0, 0, 1, 1], [], []>} : vector<16x64xf32>, vector<64x32xf32>, vector<16x32xf32> -> vector<16x32xf32>
    %134 = vector.broadcast %17 : vector<1x32xf32> to vector<16x32xf32>
    %135 = arith.addf %133, %134 : vector<16x32xf32>
    %136 = arith.addf %135, %121 : vector<16x32xf32>
    %cst_49 = arith.constant dense<0.000000e+00> : vector<16xf32>
    %137 = vector.multi_reduction <add>, %136, %cst_49 [1] : vector<16x32xf32> to vector<16xf32>
    %138 = vector.shape_cast %137 : vector<16xf32> to vector<16x1xf32>
    %cst_50 = arith.constant 3.200000e+01 : f32
    %139 = vector.broadcast %cst_50 : f32 to vector<16x1xf32>
    %140 = arith.divf %138, %139 : vector<16x1xf32>
    %141 = vector.broadcast %140 : vector<16x1xf32> to vector<16x32xf32>
    %142 = arith.subf %136, %141 : vector<16x32xf32>
    %143 = arith.mulf %142, %142 : vector<16x32xf32>
    %cst_51 = arith.constant dense<0.000000e+00> : vector<16xf32>
    %144 = vector.multi_reduction <add>, %143, %cst_51 [1] : vector<16x32xf32> to vector<16xf32>
    %145 = vector.shape_cast %144 : vector<16xf32> to vector<16x1xf32>
    %cst_52 = arith.constant 3.200000e+01 : f32
    %146 = vector.broadcast %cst_52 : f32 to vector<16x1xf32>
    %147 = arith.divf %145, %146 : vector<16x1xf32>
    %148 = vector.broadcast %140 : vector<16x1xf32> to vector<16x32xf32>
    %149 = arith.subf %136, %148 : vector<16x32xf32>
    %cst_53 = arith.constant 9.99999996E-13 : f32
    %150 = vector.broadcast %cst_53 : f32 to vector<16x1xf32>
    %151 = arith.addf %147, %150 : vector<16x1xf32>
    %152 = math.rsqrt %151 : vector<16x1xf32>
    %153 = vector.broadcast %152 : vector<16x1xf32> to vector<16x32xf32>
    %154 = arith.mulf %149, %153 : vector<16x32xf32>
    %155 = vector.broadcast %18 : vector<1x32xf32> to vector<16x32xf32>
    %156 = arith.mulf %154, %155 : vector<16x32xf32>
    %157 = vector.broadcast %19 : vector<1x32xf32> to vector<16x32xf32>
    %158 = arith.addf %156, %157 : vector<16x32xf32>
    %c1 = arith.constant 1 : index
    %c0_54 = arith.constant 0 : index
    %c0_55 = arith.constant 0 : index
    %159 = vector.load %arg2[%c1, %c0_54, %c0_55] : memref<2x32x96xf32, #tpu.memory_space<vmem>>, vector<1x32x96xf32>
    %160 = vector.shape_cast %159 : vector<1x32x96xf32> to vector<32x96xf32>
    %c1_56 = arith.constant 1 : index
    %c0_57 = arith.constant 0 : index
    %c0_58 = arith.constant 0 : index
    %161 = vector.load %arg3[%c1_56, %c0_57, %c0_58] : memref<2x32x32xf32, #tpu.memory_space<vmem>>, vector<1x32x32xf32>
    %162 = vector.shape_cast %161 : vector<1x32x32xf32> to vector<32x32xf32>
    %c1_59 = arith.constant 1 : index
    %c0_60 = arith.constant 0 : index
    %c0_61 = arith.constant 0 : index
    %163 = vector.load %arg4[%c1_59, %c0_60, %c0_61] : memref<2x32x64xf32, #tpu.memory_space<vmem>>, vector<1x32x64xf32>
    %164 = vector.shape_cast %163 : vector<1x32x64xf32> to vector<32x64xf32>
    %c1_62 = arith.constant 1 : index
    %c0_63 = arith.constant 0 : index
    %c0_64 = arith.constant 0 : index
    %165 = vector.load %arg5[%c1_62, %c0_63, %c0_64] : memref<2x64x32xf32, #tpu.memory_space<vmem>>, vector<1x64x32xf32>
    %166 = vector.shape_cast %165 : vector<1x64x32xf32> to vector<64x32xf32>
    %c1_65 = arith.constant 1 : index
    %c0_66 = arith.constant 0 : index
    %c0_67 = arith.constant 0 : index
    %167 = vector.load %arg6[%c1_65, %c0_66, %c0_67] : memref<2x8x128xf32, #tpu.memory_space<vmem>>, vector<1x8x128xf32>
    %168 = vector.shape_cast %167 : vector<1x8x128xf32> to vector<8x128xf32>
    %169 = vector.extract_strided_slice %168 {offsets = [0, 0], sizes = [1, 96], strides = [1, 1]} : vector<8x128xf32> to vector<1x96xf32>
    %170 = vector.extract_strided_slice %168 {offsets = [1, 0], sizes = [1, 32], strides = [1, 1]} : vector<8x128xf32> to vector<1x32xf32>
    %171 = vector.extract_strided_slice %168 {offsets = [2, 0], sizes = [1, 32], strides = [1, 1]} : vector<8x128xf32> to vector<1x32xf32>
    %172 = vector.extract_strided_slice %168 {offsets = [3, 0], sizes = [1, 32], strides = [1, 1]} : vector<8x128xf32> to vector<1x32xf32>
    %173 = vector.extract_strided_slice %168 {offsets = [4, 0], sizes = [1, 64], strides = [1, 1]} : vector<8x128xf32> to vector<1x64xf32>
    %174 = vector.extract_strided_slice %168 {offsets = [5, 0], sizes = [1, 32], strides = [1, 1]} : vector<8x128xf32> to vector<1x32xf32>
    %175 = vector.extract_strided_slice %168 {offsets = [6, 0], sizes = [1, 32], strides = [1, 1]} : vector<8x128xf32> to vector<1x32xf32>
    %176 = vector.extract_strided_slice %168 {offsets = [7, 0], sizes = [1, 32], strides = [1, 1]} : vector<8x128xf32> to vector<1x32xf32>
    %cst_68 = arith.constant dense<0.000000e+00> : vector<16x96xf32>
    %177 = tpu.matmul %158, %160, %cst_68 {dimension_numbers = #tpu.dot_dimension_numbers<[1], [0], [0], [1], [0, 0, 1, 1], [], []>} : vector<16x32xf32>, vector<32x96xf32>, vector<16x96xf32> -> vector<16x96xf32>
    %178 = vector.broadcast %169 : vector<1x96xf32> to vector<16x96xf32>
    %179 = arith.addf %177, %178 : vector<16x96xf32>
    %180 = vector.extract_strided_slice %179 {offsets = [0, 0], sizes = [16, 8], strides = [1, 1]} : vector<16x96xf32> to vector<16x8xf32>
    %181 = vector.extract_strided_slice %179 {offsets = [0, 32], sizes = [16, 8], strides = [1, 1]} : vector<16x96xf32> to vector<16x8xf32>
    %182 = vector.extract_strided_slice %179 {offsets = [0, 64], sizes = [16, 8], strides = [1, 1]} : vector<16x96xf32> to vector<16x8xf32>
    %cst_69 = arith.constant dense<0.000000e+00> : vector<16x16xf32>
    %183 = tpu.matmul %180, %181, %cst_69 {dimension_numbers = #tpu.dot_dimension_numbers<[1], [1], [0], [0], [0, 0, 1, 0], [], []>} : vector<16x8xf32>, vector<16x8xf32>, vector<16x16xf32> -> vector<16x16xf32>
    %cst_70 = arith.constant 0.353553385 : f32
    %184 = vector.broadcast %cst_70 : f32 to vector<16x16xf32>
    %185 = arith.mulf %183, %184 : vector<16x16xf32>
    %186 = arith.addf %185, %1 : vector<16x16xf32>
    %cst_71 = arith.constant dense<0xFF800000> : vector<16xf32>
    %187 = vector.multi_reduction <maximumf>, %186, %cst_71 [1] : vector<16x16xf32> to vector<16xf32>
    %188 = vector.shape_cast %187 : vector<16xf32> to vector<16x1xf32>
    %189 = vector.broadcast %188 : vector<16x1xf32> to vector<16x16xf32>
    %190 = arith.subf %186, %189 : vector<16x16xf32>
    %191 = math.exp %190 : vector<16x16xf32>
    %cst_72 = arith.constant dense<0.000000e+00> : vector<16xf32>
    %192 = vector.multi_reduction <add>, %191, %cst_72 [1] : vector<16x16xf32> to vector<16xf32>
    %193 = vector.shape_cast %192 : vector<16xf32> to vector<16x1xf32>
    %194 = tpu.reciprocal %193 {approx = true} : vector<16x1xf32> -> vector<16x1xf32>
    %195 = vector.broadcast %194 : vector<16x1xf32> to vector<16x16xf32>
    %196 = arith.mulf %191, %195 : vector<16x16xf32>
    %cst_73 = arith.constant dense<0.000000e+00> : vector<16x8xf32>
    %197 = tpu.matmul %196, %182, %cst_73 {dimension_numbers = #tpu.dot_dimension_numbers<[1], [0], [0], [1], [0, 0, 1, 1], [], []>} : vector<16x16xf32>, vector<16x8xf32>, vector<16x8xf32> -> vector<16x8xf32>
    %198 = vector.extract_strided_slice %179 {offsets = [0, 8], sizes = [16, 8], strides = [1, 1]} : vector<16x96xf32> to vector<16x8xf32>
    %199 = vector.extract_strided_slice %179 {offsets = [0, 40], sizes = [16, 8], strides = [1, 1]} : vector<16x96xf32> to vector<16x8xf32>
    %200 = vector.extract_strided_slice %179 {offsets = [0, 72], sizes = [16, 8], strides = [1, 1]} : vector<16x96xf32> to vector<16x8xf32>
    %cst_74 = arith.constant dense<0.000000e+00> : vector<16x16xf32>
    %201 = tpu.matmul %198, %199, %cst_74 {dimension_numbers = #tpu.dot_dimension_numbers<[1], [1], [0], [0], [0, 0, 1, 0], [], []>} : vector<16x8xf32>, vector<16x8xf32>, vector<16x16xf32> -> vector<16x16xf32>
    %cst_75 = arith.constant 0.353553385 : f32
    %202 = vector.broadcast %cst_75 : f32 to vector<16x16xf32>
    %203 = arith.mulf %201, %202 : vector<16x16xf32>
    %204 = arith.addf %203, %1 : vector<16x16xf32>
    %cst_76 = arith.constant dense<0xFF800000> : vector<16xf32>
    %205 = vector.multi_reduction <maximumf>, %204, %cst_76 [1] : vector<16x16xf32> to vector<16xf32>
    %206 = vector.shape_cast %205 : vector<16xf32> to vector<16x1xf32>
    %207 = vector.broadcast %206 : vector<16x1xf32> to vector<16x16xf32>
    %208 = arith.subf %204, %207 : vector<16x16xf32>
    %209 = math.exp %208 : vector<16x16xf32>
    %cst_77 = arith.constant dense<0.000000e+00> : vector<16xf32>
    %210 = vector.multi_reduction <add>, %209, %cst_77 [1] : vector<16x16xf32> to vector<16xf32>
    %211 = vector.shape_cast %210 : vector<16xf32> to vector<16x1xf32>
    %212 = tpu.reciprocal %211 {approx = true} : vector<16x1xf32> -> vector<16x1xf32>
    %213 = vector.broadcast %212 : vector<16x1xf32> to vector<16x16xf32>
    %214 = arith.mulf %209, %213 : vector<16x16xf32>
    %cst_78 = arith.constant dense<0.000000e+00> : vector<16x8xf32>
    %215 = tpu.matmul %214, %200, %cst_78 {dimension_numbers = #tpu.dot_dimension_numbers<[1], [0], [0], [1], [0, 0, 1, 1], [], []>} : vector<16x16xf32>, vector<16x8xf32>, vector<16x8xf32> -> vector<16x8xf32>
    %216 = vector.extract_strided_slice %179 {offsets = [0, 16], sizes = [16, 8], strides = [1, 1]} : vector<16x96xf32> to vector<16x8xf32>
    %217 = vector.extract_strided_slice %179 {offsets = [0, 48], sizes = [16, 8], strides = [1, 1]} : vector<16x96xf32> to vector<16x8xf32>
    %218 = vector.extract_strided_slice %179 {offsets = [0, 80], sizes = [16, 8], strides = [1, 1]} : vector<16x96xf32> to vector<16x8xf32>
    %cst_79 = arith.constant dense<0.000000e+00> : vector<16x16xf32>
    %219 = tpu.matmul %216, %217, %cst_79 {dimension_numbers = #tpu.dot_dimension_numbers<[1], [1], [0], [0], [0, 0, 1, 0], [], []>} : vector<16x8xf32>, vector<16x8xf32>, vector<16x16xf32> -> vector<16x16xf32>
    %cst_80 = arith.constant 0.353553385 : f32
    %220 = vector.broadcast %cst_80 : f32 to vector<16x16xf32>
    %221 = arith.mulf %219, %220 : vector<16x16xf32>
    %222 = arith.addf %221, %1 : vector<16x16xf32>
    %cst_81 = arith.constant dense<0xFF800000> : vector<16xf32>
    %223 = vector.multi_reduction <maximumf>, %222, %cst_81 [1] : vector<16x16xf32> to vector<16xf32>
    %224 = vector.shape_cast %223 : vector<16xf32> to vector<16x1xf32>
    %225 = vector.broadcast %224 : vector<16x1xf32> to vector<16x16xf32>
    %226 = arith.subf %222, %225 : vector<16x16xf32>
    %227 = math.exp %226 : vector<16x16xf32>
    %cst_82 = arith.constant dense<0.000000e+00> : vector<16xf32>
    %228 = vector.multi_reduction <add>, %227, %cst_82 [1] : vector<16x16xf32> to vector<16xf32>
    %229 = vector.shape_cast %228 : vector<16xf32> to vector<16x1xf32>
    %230 = tpu.reciprocal %229 {approx = true} : vector<16x1xf32> -> vector<16x1xf32>
    %231 = vector.broadcast %230 : vector<16x1xf32> to vector<16x16xf32>
    %232 = arith.mulf %227, %231 : vector<16x16xf32>
    %cst_83 = arith.constant dense<0.000000e+00> : vector<16x8xf32>
    %233 = tpu.matmul %232, %218, %cst_83 {dimension_numbers = #tpu.dot_dimension_numbers<[1], [0], [0], [1], [0, 0, 1, 1], [], []>} : vector<16x16xf32>, vector<16x8xf32>, vector<16x8xf32> -> vector<16x8xf32>
    %234 = vector.extract_strided_slice %179 {offsets = [0, 24], sizes = [16, 8], strides = [1, 1]} : vector<16x96xf32> to vector<16x8xf32>
    %235 = vector.extract_strided_slice %179 {offsets = [0, 56], sizes = [16, 8], strides = [1, 1]} : vector<16x96xf32> to vector<16x8xf32>
    %236 = vector.extract_strided_slice %179 {offsets = [0, 88], sizes = [16, 8], strides = [1, 1]} : vector<16x96xf32> to vector<16x8xf32>
    %cst_84 = arith.constant dense<0.000000e+00> : vector<16x16xf32>
    %237 = tpu.matmul %234, %235, %cst_84 {dimension_numbers = #tpu.dot_dimension_numbers<[1], [1], [0], [0], [0, 0, 1, 0], [], []>} : vector<16x8xf32>, vector<16x8xf32>, vector<16x16xf32> -> vector<16x16xf32>
    %cst_85 = arith.constant 0.353553385 : f32
    %238 = vector.broadcast %cst_85 : f32 to vector<16x16xf32>
    %239 = arith.mulf %237, %238 : vector<16x16xf32>
    %240 = arith.addf %239, %1 : vector<16x16xf32>
    %cst_86 = arith.constant dense<0xFF800000> : vector<16xf32>
    %241 = vector.multi_reduction <maximumf>, %240, %cst_86 [1] : vector<16x16xf32> to vector<16xf32>
    %242 = vector.shape_cast %241 : vector<16xf32> to vector<16x1xf32>
    %243 = vector.broadcast %242 : vector<16x1xf32> to vector<16x16xf32>
    %244 = arith.subf %240, %243 : vector<16x16xf32>
    %245 = math.exp %244 : vector<16x16xf32>
    %cst_87 = arith.constant dense<0.000000e+00> : vector<16xf32>
    %246 = vector.multi_reduction <add>, %245, %cst_87 [1] : vector<16x16xf32> to vector<16xf32>
    %247 = vector.shape_cast %246 : vector<16xf32> to vector<16x1xf32>
    %248 = tpu.reciprocal %247 {approx = true} : vector<16x1xf32> -> vector<16x1xf32>
    %249 = vector.broadcast %248 : vector<16x1xf32> to vector<16x16xf32>
    %250 = arith.mulf %245, %249 : vector<16x16xf32>
    %cst_88 = arith.constant dense<0.000000e+00> : vector<16x8xf32>
    %251 = tpu.matmul %250, %236, %cst_88 {dimension_numbers = #tpu.dot_dimension_numbers<[1], [0], [0], [1], [0, 0, 1, 1], [], []>} : vector<16x16xf32>, vector<16x8xf32>, vector<16x8xf32> -> vector<16x8xf32>
    %252 = tpu.concatenate %197, %215, %233, %251 in 1 : vector<16x8xf32>, vector<16x8xf32>, vector<16x8xf32>, vector<16x8xf32> -> vector<16x32xf32>
    %cst_89 = arith.constant dense<0.000000e+00> : vector<16x32xf32>
    %253 = tpu.matmul %252, %162, %cst_89 {dimension_numbers = #tpu.dot_dimension_numbers<[1], [0], [0], [1], [0, 0, 1, 1], [], []>} : vector<16x32xf32>, vector<32x32xf32>, vector<16x32xf32> -> vector<16x32xf32>
    %254 = vector.broadcast %170 : vector<1x32xf32> to vector<16x32xf32>
    %255 = arith.addf %253, %254 : vector<16x32xf32>
    %256 = arith.addf %255, %158 : vector<16x32xf32>
    %cst_90 = arith.constant dense<0.000000e+00> : vector<16xf32>
    %257 = vector.multi_reduction <add>, %256, %cst_90 [1] : vector<16x32xf32> to vector<16xf32>
    %258 = vector.shape_cast %257 : vector<16xf32> to vector<16x1xf32>
    %cst_91 = arith.constant 3.200000e+01 : f32
    %259 = vector.broadcast %cst_91 : f32 to vector<16x1xf32>
    %260 = arith.divf %258, %259 : vector<16x1xf32>
    %261 = vector.broadcast %260 : vector<16x1xf32> to vector<16x32xf32>
    %262 = arith.subf %256, %261 : vector<16x32xf32>
    %263 = arith.mulf %262, %262 : vector<16x32xf32>
    %cst_92 = arith.constant dense<0.000000e+00> : vector<16xf32>
    %264 = vector.multi_reduction <add>, %263, %cst_92 [1] : vector<16x32xf32> to vector<16xf32>
    %265 = vector.shape_cast %264 : vector<16xf32> to vector<16x1xf32>
    %cst_93 = arith.constant 3.200000e+01 : f32
    %266 = vector.broadcast %cst_93 : f32 to vector<16x1xf32>
    %267 = arith.divf %265, %266 : vector<16x1xf32>
    %268 = vector.broadcast %260 : vector<16x1xf32> to vector<16x32xf32>
    %269 = arith.subf %256, %268 : vector<16x32xf32>
    %cst_94 = arith.constant 9.99999996E-13 : f32
    %270 = vector.broadcast %cst_94 : f32 to vector<16x1xf32>
    %271 = arith.addf %267, %270 : vector<16x1xf32>
    %272 = math.rsqrt %271 : vector<16x1xf32>
    %273 = vector.broadcast %272 : vector<16x1xf32> to vector<16x32xf32>
    %274 = arith.mulf %269, %273 : vector<16x32xf32>
    %275 = vector.broadcast %171 : vector<1x32xf32> to vector<16x32xf32>
    %276 = arith.mulf %274, %275 : vector<16x32xf32>
    %277 = vector.broadcast %172 : vector<1x32xf32> to vector<16x32xf32>
    %278 = arith.addf %276, %277 : vector<16x32xf32>
    %cst_95 = arith.constant dense<0.000000e+00> : vector<16x64xf32>
    %279 = tpu.matmul %278, %164, %cst_95 {dimension_numbers = #tpu.dot_dimension_numbers<[1], [0], [0], [1], [0, 0, 1, 1], [], []>} : vector<16x32xf32>, vector<32x64xf32>, vector<16x64xf32> -> vector<16x64xf32>
    %280 = vector.broadcast %173 : vector<1x64xf32> to vector<16x64xf32>
    %281 = arith.addf %279, %280 : vector<16x64xf32>
    %cst_96 = arith.constant 5.000000e-01 : f32
    %282 = vector.broadcast %cst_96 : f32 to vector<16x64xf32>
    %283 = arith.mulf %282, %281 : vector<16x64xf32>
    %cst_97 = arith.constant 0.707106769 : f32
    %284 = vector.broadcast %cst_97 : f32 to vector<16x64xf32>
    %285 = arith.mulf %281, %284 : vector<16x64xf32>
    %286 = math.erf %285 : vector<16x64xf32>
    %cst_98 = arith.constant 1.000000e+00 : f32
    %287 = vector.broadcast %cst_98 : f32 to vector<16x64xf32>
    %288 = arith.addf %287, %286 : vector<16x64xf32>
    %289 = arith.mulf %283, %288 : vector<16x64xf32>
    %cst_99 = arith.constant dense<0.000000e+00> : vector<16x32xf32>
    %290 = tpu.matmul %289, %166, %cst_99 {dimension_numbers = #tpu.dot_dimension_numbers<[1], [0], [0], [1], [0, 0, 1, 1], [], []>} : vector<16x64xf32>, vector<64x32xf32>, vector<16x32xf32> -> vector<16x32xf32>
    %291 = vector.broadcast %174 : vector<1x32xf32> to vector<16x32xf32>
    %292 = arith.addf %290, %291 : vector<16x32xf32>
    %293 = arith.addf %292, %278 : vector<16x32xf32>
    %cst_100 = arith.constant dense<0.000000e+00> : vector<16xf32>
    %294 = vector.multi_reduction <add>, %293, %cst_100 [1] : vector<16x32xf32> to vector<16xf32>
    %295 = vector.shape_cast %294 : vector<16xf32> to vector<16x1xf32>
    %cst_101 = arith.constant 3.200000e+01 : f32
    %296 = vector.broadcast %cst_101 : f32 to vector<16x1xf32>
    %297 = arith.divf %295, %296 : vector<16x1xf32>
    %298 = vector.broadcast %297 : vector<16x1xf32> to vector<16x32xf32>
    %299 = arith.subf %293, %298 : vector<16x32xf32>
    %300 = arith.mulf %299, %299 : vector<16x32xf32>
    %cst_102 = arith.constant dense<0.000000e+00> : vector<16xf32>
    %301 = vector.multi_reduction <add>, %300, %cst_102 [1] : vector<16x32xf32> to vector<16xf32>
    %302 = vector.shape_cast %301 : vector<16xf32> to vector<16x1xf32>
    %cst_103 = arith.constant 3.200000e+01 : f32
    %303 = vector.broadcast %cst_103 : f32 to vector<16x1xf32>
    %304 = arith.divf %302, %303 : vector<16x1xf32>
    %305 = vector.broadcast %297 : vector<16x1xf32> to vector<16x32xf32>
    %306 = arith.subf %293, %305 : vector<16x32xf32>
    %cst_104 = arith.constant 9.99999996E-13 : f32
    %307 = vector.broadcast %cst_104 : f32 to vector<16x1xf32>
    %308 = arith.addf %304, %307 : vector<16x1xf32>
    %309 = math.rsqrt %308 : vector<16x1xf32>
    %310 = vector.broadcast %309 : vector<16x1xf32> to vector<16x32xf32>
    %311 = arith.mulf %306, %310 : vector<16x32xf32>
    %312 = vector.broadcast %175 : vector<1x32xf32> to vector<16x32xf32>
    %313 = arith.mulf %311, %312 : vector<16x32xf32>
    %314 = vector.broadcast %176 : vector<1x32xf32> to vector<16x32xf32>
    %315 = arith.addf %313, %314 : vector<16x32xf32>
    %c0_105 = arith.constant 0 : index
    %c0_106 = arith.constant 0 : index
    %316 = vector.load %arg7[%c0_105, %c0_106] : memref<16x32xf32, #tpu.memory_space<vmem>>, vector<16x32xf32>
    tpu.vector_store %arg7[%c0_105, %c0_106], %315 {strides = array<i32>} : memref<16x32xf32, #tpu.memory_space<vmem>>, vector<16x32xf32>,
    return
  }
}

</mosaic_0001>

<llo_original>
// kernel: tpu_custom_call.1
$region0: #{tpu_custom_call.1}
  #allocation0 [shape = 'u32[]', space=smem, size = 0x4, offset = 0x4, fixed_abs, tag = 'smem constant byte address 0x4 - core index']
  #allocation1 [shape = 'u32[144,128]{1,0:T(1,128)}', space=vmem, size = 0x12000, scoped, tag = 'internal scratch']
  %s0 = inlined_call_operand.hbm [shape: f32[16,32], index: 0, kind: input, shape index: {}]
  %s1 = inlined_call_operand.hbm [shape: f32[16,16], index: 1, kind: input, shape index: {}]
  %s2 = inlined_call_operand.vmem [shape: f32[2,32,96], index: 2, kind: input, shape index: {}]
  %s3 = inlined_call_operand.vmem [shape: f32[2,32,32], index: 3, kind: input, shape index: {}]
  %s4 = inlined_call_operand.vmem [shape: f32[2,32,64], index: 4, kind: input, shape index: {}]
  %s5 = inlined_call_operand.vmem [shape: f32[2,64,32], index: 5, kind: input, shape index: {}]
  %s6 = inlined_call_operand.vmem [shape: f32[2,8,128], index: 6, kind: input, shape index: {}]
  %s7 = inlined_call_operand.hbm [shape: f32[16,32], index: 7, kind: output, shape index: {}]
  %s8 = sld [smem:[#allocation0]]
  $region46: #{tpu_custom_call.1} parent=0
    _
  %s10 = ssub.s32 1, %s8
  %s11 = scalar_select 0, %s10, %s8
  $region1: #{tpu_custom_call.1} parent=0
    #allocation2 [shape = 'u8[8192]{0}', space=vmem, size = 0x2000, scoped, tag = 'input window, operand 0, single buffered']
    #allocation3 [shape = 's32[1]{0}', space=sflag, size = 0x4, scoped, tag = 'scoped memory for tpu_custom_call.1']
    #allocation4 [shape = 's32[1]{0}', space=sflag, size = 0x4, scoped, tag = 'scoped memory for tpu_custom_call.1']
    #allocation5 [shape = 'u8[8192]{0}', space=vmem, size = 0x2000, scoped, tag = 'input window, operand 1, single buffered']
    #allocation6 [shape = 's32[1]{0}', space=sflag, size = 0x4, scoped, tag = 'scoped memory for tpu_custom_call.1']
    #allocation7 [shape = 'u8[8192]{0}', space=vmem, size = 0x2000, scoped, tag = 'output window, operand 0, single buffered']
    %12 = vsyncpa [#allocation3], 0
    %13 = vsyncpa [#allocation6], 0
    %14 = vsyncpa [#allocation4], 0
    // Predicated region
    $region2: #{tpu_custom_call.1} parent=1 // pred_check
      _
    $region3: #{tpu_custom_call.1} parent=1 // pred_check_branch
      %16 = sbr.rel (0) target = $region5
    $region4: #{tpu_custom_call.1} parent=1 // pred_region
      %s18 = ssub.s32 256, 256
      %19 = vsyncadd [#allocation3], %s18
      %s20 = sshll.u32 [#allocation2], 4
      %s21 = int_to_ptr.vmem [resolvable:$true] %s20
      %26 = dma.hbm_to_vmem [thread:$0]  %s0, 256, %s21, [#allocation3], 128, 128, 8
    $region5: #{tpu_custom_call.1} parent=1 // pred_fallthru
      _
    // Predicated region
    $region6: #{tpu_custom_call.1} parent=1 // pred_check
      _
    $region7: #{tpu_custom_call.1} parent=1 // pred_check_branch
      %28 = sbr.rel (0) target = $region9
    $region8: #{tpu_custom_call.1} parent=1 // pred_region
      %s30 = ssub.s32 256, 256
      %31 = vsyncadd [#allocation6], %s30
      %s32 = sshll.u32 [#allocation5], 4
      %s33 = int_to_ptr.vmem [resolvable:$true] %s32
      %38 = dma.hbm_to_vmem [thread:$0]  %s1, 256, %s33, [#allocation6], 128, 128, 8
    $region9: #{tpu_custom_call.1} parent=1 // pred_fallthru
      _
    // Predicated region
    $region10: #{tpu_custom_call.1} parent=1 // pred_check
      _
    $region11: #{tpu_custom_call.1} parent=1 // pred_check_branch
      %40 = sbr.rel (0) target = $region13
    $region12: #{tpu_custom_call.1} parent=1 // pred_region
      _
    $region13: #{tpu_custom_call.1} parent=1 // pred_fallthru
      _
    // Predicated region
    $region14: #{tpu_custom_call.1} parent=1 // pred_check
      _
    $region15: #{tpu_custom_call.1} parent=1 // pred_check_branch
      %42 = sbr.rel (0) target = $region17
    $region16: #{tpu_custom_call.1} parent=1 // pred_region
      _
    $region17: #{tpu_custom_call.1} parent=1 // pred_fallthru
      _
    // Predicated region
    $region18: #{tpu_custom_call.1} parent=1 // pred_check
      _
    $region19: #{tpu_custom_call.1} parent=1 // pred_check_branch
      %44 = sbr.rel (0) target = $region21
    $region20: #{tpu_custom_call.1} parent=1 // pred_region
      _
    $region21: #{tpu_custom_call.1} parent=1 // pred_fallthru
      _
    // Predicated region
    $region22: #{tpu_custom_call.1} parent=1 // pred_check
      _
    $region23: #{tpu_custom_call.1} parent=1 // pred_check_branch
      %46 = sbr.rel (0) target = $region25
    $region24: #{tpu_custom_call.1} parent=1 // pred_region
      _
    $region25: #{tpu_custom_call.1} parent=1 // pred_fallthru
      _
    // Predicated region
    $region26: #{tpu_custom_call.1} parent=1 // pred_check
      _
    $region27: #{tpu_custom_call.1} parent=1 // pred_check_branch
      %48 = sbr.rel (0) target = $region29
    $region28: #{tpu_custom_call.1} parent=1 // pred_region
      _
    $region29: #{tpu_custom_call.1} parent=1 // pred_fallthru
      _
    // Predicated region
    $region30: #{tpu_custom_call.1} parent=1 // pred_check
      _
    $region31: #{tpu_custom_call.1} parent=1 // pred_check_branch
      %50 = sbr.rel (0) target = $region33
    $region32: #{tpu_custom_call.1} parent=1 // pred_region
      %51 = dma.done [#allocation3], 256
    $region33: #{tpu_custom_call.1} parent=1 // pred_fallthru
      _
    // Predicated region
    $region34: #{tpu_custom_call.1} parent=1 // pred_check
      _
    $region35: #{tpu_custom_call.1} parent=1 // pred_check_branch
      %53 = sbr.rel (0) target = $region37
    $region36: #{tpu_custom_call.1} parent=1 // pred_region
      %54 = dma.done [#allocation6], 256
    $region37: #{tpu_custom_call.1} parent=1 // pred_fallthru
      _
    %v55 = vld [vmem:[#allocation2] sm:$0xff]
    %v56 = vld [vmem:[#allocation2 + $0x8] sm:$0xff]
    %v57 = vld [vmem:[#allocation5] sm:$0xff]
    %v58 = vld [vmem:[#allocation5 + $0x8] sm:$0xff]
    %v59 = vld [vmem:[%s2] sm:$0xff]
    %v60 = vld [vmem:[%s2 + $0x8] sm:$0xff]
    %v61 = vld [vmem:[%s2 + $0x10] sm:$0xff]
    %v62 = vld [vmem:[%s2 + $0x18] sm:$0xff]
    %v63 = vld [vmem:[%s3] sm:$0xff]
    %v64 = vld [vmem:[%s3 + $0x8] sm:$0xff]
    %v65 = vld [vmem:[%s3 + $0x10] sm:$0xff]
    %v66 = vld [vmem:[%s3 + $0x18] sm:$0xff]
    %v67 = vld [vmem:[%s4] sm:$0xff]
    %v68 = vld [vmem:[%s4 + $0x8] sm:$0xff]
    %v69 = vld [vmem:[%s4 + $0x10] sm:$0xff]
    %v70 = vld [vmem:[%s4 + $0x18] sm:$0xff]
    %v71 = vld [vmem:[%s5] sm:$0xff]
    %v72 = vld [vmem:[%s5 + $0x8] sm:$0xff]
    %v73 = vld [vmem:[%s5 + $0x10] sm:$0xff]
    %v74 = vld [vmem:[%s5 + $0x18] sm:$0xff]
    %v75 = vld [vmem:[%s5 + $0x20] sm:$0xff]
    %v76 = vld [vmem:[%s5 + $0x28] sm:$0xff]
    %v77 = vld [vmem:[%s5 + $0x30] sm:$0xff]
    %v78 = vld [vmem:[%s5 + $0x38] sm:$0xff]
    %v79 = vld [vmem:[%s6] sm:$0xff]
    %v80 = vlaneseq
    %v81 = vshrl.u32 %v80, 7
    %v82 = vsub.s32 0, %v81
    %v83 = vrot.slane %v79, %v82
    %vm84 = vcmask 261120
    %v86 = vsel %vm84, %v55, 0
    %v89 = vsel %vm84, %v56, 0
    %91 = vmatprep.subr.mxu0 0.0
    %92 = vmatpush1.msra.mxu0 %v59
    %93 = vmatprep.subr.mxu0 0.0
    %94 = vmatpush1.msra.mxu0 %v60
    %95 = vmatprep.subr.mxu0 0.0
    %96 = vmatpush1.msra.mxu0 %v61
    %97 = vmatprep.subr.mxu0 0.0
    %98 = vmatpush1.msra.mxu0 %v62
    %99 = vmatprep.subr.mxu0 0.0
    %100 = vmatpush1.msra.mxu0 0.0
    %101 = vmatprep.subr.mxu0 0.0
    %102 = vmatpush1.msra.mxu0 0.0
    %103 = vmatprep.subr.mxu0 0.0
    %104 = vmatpush1.msra.mxu0 0.0
    %105 = vmatprep.subr.mxu0 0.0
    %106 = vmatpush1.msra.mxu0 0.0
    %107 = vmatprep.subr.mxu0 0.0
    %108 = vmatpush1.msra.mxu0 0.0
    %109 = vmatprep.subr.mxu0 0.0
    %110 = vmatpush1.msra.mxu0 0.0
    %111 = vmatprep.subr.mxu0 0.0
    %112 = vmatpush1.msra.mxu0 0.0
    %113 = vmatprep.subr.mxu0 0.0
    %114 = vmatpush1.msra.mxu0 0.0
    %115 = vmatprep.subr.mxu0 0.0
    %116 = vmatpush1.msra.mxu0 0.0
    %117 = vmatprep.subr.mxu0 0.0
    %118 = vmatpush1.msra.mxu0 0.0
    %119 = vmatprep.subr.mxu0 0.0
    %120 = vmatpush1.msra.mxu0 0.0
    %121 = vmatprep.subr.mxu0 0.0
    %122 = vmatpush1.msra.mxu0 0.0
    %123 = vmatprep.subr.mxu0 0.0
    %124 = vmatpush1.msra.mxu0 0.0
    %125 = vmatprep.subr.mxu0 0.0
    %126 = vmatpush1.msra.mxu0 0.0
    %127 = vmatprep.subr.mxu0 0.0
    %128 = vmatpush1.msra.mxu0 0.0
    %129 = vmatprep.subr.mxu0 0.0
    %130 = vmatpush1.msra.mxu0 0.0
    %131 = vmatprep.subr.mxu0 0.0
    %132 = vmatpush1.msra.mxu0 0.0
    %133 = vmatprep.subr.mxu0 0.0
    %134 = vmatpush1.msra.mxu0 0.0
    %135 = vmatprep.subr.mxu0 0.0
    %136 = vmatpush1.msra.mxu0 0.0
    %137 = vmatprep.subr.mxu0 0.0
    %138 = vmatpush1.msra.mxu0 0.0
    %139 = vmatprep.subr.mxu0 0.0
    %140 = vmatpush1.msra.mxu0 0.0
    %141 = vmatprep.subr.mxu0 0.0
    %142 = vmatpush1.msra.mxu0 0.0
    %143 = vmatprep.subr.mxu0 0.0
    %144 = vmatpush1.msra.mxu0 0.0
    %145 = vmatprep.subr.mxu0 0.0
    %146 = vmatpush1.msra.mxu0 0.0
    %147 = vmatprep.subr.mxu0 0.0
    %148 = vmatpush1.msra.mxu0 0.0
    %149 = vmatprep.subr.mxu0 0.0
    %150 = vmatpush1.msra.mxu0 0.0
    %151 = vmatprep.subr.mxu0 0.0
    %152 = vmatpush1.msra.mxu0 0.0
    %153 = vmatprep.subr.mxu0 0.0
    %154 = vmatpush1.msra.mxu0 0.0
    %155 = vmatprep.mubr.f32.mxu0 0.0
    %156 = vmatmul.mubr.f32.gmra.mrb[0].mxu0 %v86
    %v157 = vpop.f32.mrb[0].mxu0
    %v158 = vadd.f32 %v83, %v157
    %v159 = vpop.f32.mrb[0].mxu0
    %160 = vmatprep.mubr.f32.mxu0 0.0
    %161 = vmatmul.mubr.f32.gmra.mrb[0].mxu0 %v89
    %v162 = vpop.f32.mrb[0].mxu0
    %v163 = vadd.f32 %v83, %v162
    %v164 = vpop.f32.mrb[0].mxu0
    %165 = vdwg.mxu0
    %168 = vrot.lane.b32.xlu0 %v158, 96
    %v169 = vpop.permute.xlu0 %168
    %170 = vrot.lane.b32.xlu0 %v163, 96
    %v171 = vpop.permute.xlu0 %170
    %vm172 = vcmask 64512
    %v173 = vsel %vm172, %v158, 0
    %v175 = vsel %vm172, %v163, 0
    %v177 = vsel %vm172, %v169, 0
    %v179 = vsel %vm172, %v171, 0
    %181 = vmatprep.subr.mxu0 0.0
    %182 = vmatpush1.xpose.msra.mxu0 %v177
    %183 = vmatprep.subr.mxu0 0.0
    %184 = vmatpush1.xpose.msra.mxu0 %v179
    %185 = vmatprep.subr.mxu0 0.0
    %186 = vmatpush1.xpose.msra.mxu0 0.0
    %187 = vmatprep.subr.mxu0 0.0
    %188 = vmatpush1.xpose.msra.mxu0 0.0
    %189 = vmatprep.subr.mxu0 0.0
    %190 = vmatpush1.xpose.msra.mxu0 0.0
    %191 = vmatprep.subr.mxu0 0.0
    %192 = vmatpush1.xpose.msra.mxu0 0.0
    %193 = vmatprep.subr.mxu0 0.0
    %194 = vmatpush1.xpose.msra.mxu0 0.0
    %195 = vmatprep.subr.mxu0 0.0
    %196 = vmatpush1.xpose.msra.mxu0 0.0
    %197 = vmatprep.subr.mxu0 0.0
    %198 = vmatpush1.xpose.msra.mxu0 0.0
    %199 = vmatprep.subr.mxu0 0.0
    %200 = vmatpush1.xpose.msra.mxu0 0.0
    %201 = vmatprep.subr.mxu0 0.0
    %202 = vmatpush1.xpose.msra.mxu0 0.0
    %203 = vmatprep.subr.mxu0 0.0
    %204 = vmatpush1.xpose.msra.mxu0 0.0
    %205 = vmatprep.subr.mxu0 0.0
    %206 = vmatpush1.xpose.msra.mxu0 0.0
    %207 = vmatprep.subr.mxu0 0.0
    %208 = vmatpush1.xpose.msra.mxu0 0.0
    %209 = vmatprep.subr.mxu0 0.0
    %210 = vmatpush1.xpose.msra.mxu0 0.0
    %211 = vmatprep.subr.mxu0 0.0
    %212 = vmatpush1.xpose.msra.mxu0 0.0
    %213 = vmatprep.subr.mxu0 0.0
    %214 = vmatpush1.xpose.msra.mxu0 0.0
    %215 = vmatprep.subr.mxu0 0.0
    %216 = vmatpush1.xpose.msra.mxu0 0.0
    %217 = vmatprep.subr.mxu0 0.0
    %218 = vmatpush1.xpose.msra.mxu0 0.0
    %219 = vmatprep.subr.mxu0 0.0
    %220 = vmatpush1.xpose.msra.mxu0 0.0
    %221 = vmatprep.subr.mxu0 0.0
    %222 = vmatpush1.xpose.msra.mxu0 0.0
    %223 = vmatprep.subr.mxu0 0.0
    %224 = vmatpush1.xpose.msra.mxu0 0.0
    %225 = vmatprep.subr.mxu0 0.0
    %226 = vmatpush1.xpose.msra.mxu0 0.0
    %227 = vmatprep.subr.mxu0 0.0
    %228 = vmatpush1.xpose.msra.mxu0 0.0
    %229 = vmatprep.subr.mxu0 0.0
    %230 = vmatpush1.xpose.msra.mxu0 0.0
    %231 = vmatprep.subr.mxu0 0.0
    %232 = vmatpush1.xpose.msra.mxu0 0.0
    %233 = vmatprep.subr.mxu0 0.0
    %234 = vmatpush1.xpose.msra.mxu0 0.0
    %235 = vmatprep.subr.mxu0 0.0
    %236 = vmatpush1.xpose.msra.mxu0 0.0
    %237 = vmatprep.subr.mxu0 0.0
    %238 = vmatpush1.xpose.msra.mxu0 0.0
    %239 = vmatprep.subr.mxu0 0.0
    %240 = vmatpush1.xpose.msra.mxu0 0.0
    %241 = vmatprep.subr.mxu0 0.0
    %242 = vmatpush1.xpose.msra.mxu0 0.0
    %243 = vmatprep.subr.mxu0 0.0
    %244 = vmatpush1.xpose.msra.mxu0 0.0
    %245 = vmatprep.mubr.f32.mxu0 0.0
    %246 = vmatmul.mubr.f32.gmra.mrb[0].mxu0 %v173
    %v247 = vpop.f32.mrb[0].mxu0
    %v248 = vadd.f32 0.0, %v247
    %v249 = vpop.f32.mrb[0].mxu0
    %250 = vmatprep.mubr.f32.mxu0 0.0
    %251 = vmatmul.mubr.f32.gmra.mrb[0].mxu0 %v175
    %v252 = vpop.f32.mrb[0].mxu0
    %v253 = vadd.f32 0.0, %v252
    %v254 = vpop.f32.mrb[0].mxu0
    %255 = vdwg.mxu0
    %v256 = vmul.f32 %v248, 0.35355338
    %v257 = vmul.f32 %v253, 0.35355338
    %v258 = vadd.f32 %v256, %v57
    %v259 = vadd.f32 %v257, %v58
    %vm260 = vcmask 130048
    %v261 = vsel %vm260, %v258, -inf
    %262 = vmax.xlane.f32.xlu0 %v261
    %v263 = vpop.xlane.xlu0 %262
    %v264 = vsel %vm260, %v259, -inf
    %265 = vmax.xlane.f32.xlu0 %v264
    %v266 = vpop.xlane.xlu0 %265
    %v267 = vsub.f32 %v258, %v263
    %v268 = vsub.f32 %v259, %v266
    %v269 = vmul.f32 %v267, 1.442695
    %v270 = vpow.pop %v269
    %v271 = vmul.f32 %v268, 1.442695
    %v272 = vpow.pop %v271
    %v273 = vsel %vm260, %v270, 0.0
    %274 = vadd.xlane.f32.xlu0 %v273
    %v275 = vpop.xlane.xlu0 %274
    %v276 = vsel %vm260, %v272, 0.0
    %277 = vadd.xlane.f32.xlu0 %v276
    %v278 = vpop.xlane.xlu0 %277
    %v279 = vrcp.pop %v275
    %v280 = vrcp.pop %v278
    %v281 = vmul.f32 %v270, %v279
    %v282 = vmul.f32 %v272, %v280
    %283 = vrot.lane.b32.xlu0 %v158, 64
    %v284 = vpop.permute.xlu0 %283
    %285 = vrot.lane.b32.xlu0 %v163, 64
    %v286 = vpop.permute.xlu0 %285
    %v290 = vsel %vm260, %v281, 0
    %v293 = vsel %vm260, %v282, 0
    %295 = vmatprep.subr.mxu0 0.0
    %296 = vmatpush1.msra.mxu0 %v284
    %297 = vmatprep.subr.mxu0 0.0
    %298 = vmatpush1.msra.mxu0 %v286
    %299 = vmatprep.subr.mxu0 0.0
    %300 = vmatpush1.msra.mxu0 0.0
    %301 = vmatprep.subr.mxu0 0.0
    %302 = vmatpush1.msra.mxu0 0.0
    %303 = vmatprep.subr.mxu0 0.0
    %304 = vmatpush1.msra.mxu0 0.0
    %305 = vmatprep.subr.mxu0 0.0
    %306 = vmatpush1.msra.mxu0 0.0
    %307 = vmatprep.subr.mxu0 0.0
    %308 = vmatpush1.msra.mxu0 0.0
    %309 = vmatprep.subr.mxu0 0.0
    %310 = vmatpush1.msra.mxu0 0.0
    %311 = vmatprep.subr.mxu0 0.0
    %312 = vmatpush1.msra.mxu0 0.0
    %313 = vmatprep.subr.mxu0 0.0
    %314 = vmatpush1.msra.mxu0 0.0
    %315 = vmatprep.subr.mxu0 0.0
    %316 = vmatpush1.msra.mxu0 0.0
    %317 = vmatprep.subr.mxu0 0.0
    %318 = vmatpush1.msra.mxu0 0.0
    %319 = vmatprep.subr.mxu0 0.0
    %320 = vmatpush1.msra.mxu0 0.0
    %321 = vmatprep.subr.mxu0 0.0
    %322 = vmatpush1.msra.mxu0 0.0
    %323 = vmatprep.subr.mxu0 0.0
    %324 = vmatpush1.msra.mxu0 0.0
    %325 = vmatprep.subr.mxu0 0.0
    %326 = vmatpush1.msra.mxu0 0.0
    %327 = vmatprep.subr.mxu0 0.0
    %328 = vmatpush1.msra.mxu0 0.0
    %329 = vmatprep.subr.mxu0 0.0
    %330 = vmatpush1.msra.mxu0 0.0
    %331 = vmatprep.subr.mxu0 0.0
    %332 = vmatpush1.msra.mxu0 0.0
    %333 = vmatprep.subr.mxu0 0.0
    %334 = vmatpush1.msra.mxu0 0.0
    %335 = vmatprep.subr.mxu0 0.0
    %336 = vmatpush1.msra.mxu0 0.0
    %337 = vmatprep.subr.mxu0 0.0
    %338 = vmatpush1.msra.mxu0 0.0
    %339 = vmatprep.subr.mxu0 0.0
    %340 = vmatpush1.msra.mxu0 0.0
    %341 = vmatprep.subr.mxu0 0.0
    %342 = vmatpush1.msra.mxu0 0.0
    %343 = vmatprep.subr.mxu0 0.0
    %344 = vmatpush1.msra.mxu0 0.0
    %345 = vmatprep.subr.mxu0 0.0
    %346 = vmatpush1.msra.mxu0 0.0
    %347 = vmatprep.subr.mxu0 0.0
    %348 = vmatpush1.msra.mxu0 0.0
    %349 = vmatprep.subr.mxu0 0.0
    %350 = vmatpush1.msra.mxu0 0.0
    %351 = vmatprep.subr.mxu0 0.0
    %352 = vmatpush1.msra.mxu0 0.0
    %353 = vmatprep.subr.mxu0 0.0
    %354 = vmatpush1.msra.mxu0 0.0
    %355 = vmatprep.subr.mxu0 0.0
    %356 = vmatpush1.msra.mxu0 0.0
    %357 = vmatprep.subr.mxu0 0.0
    %358 = vmatpush1.msra.mxu0 0.0
    %359 = vmatprep.mubr.f32.mxu0 0.0
    %360 = vmatmul.mubr.f32.gmra.mrb[0].mxu0 %v290
    %v361 = vpop.f32.mrb[0].mxu0
    %v362 = vadd.f32 0.0, %v361
    %v363 = vpop.f32.mrb[0].mxu0
    %364 = vmatprep.mubr.f32.mxu0 0.0
    %365 = vmatmul.mubr.f32.gmra.mrb[0].mxu0 %v293
    %v366 = vpop.f32.mrb[0].mxu0
    %v367 = vadd.f32 0.0, %v366
    %v368 = vpop.f32.mrb[0].mxu0
    %369 = vdwg.mxu0
    %370 = vrot.lane.b32.xlu0 %v158, 120
    %v371 = vpop.permute.xlu0 %370
    %372 = vrot.lane.b32.xlu0 %v163, 120
    %v373 = vpop.permute.xlu0 %372
    %374 = vrot.lane.b32.xlu0 %v158, 88
    %v375 = vpop.permute.xlu0 %374
    %376 = vrot.lane.b32.xlu0 %v163, 88
    %v377 = vpop.permute.xlu0 %376
    %v378 = vsel %vm172, %v371, 0
    %v380 = vsel %vm172, %v373, 0
    %v382 = vsel %vm172, %v375, 0
    %v384 = vsel %vm172, %v377, 0
    %386 = vmatprep.subr.mxu0 0.0
    %387 = vmatpush1.xpose.msra.mxu0 %v382
    %388 = vmatprep.subr.mxu0 0.0
    %389 = vmatpush1.xpose.msra.mxu0 %v384
    %390 = vmatprep.subr.mxu0 0.0
    %391 = vmatpush1.xpose.msra.mxu0 0.0
    %392 = vmatprep.subr.mxu0 0.0
    %393 = vmatpush1.xpose.msra.mxu0 0.0
    %394 = vmatprep.subr.mxu0 0.0
    %395 = vmatpush1.xpose.msra.mxu0 0.0
    %396 = vmatprep.subr.mxu0 0.0
    %397 = vmatpush1.xpose.msra.mxu0 0.0
    %398 = vmatprep.subr.mxu0 0.0
    %399 = vmatpush1.xpose.msra.mxu0 0.0
    %400 = vmatprep.subr.mxu0 0.0
    %401 = vmatpush1.xpose.msra.mxu0 0.0
    %402 = vmatprep.subr.mxu0 0.0
    %403 = vmatpush1.xpose.msra.mxu0 0.0
    %404 = vmatprep.subr.mxu0 0.0
    %405 = vmatpush1.xpose.msra.mxu0 0.0
    %406 = vmatprep.subr.mxu0 0.0
    %407 = vmatpush1.xpose.msra.mxu0 0.0
    %408 = vmatprep.subr.mxu0 0.0
    %409 = vmatpush1.xpose.msra.mxu0 0.0
    %410 = vmatprep.subr.mxu0 0.0
    %411 = vmatpush1.xpose.msra.mxu0 0.0
    %412 = vmatprep.subr.mxu0 0.0
    %413 = vmatpush1.xpose.msra.mxu0 0.0
    %414 = vmatprep.subr.mxu0 0.0
    %415 = vmatpush1.xpose.msra.mxu0 0.0
    %416 = vmatprep.subr.mxu0 0.0
    %417 = vmatpush1.xpose.msra.mxu0 0.0
    %418 = vmatprep.subr.mxu0 0.0
    %419 = vmatpush1.xpose.msra.mxu0 0.0
    %420 = vmatprep.subr.mxu0 0.0
    %421 = vmatpush1.xpose.msra.mxu0 0.0
    %422 = vmatprep.subr.mxu0 0.0
    %423 = vmatpush1.xpose.msra.mxu0 0.0
    %424 = vmatprep.subr.mxu0 0.0
    %425 = vmatpush1.xpose.msra.mxu0 0.0
    %426 = vmatprep.subr.mxu0 0.0
    %427 = vmatpush1.xpose.msra.mxu0 0.0
    %428 = vmatprep.subr.mxu0 0.0
    %429 = vmatpush1.xpose.msra.mxu0 0.0
    %430 = vmatprep.subr.mxu0 0.0
    %431 = vmatpush1.xpose.msra.mxu0 0.0
    %432 = vmatprep.subr.mxu0 0.0
    %433 = vmatpush1.xpose.msra.mxu0 0.0
    %434 = vmatprep.subr.mxu0 0.0
    %435 = vmatpush1.xpose.msra.mxu0 0.0
    %436 = vmatprep.subr.mxu0 0.0
    %437 = vmatpush1.xpose.msra.mxu0 0.0
    %438 = vmatprep.subr.mxu0 0.0
    %439 = vmatpush1.xpose.msra.mxu0 0.0
    %440 = vmatprep.subr.mxu0 0.0
    %441 = vmatpush1.xpose.msra.mxu0 0.0
    %442 = vmatprep.subr.mxu0 0.0
    %443 = vmatpush1.xpose.msra.mxu0 0.0
    %444 = vmatprep.subr.mxu0 0.0
    %445 = vmatpush1.xpose.msra.mxu0 0.0
    %446 = vmatprep.subr.mxu0 0.0
    %447 = vmatpush1.xpose.msra.mxu0 0.0
    %448 = vmatprep.subr.mxu0 0.0
    %449 = vmatpush1.xpose.msra.mxu0 0.0
    %450 = vmatprep.mubr.f32.mxu0 0.0
    %451 = vmatmul.mubr.f32.gmra.mrb[0].mxu0 %v378
    %v452 = vpop.f32.mrb[0].mxu0
    %v453 = vadd.f32 0.0, %v452
    %v454 = vpop.f32.mrb[0].mxu0
    %455 = vmatprep.mubr.f32.mxu0 0.0
    %456 = vmatmul.mubr.f32.gmra.mrb[0].mxu0 %v380
    %v457 = vpop.f32.mrb[0].mxu0
    %v458 = vadd.f32 0.0, %v457
    %v459 = vpop.f32.mrb[0].mxu0
    %460 = vdwg.mxu0
    %v461 = vmul.f32 %v453, 0.35355338
    %v462 = vmul.f32 %v458, 0.35355338
    %v463 = vadd.f32 %v461, %v57
    %v464 = vadd.f32 %v462, %v58
    %v465 = vsel %vm260, %v463, -inf
    %466 = vmax.xlane.f32.xlu0 %v465
    %v467 = vpop.xlane.xlu0 %466
    %v468 = vsel %vm260, %v464, -inf
    %469 = vmax.xlane.f32.xlu0 %v468
    %v470 = vpop.xlane.xlu0 %469
    %v471 = vsub.f32 %v463, %v467
    %v472 = vsub.f32 %v464, %v470
    %v473 = vmul.f32 %v471, 1.442695
    %v474 = vpow.pop %v473
    %v475 = vmul.f32 %v472, 1.442695
    %v476 = vpow.pop %v475
    %v477 = vsel %vm260, %v474, 0.0
    %478 = vadd.xlane.f32.xlu0 %v477
    %v479 = vpop.xlane.xlu0 %478
    %v480 = vsel %vm260, %v476, 0.0
    %481 = vadd.xlane.f32.xlu0 %v480
    %v482 = vpop.xlane.xlu0 %481
    %v483 = vrcp.pop %v479
    %v484 = vrcp.pop %v482
    %v485 = vmul.f32 %v474, %v483
    %v486 = vmul.f32 %v476, %v484
    %487 = vrot.lane.b32.xlu0 %v158, 56
    %v488 = vpop.permute.xlu0 %487
    %489 = vrot.lane.b32.xlu0 %v163, 56
    %v490 = vpop.permute.xlu0 %489
    %v494 = vsel %vm260, %v485, 0
    %v497 = vsel %vm260, %v486, 0
    %499 = vmatprep.subr.mxu0 0.0
    %500 = vmatpush1.msra.mxu0 %v488
    %501 = vmatprep.subr.mxu0 0.0
    %502 = vmatpush1.msra.mxu0 %v490
    %503 = vmatprep.subr.mxu0 0.0
    %504 = vmatpush1.msra.mxu0 0.0
    %505 = vmatprep.subr.mxu0 0.0
    %506 = vmatpush1.msra.mxu0 0.0
    %507 = vmatprep.subr.mxu0 0.0
    %508 = vmatpush1.msra.mxu0 0.0
    %509 = vmatprep.subr.mxu0 0.0
    %510 = vmatpush1.msra.mxu0 0.0
    %511 = vmatprep.subr.mxu0 0.0
    %512 = vmatpush1.msra.mxu0 0.0
    %513 = vmatprep.subr.mxu0 0.0
    %514 = vmatpush1.msra.mxu0 0.0
    %515 = vmatprep.subr.mxu0 0.0
    %516 = vmatpush1.msra.mxu0 0.0
    %517 = vmatprep.subr.mxu0 0.0
    %518 = vmatpush1.msra.mxu0 0.0
    %519 = vmatprep.subr.mxu0 0.0
    %520 = vmatpush1.msra.mxu0 0.0
    %521 = vmatprep.subr.mxu0 0.0
    %522 = vmatpush1.msra.mxu0 0.0
    %523 = vmatprep.subr.mxu0 0.0
    %524 = vmatpush1.msra.mxu0 0.0
    %525 = vmatprep.subr.mxu0 0.0
    %526 = vmatpush1.msra.mxu0 0.0
    %527 = vmatprep.subr.mxu0 0.0
    %528 = vmatpush1.msra.mxu0 0.0
    %529 = vmatprep.subr.mxu0 0.0
    %530 = vmatpush1.msra.mxu0 0.0
    %531 = vmatprep.subr.mxu0 0.0
    %532 = vmatpush1.msra.mxu0 0.0
    %533 = vmatprep.subr.mxu0 0.0
    %534 = vmatpush1.msra.mxu0 0.0
    %535 = vmatprep.subr.mxu0 0.0
    %536 = vmatpush1.msra.mxu0 0.0
    %537 = vmatprep.subr.mxu0 0.0
    %538 = vmatpush1.msra.mxu0 0.0
    %539 = vmatprep.subr.mxu0 0.0
    %540 = vmatpush1.msra.mxu0 0.0
    %541 = vmatprep.subr.mxu0 0.0
    %542 = vmatpush1.msra.mxu0 0.0
    %543 = vmatprep.subr.mxu0 0.0
    %544 = vmatpush1.msra.mxu0 0.0
    %545 = vmatprep.subr.mxu0 0.0
    %546 = vmatpush1.msra.mxu0 0.0
    %547 = vmatprep.subr.mxu0 0.0
    %548 = vmatpush1.msra.mxu0 0.0
    %549 = vmatprep.subr.mxu0 0.0
    %550 = vmatpush1.msra.mxu0 0.0
    %551 = vmatprep.subr.mxu0 0.0
    %552 = vmatpush1.msra.mxu0 0.0
    %553 = vmatprep.subr.mxu0 0.0
    %554 = vmatpush1.msra.mxu0 0.0
    %555 = vmatprep.subr.mxu0 0.0
    %556 = vmatpush1.msra.mxu0 0.0
    %557 = vmatprep.subr.mxu0 0.0
    %558 = vmatpush1.msra.mxu0 0.0
    %559 = vmatprep.subr.mxu0 0.0
    %560 = vmatpush1.msra.mxu0 0.0
    %561 = vmatprep.subr.mxu0 0.0
    %562 = vmatpush1.msra.mxu0 0.0
    %563 = vmatprep.mubr.f32.mxu0 0.0
    %564 = vmatmul.mubr.f32.gmra.mrb[0].mxu0 %v494
    %v565 = vpop.f32.mrb[0].mxu0
    %v566 = vadd.f32 0.0, %v565
    %v567 = vpop.f32.mrb[0].mxu0
    %568 = vmatprep.mubr.f32.mxu0 0.0
    %569 = vmatmul.mubr.f32.gmra.mrb[0].mxu0 %v497
    %v570 = vpop.f32.mrb[0].mxu0
    %v571 = vadd.f32 0.0, %v570
    %v572 = vpop.f32.mrb[0].mxu0
    %573 = vdwg.mxu0
    %574 = vrot.lane.b32.xlu0 %v158, 112
    %v575 = vpop.permute.xlu0 %574
    %576 = vrot.lane.b32.xlu0 %v163, 112
    %v577 = vpop.permute.xlu0 %576
    %578 = vrot.lane.b32.xlu0 %v158, 80
    %v579 = vpop.permute.xlu0 %578
    %580 = vrot.lane.b32.xlu0 %v163, 80
    %v581 = vpop.permute.xlu0 %580
    %v582 = vsel %vm172, %v575, 0
    %v584 = vsel %vm172, %v577, 0
    %v586 = vsel %vm172, %v579, 0
    %v588 = vsel %vm172, %v581, 0
    %590 = vmatprep.subr.mxu0 0.0
    %591 = vmatpush1.xpose.msra.mxu0 %v586
    %592 = vmatprep.subr.mxu0 0.0
    %593 = vmatpush1.xpose.msra.mxu0 %v588
    %594 = vmatprep.subr.mxu0 0.0
    %595 = vmatpush1.xpose.msra.mxu0 0.0
    %596 = vmatprep.subr.mxu0 0.0
    %597 = vmatpush1.xpose.msra.mxu0 0.0
    %598 = vmatprep.subr.mxu0 0.0
    %599 = vmatpush1.xpose.msra.mxu0 0.0
    %600 = vmatprep.subr.mxu0 0.0
    %601 = vmatpush1.xpose.msra.mxu0 0.0
    %602 = vmatprep.subr.mxu0 0.0
    %603 = vmatpush1.xpose.msra.mxu0 0.0
    %604 = vmatprep.subr.mxu0 0.0
    %605 = vmatpush1.xpose.msra.mxu0 0.0
    %606 = vmatprep.subr.mxu0 0.0
    %607 = vmatpush1.xpose.msra.mxu0 0.0
    %608 = vmatprep.subr.mxu0 0.0
    %609 = vmatpush1.xpose.msra.mxu0 0.0
    %610 = vmatprep.subr.mxu0 0.0
    %611 = vmatpush1.xpose.msra.mxu0 0.0
    %612 = vmatprep.subr.mxu0 0.0
    %613 = vmatpush1.xpose.msra.mxu0 0.0
    %614 = vmatprep.subr.mxu0 0.0
    %615 = vmatpush1.xpose.msra.mxu0 0.0
    %616 = vmatprep.subr.mxu0 0.0
    %617 = vmatpush1.xpose.msra.mxu0 0.0
    %618 = vmatprep.subr.mxu0 0.0
    %619 = vmatpush1.xpose.msra.mxu0 0.0
    %620 = vmatprep.subr.mxu0 0.0
    %621 = vmatpush1.xpose.msra.mxu0 0.0
    %622 = vmatprep.subr.mxu0 0.0
    %623 = vmatpush1.xpose.msra.mxu0 0.0
    %624 = vmatprep.subr.mxu0 0.0
    %625 = vmatpush1.xpose.msra.mxu0 0.0
    %626 = vmatprep.subr.mxu0 0.0
    %627 = vmatpush1.xpose.msra.mxu0 0.0
    %628 = vmatprep.subr.mxu0 0.0
    %629 = vmatpush1.xpose.msra.mxu0 0.0
    %630 = vmatprep.subr.mxu0 0.0
    %631 = vmatpush1.xpose.msra.mxu0 0.0
    %632 = vmatprep.subr.mxu0 0.0
    %633 = vmatpush1.xpose.msra.mxu0 0.0
    %634 = vmatprep.subr.mxu0 0.0
    %635 = vmatpush1.xpose.msra.mxu0 0.0
    %636 = vmatprep.subr.mxu0 0.0
    %637 = vmatpush1.xpose.msra.mxu0 0.0
    %638 = vmatprep.subr.mxu0 0.0
    %639 = vmatpush1.xpose.msra.mxu0 0.0
    %640 = vmatprep.subr.mxu0 0.0
    %641 = vmatpush1.xpose.msra.mxu0 0.0
    %642 = vmatprep.subr.mxu0 0.0
    %643 = vmatpush1.xpose.msra.mxu0 0.0
    %644 = vmatprep.subr.mxu0 0.0
    %645 = vmatpush1.xpose.msra.mxu0 0.0
    %646 = vmatprep.subr.mxu0 0.0
    %647 = vmatpush1.xpose.msra.mxu0 0.0
    %648 = vmatprep.subr.mxu0 0.0
    %649 = vmatpush1.xpose.msra.mxu0 0.0
    %650 = vmatprep.subr.mxu0 0.0
    %651 = vmatpush1.xpose.msra.mxu0 0.0
    %652 = vmatprep.subr.mxu0 0.0
    %653 = vmatpush1.xpose.msra.mxu0 0.0
    %654 = vmatprep.mubr.f32.mxu0 0.0
    %655 = vmatmul.mubr.f32.gmra.mrb[0].mxu0 %v582
    %v656 = vpop.f32.mrb[0].mxu0
    %v657 = vadd.f32 0.0, %v656
    %v658 = vpop.f32.mrb[0].mxu0
    %659 = vmatprep.mubr.f32.mxu0 0.0
    %660 = vmatmul.mubr.f32.gmra.mrb[0].mxu0 %v584
    %v661 = vpop.f32.mrb[0].mxu0
    %v662 = vadd.f32 0.0, %v661
    %v663 = vpop.f32.mrb[0].mxu0
    %664 = vdwg.mxu0
    %v665 = vmul.f32 %v657, 0.35355338
    %v666 = vmul.f32 %v662, 0.35355338
    %v667 = vadd.f32 %v665, %v57
    %v668 = vadd.f32 %v666, %v58
    %v669 = vsel %vm260, %v667, -inf
    %670 = vmax.xlane.f32.xlu0 %v669
    %v671 = vpop.xlane.xlu0 %670
    %v672 = vsel %vm260, %v668, -inf
    %673 = vmax.xlane.f32.xlu0 %v672
    %v674 = vpop.xlane.xlu0 %673
    %v675 = vsub.f32 %v667, %v671
    %v676 = vsub.f32 %v668, %v674
    %v677 = vmul.f32 %v675, 1.442695
    %v678 = vpow.pop %v677
    %v679 = vmul.f32 %v676, 1.442695
    %v680 = vpow.pop %v679
    %v681 = vsel %vm260, %v678, 0.0
    %682 = vadd.xlane.f32.xlu0 %v681
    %v683 = vpop.xlane.xlu0 %682
    %v684 = vsel %vm260, %v680, 0.0
    %685 = vadd.xlane.f32.xlu0 %v684
    %v686 = vpop.xlane.xlu0 %685
    %v687 = vrcp.pop %v683
    %v688 = vrcp.pop %v686
    %v689 = vmul.f32 %v678, %v687
    %v690 = vmul.f32 %v680, %v688
    %691 = vrot.lane.b32.xlu0 %v158, 48
    %v692 = vpop.permute.xlu0 %691
    %693 = vrot.lane.b32.xlu0 %v163, 48
    %v694 = vpop.permute.xlu0 %693
    %v698 = vsel %vm260, %v689, 0
    %v701 = vsel %vm260, %v690, 0
    %703 = vmatprep.subr.mxu0 0.0
    %704 = vmatpush1.msra.mxu0 %v692
    %705 = vmatprep.subr.mxu0 0.0
    %706 = vmatpush1.msra.mxu0 %v694
    %707 = vmatprep.subr.mxu0 0.0
    %708 = vmatpush1.msra.mxu0 0.0
    %709 = vmatprep.subr.mxu0 0.0
    %710 = vmatpush1.msra.mxu0 0.0
    %711 = vmatprep.subr.mxu0 0.0
    %712 = vmatpush1.msra.mxu0 0.0
    %713 = vmatprep.subr.mxu0 0.0
    %714 = vmatpush1.msra.mxu0 0.0
    %715 = vmatprep.subr.mxu0 0.0
    %716 = vmatpush1.msra.mxu0 0.0
    %717 = vmatprep.subr.mxu0 0.0
    %718 = vmatpush1.msra.mxu0 0.0
    %719 = vmatprep.subr.mxu0 0.0
    %720 = vmatpush1.msra.mxu0 0.0
    %721 = vmatprep.subr.mxu0 0.0
    %722 = vmatpush1.msra.mxu0 0.0
    %723 = vmatprep.subr.mxu0 0.0
    %724 = vmatpush1.msra.mxu0 0.0
    %725 = vmatprep.subr.mxu0 0.0
    %726 = vmatpush1.msra.mxu0 0.0
    %727 = vmatprep.subr.mxu0 0.0
    %728 = vmatpush1.msra.mxu0 0.0
    %729 = vmatprep.subr.mxu0 0.0
    %730 = vmatpush1.msra.mxu0 0.0
    %731 = vmatprep.subr.mxu0 0.0
    %732 = vmatpush1.msra.mxu0 0.0
    %733 = vmatprep.subr.mxu0 0.0
    %734 = vmatpush1.msra.mxu0 0.0
    %735 = vmatprep.subr.mxu0 0.0
    %736 = vmatpush1.msra.mxu0 0.0
    %737 = vmatprep.subr.mxu0 0.0
    %738 = vmatpush1.msra.mxu0 0.0
    %739 = vmatprep.subr.mxu0 0.0
    %740 = vmatpush1.msra.mxu0 0.0
    %741 = vmatprep.subr.mxu0 0.0
    %742 = vmatpush1.msra.mxu0 0.0
    %743 = vmatprep.subr.mxu0 0.0
    %744 = vmatpush1.msra.mxu0 0.0
    %745 = vmatprep.subr.mxu0 0.0
    %746 = vmatpush1.msra.mxu0 0.0
    %747 = vmatprep.subr.mxu0 0.0
    %748 = vmatpush1.msra.mxu0 0.0
    %749 = vmatprep.subr.mxu0 0.0
    %750 = vmatpush1.msra.mxu0 0.0
    %751 = vmatprep.subr.mxu0 0.0
    %752 = vmatpush1.msra.mxu0 0.0
    %753 = vmatprep.subr.mxu0 0.0
    %754 = vmatpush1.msra.mxu0 0.0
    %755 = vmatprep.subr.mxu0 0.0
    %756 = vmatpush1.msra.mxu0 0.0
    %757 = vmatprep.subr.mxu0 0.0
    %758 = vmatpush1.msra.mxu0 0.0
    %759 = vmatprep.subr.mxu0 0.0
    %760 = vmatpush1.msra.mxu0 0.0
    %761 = vmatprep.subr.mxu0 0.0
    %762 = vmatpush1.msra.mxu0 0.0
    %763 = vmatprep.subr.mxu0 0.0
    %764 = vmatpush1.msra.mxu0 0.0
    %765 = vmatprep.subr.mxu0 0.0
    %766 = vmatpush1.msra.mxu0 0.0
    %767 = vmatprep.mubr.f32.mxu0 0.0
    %768 = vmatmul.mubr.f32.gmra.mrb[0].mxu0 %v698
    %v769 = vpop.f32.mrb[0].mxu0
    %v770 = vadd.f32 0.0, %v769
    %v771 = vpop.f32.mrb[0].mxu0
    %772 = vmatprep.mubr.f32.mxu0 0.0
    %773 = vmatmul.mubr.f32.gmra.mrb[0].mxu0 %v701
    %v774 = vpop.f32.mrb[0].mxu0
    %v775 = vadd.f32 0.0, %v774
    %v776 = vpop.f32.mrb[0].mxu0
    %777 = vdwg.mxu0
    %778 = vrot.lane.b32.xlu0 %v158, 104
    %v779 = vpop.permute.xlu0 %778
    %780 = vrot.lane.b32.xlu0 %v163, 104
    %v781 = vpop.permute.xlu0 %780
    %782 = vrot.lane.b32.xlu0 %v158, 72
    %v783 = vpop.permute.xlu0 %782
    %784 = vrot.lane.b32.xlu0 %v163, 72
    %v785 = vpop.permute.xlu0 %784
    %v786 = vsel %vm172, %v779, 0
    %v788 = vsel %vm172, %v781, 0
    %v790 = vsel %vm172, %v783, 0
    %v792 = vsel %vm172, %v785, 0
    %794 = vmatprep.subr.mxu0 0.0
    %795 = vmatpush1.xpose.msra.mxu0 %v790
    %796 = vmatprep.subr.mxu0 0.0
    %797 = vmatpush1.xpose.msra.mxu0 %v792
    %798 = vmatprep.subr.mxu0 0.0
    %799 = vmatpush1.xpose.msra.mxu0 0.0
    %800 = vmatprep.subr.mxu0 0.0
    %801 = vmatpush1.xpose.msra.mxu0 0.0
    %802 = vmatprep.subr.mxu0 0.0
    %803 = vmatpush1.xpose.msra.mxu0 0.0
    %804 = vmatprep.subr.mxu0 0.0
    %805 = vmatpush1.xpose.msra.mxu0 0.0
    %806 = vmatprep.subr.mxu0 0.0
    %807 = vmatpush1.xpose.msra.mxu0 0.0
    %808 = vmatprep.subr.mxu0 0.0
    %809 = vmatpush1.xpose.msra.mxu0 0.0
    %810 = vmatprep.subr.mxu0 0.0
    %811 = vmatpush1.xpose.msra.mxu0 0.0
    %812 = vmatprep.subr.mxu0 0.0
    %813 = vmatpush1.xpose.msra.mxu0 0.0
    %814 = vmatprep.subr.mxu0 0.0
    %815 = vmatpush1.xpose.msra.mxu0 0.0
    %816 = vmatprep.subr.mxu0 0.0
    %817 = vmatpush1.xpose.msra.mxu0 0.0
    %818 = vmatprep.subr.mxu0 0.0
    %819 = vmatpush1.xpose.msra.mxu0 0.0
    %820 = vmatprep.subr.mxu0 0.0
    %821 = vmatpush1.xpose.msra.mxu0 0.0
    %822 = vmatprep.subr.mxu0 0.0
    %823 = vmatpush1.xpose.msra.mxu0 0.0
    %824 = vmatprep.subr.mxu0 0.0
    %825 = vmatpush1.xpose.msra.mxu0 0.0
    %826 = vmatprep.subr.mxu0 0.0
    %827 = vmatpush1.xpose.msra.mxu0 0.0
    %828 = vmatprep.subr.mxu0 0.0
    %829 = vmatpush1.xpose.msra.mxu0 0.0
    %830 = vmatprep.subr.mxu0 0.0
    %831 = vmatpush1.xpose.msra.mxu0 0.0
    %832 = vmatprep.subr.mxu0 0.0
    %833 = vmatpush1.xpose.msra.mxu0 0.0
    %834 = vmatprep.subr.mxu0 0.0
    %835 = vmatpush1.xpose.msra.mxu0 0.0
    %836 = vmatprep.subr.mxu0 0.0
    %837 = vmatpush1.xpose.msra.mxu0 0.0
    %838 = vmatprep.subr.mxu0 0.0
    %839 = vmatpush1.xpose.msra.mxu0 0.0
    %840 = vmatprep.subr.mxu0 0.0
    %841 = vmatpush1.xpose.msra.mxu0 0.0
    %842 = vmatprep.subr.mxu0 0.0
    %843 = vmatpush1.xpose.msra.mxu0 0.0
    %844 = vmatprep.subr.mxu0 0.0
    %845 = vmatpush1.xpose.msra.mxu0 0.0
    %846 = vmatprep.subr.mxu0 0.0
    %847 = vmatpush1.xpose.msra.mxu0 0.0
    %848 = vmatprep.subr.mxu0 0.0
    %849 = vmatpush1.xpose.msra.mxu0 0.0
    %850 = vmatprep.subr.mxu0 0.0
    %851 = vmatpush1.xpose.msra.mxu0 0.0
    %852 = vmatprep.subr.mxu0 0.0
    %853 = vmatpush1.xpose.msra.mxu0 0.0
    %854 = vmatprep.subr.mxu0 0.0
    %855 = vmatpush1.xpose.msra.mxu0 0.0
    %856 = vmatprep.subr.mxu0 0.0
    %857 = vmatpush1.xpose.msra.mxu0 0.0
    %858 = vmatprep.mubr.f32.mxu0 0.0
    %859 = vmatmul.mubr.f32.gmra.mrb[0].mxu0 %v786
    %v860 = vpop.f32.mrb[0].mxu0
    %v861 = vadd.f32 0.0, %v860
    %v862 = vpop.f32.mrb[0].mxu0
    %863 = vmatprep.mubr.f32.mxu0 0.0
    %864 = vmatmul.mubr.f32.gmra.mrb[0].mxu0 %v788
    %v865 = vpop.f32.mrb[0].mxu0
    %v866 = vadd.f32 0.0, %v865
    %v867 = vpop.f32.mrb[0].mxu0
    %868 = vdwg.mxu0
    %v869 = vmul.f32 %v861, 0.35355338
    %v870 = vmul.f32 %v866, 0.35355338
    %v871 = vadd.f32 %v869, %v57
    %v872 = vadd.f32 %v870, %v58
    %v873 = vsel %vm260, %v871, -inf
    %874 = vmax.xlane.f32.xlu0 %v873
    %v875 = vpop.xlane.xlu0 %874
    %v876 = vsel %vm260, %v872, -inf
    %877 = vmax.xlane.f32.xlu0 %v876
    %v878 = vpop.xlane.xlu0 %877
    %v879 = vsub.f32 %v871, %v875
    %v880 = vsub.f32 %v872, %v878
    %v881 = vmul.f32 %v879, 1.442695
    %v882 = vpow.pop %v881
    %v883 = vmul.f32 %v880, 1.442695
    %v884 = vpow.pop %v883
    %v885 = vsel %vm260, %v882, 0.0
    %886 = vadd.xlane.f32.xlu0 %v885
    %v887 = vpop.xlane.xlu0 %886
    %v888 = vsel %vm260, %v884, 0.0
    %889 = vadd.xlane.f32.xlu0 %v888
    %v890 = vpop.xlane.xlu0 %889
    %v891 = vrcp.pop %v887
    %v892 = vrcp.pop %v890
    %v893 = vmul.f32 %v882, %v891
    %v894 = vmul.f32 %v884, %v892
    %895 = vrot.lane.b32.xlu0 %v158, 40
    %v896 = vpop.permute.xlu0 %895
    %897 = vrot.lane.b32.xlu0 %v163, 40
    %v898 = vpop.permute.xlu0 %897
    %v902 = vsel %vm260, %v893, 0
    %v905 = vsel %vm260, %v894, 0
    %907 = vmatprep.subr.mxu0 0.0
    %908 = vmatpush1.msra.mxu0 %v896
    %909 = vmatprep.subr.mxu0 0.0
    %910 = vmatpush1.msra.mxu0 %v898
    %911 = vmatprep.subr.mxu0 0.0
    %912 = vmatpush1.msra.mxu0 0.0
    %913 = vmatprep.subr.mxu0 0.0
    %914 = vmatpush1.msra.mxu0 0.0
    %915 = vmatprep.subr.mxu0 0.0
    %916 = vmatpush1.msra.mxu0 0.0
    %917 = vmatprep.subr.mxu0 0.0
    %918 = vmatpush1.msra.mxu0 0.0
    %919 = vmatprep.subr.mxu0 0.0
    %920 = vmatpush1.msra.mxu0 0.0
    %921 = vmatprep.subr.mxu0 0.0
    %922 = vmatpush1.msra.mxu0 0.0
    %923 = vmatprep.subr.mxu0 0.0
    %924 = vmatpush1.msra.mxu0 0.0
    %925 = vmatprep.subr.mxu0 0.0
    %926 = vmatpush1.msra.mxu0 0.0
    %927 = vmatprep.subr.mxu0 0.0
    %928 = vmatpush1.msra.mxu0 0.0
    %929 = vmatprep.subr.mxu0 0.0
    %930 = vmatpush1.msra.mxu0 0.0
    %931 = vmatprep.subr.mxu0 0.0
    %932 = vmatpush1.msra.mxu0 0.0
    %933 = vmatprep.subr.mxu0 0.0
    %934 = vmatpush1.msra.mxu0 0.0
    %935 = vmatprep.subr.mxu0 0.0
    %936 = vmatpush1.msra.mxu0 0.0
    %937 = vmatprep.subr.mxu0 0.0
    %938 = vmatpush1.msra.mxu0 0.0
    %939 = vmatprep.subr.mxu0 0.0
    %940 = vmatpush1.msra.mxu0 0.0
    %941 = vmatprep.subr.mxu0 0.0
    %942 = vmatpush1.msra.mxu0 0.0
    %943 = vmatprep.subr.mxu0 0.0
    %944 = vmatpush1.msra.mxu0 0.0
    %945 = vmatprep.subr.mxu0 0.0
    %946 = vmatpush1.msra.mxu0 0.0
    %947 = vmatprep.subr.mxu0 0.0
    %948 = vmatpush1.msra.mxu0 0.0
    %949 = vmatprep.subr.mxu0 0.0
    %950 = vmatpush1.msra.mxu0 0.0
    %951 = vmatprep.subr.mxu0 0.0
    %952 = vmatpush1.msra.mxu0 0.0
    %953 = vmatprep.subr.mxu0 0.0
    %954 = vmatpush1.msra.mxu0 0.0
    %955 = vmatprep.subr.mxu0 0.0
    %956 = vmatpush1.msra.mxu0 0.0
    %957 = vmatprep.subr.mxu0 0.0
    %958 = vmatpush1.msra.mxu0 0.0
    %959 = vmatprep.subr.mxu0 0.0
    %960 = vmatpush1.msra.mxu0 0.0
    %961 = vmatprep.subr.mxu0 0.0
    %962 = vmatpush1.msra.mxu0 0.0
    %963 = vmatprep.subr.mxu0 0.0
    %964 = vmatpush1.msra.mxu0 0.0
    %965 = vmatprep.subr.mxu0 0.0
    %966 = vmatpush1.msra.mxu0 0.0
    %967 = vmatprep.subr.mxu0 0.0
    %968 = vmatpush1.msra.mxu0 0.0
    %969 = vmatprep.subr.mxu0 0.0
    %970 = vmatpush1.msra.mxu0 0.0
    %971 = vmatprep.mubr.f32.mxu0 0.0
    %972 = vmatmul.mubr.f32.gmra.mrb[0].mxu0 %v902
    %v973 = vpop.f32.mrb[0].mxu0
    %v974 = vadd.f32 0.0, %v973
    %v975 = vpop.f32.mrb[0].mxu0
    %976 = vmatprep.mubr.f32.mxu0 0.0
    %977 = vmatmul.mubr.f32.gmra.mrb[0].mxu0 %v905
    %v978 = vpop.f32.mrb[0].mxu0
    %v979 = vadd.f32 0.0, %v978
    %v980 = vpop.f32.mrb[0].mxu0
    %981 = vdwg.mxu0
    %984 = vrot.lane.b32.xlu0 %v566, 8
    %v985 = vpop.permute.xlu0 %984
    %986 = vrot.lane.b32.xlu0 %v571, 8
    %v987 = vpop.permute.xlu0 %986
    %992 = vrot.lane.b32.xlu0 %v770, 16
    %v993 = vpop.permute.xlu0 %992
    %994 = vrot.lane.b32.xlu0 %v775, 16
    %v995 = vpop.permute.xlu0 %994
    %1000 = vrot.lane.b32.xlu0 %v974, 24
    %v1001 = vpop.permute.xlu0 %1000
    %1002 = vrot.lane.b32.xlu0 %v979, 24
    %v1003 = vpop.permute.xlu0 %1002
    %v1006 = vsel %vm172, %v362, %v985
    %v1007 = vsel %vm172, %v367, %v987
    %v1008 = vsel %vm260, %v1006, %v993
    %v1009 = vsel %vm260, %v1007, %v995
    %vm1010 = vcmask 195584
    %v1011 = vsel %vm1010, %v1008, %v1001
    %v1012 = vsel %vm1010, %v1009, %v1003
    %v1013 = vlaneseq
    %v1014 = vshrl.u32 %v1013, 7
    %v1015 = vsub.s32 1, %v1014
    %v1016 = vrot.slane %v79, %v1015
    %v1018 = vsel %vm84, %v1011, 0
    %v1021 = vsel %vm84, %v1012, 0
    %1023 = vmatprep.subr.mxu0 0.0
    %1024 = vmatpush1.msra.mxu0 %v63
    %1025 = vmatprep.subr.mxu0 0.0
    %1026 = vmatpush1.msra.mxu0 %v64
    %1027 = vmatprep.subr.mxu0 0.0
    %1028 = vmatpush1.msra.mxu0 %v65
    %1029 = vmatprep.subr.mxu0 0.0
    %1030 = vmatpush1.msra.mxu0 %v66
    %1031 = vmatprep.subr.mxu0 0.0
    %1032 = vmatpush1.msra.mxu0 0.0
    %1033 = vmatprep.subr.mxu0 0.0
    %1034 = vmatpush1.msra.mxu0 0.0
    %1035 = vmatprep.subr.mxu0 0.0
    %1036 = vmatpush1.msra.mxu0 0.0
    %1037 = vmatprep.subr.mxu0 0.0
    %1038 = vmatpush1.msra.mxu0 0.0
    %1039 = vmatprep.subr.mxu0 0.0
    %1040 = vmatpush1.msra.mxu0 0.0
    %1041 = vmatprep.subr.mxu0 0.0
    %1042 = vmatpush1.msra.mxu0 0.0
    %1043 = vmatprep.subr.mxu0 0.0
    %1044 = vmatpush1.msra.mxu0 0.0
    %1045 = vmatprep.subr.mxu0 0.0
    %1046 = vmatpush1.msra.mxu0 0.0
    %1047 = vmatprep.subr.mxu0 0.0
    %1048 = vmatpush1.msra.mxu0 0.0
    %1049 = vmatprep.subr.mxu0 0.0
    %1050 = vmatpush1.msra.mxu0 0.0
    %1051 = vmatprep.subr.mxu0 0.0
    %1052 = vmatpush1.msra.mxu0 0.0
    %1053 = vmatprep.subr.mxu0 0.0
    %1054 = vmatpush1.msra.mxu0 0.0
    %1055 = vmatprep.subr.mxu0 0.0
    %1056 = vmatpush1.msra.mxu0 0.0
    %1057 = vmatprep.subr.mxu0 0.0
    %1058 = vmatpush1.msra.mxu0 0.0
    %1059 = vmatprep.subr.mxu0 0.0
    %1060 = vmatpush1.msra.mxu0 0.0
    %1061 = vmatprep.subr.mxu0 0.0
    %1062 = vmatpush1.msra.mxu0 0.0
    %1063 = vmatprep.subr.mxu0 0.0
    %1064 = vmatpush1.msra.mxu0 0.0
    %1065 = vmatprep.subr.mxu0 0.0
    %1066 = vmatpush1.msra.mxu0 0.0
    %1067 = vmatprep.subr.mxu0 0.0
    %1068 = vmatpush1.msra.mxu0 0.0
    %1069 = vmatprep.subr.mxu0 0.0
    %1070 = vmatpush1.msra.mxu0 0.0
    %1071 = vmatprep.subr.mxu0 0.0
    %1072 = vmatpush1.msra.mxu0 0.0
    %1073 = vmatprep.subr.mxu0 0.0
    %1074 = vmatpush1.msra.mxu0 0.0
    %1075 = vmatprep.subr.mxu0 0.0
    %1076 = vmatpush1.msra.mxu0 0.0
    %1077 = vmatprep.subr.mxu0 0.0
    %1078 = vmatpush1.msra.mxu0 0.0
    %1079 = vmatprep.subr.mxu0 0.0
    %1080 = vmatpush1.msra.mxu0 0.0
    %1081 = vmatprep.subr.mxu0 0.0
    %1082 = vmatpush1.msra.mxu0 0.0
    %1083 = vmatprep.subr.mxu0 0.0
    %1084 = vmatpush1.msra.mxu0 0.0
    %1085 = vmatprep.subr.mxu0 0.0
    %1086 = vmatpush1.msra.mxu0 0.0
    %1087 = vmatprep.mubr.f32.mxu0 0.0
    %1088 = vmatmul.mubr.f32.gmra.mrb[0].mxu0 %v1018
    %v1089 = vpop.f32.mrb[0].mxu0
    %v1090 = vadd.f32 %v1016, %v1089
    %v1091 = vpop.f32.mrb[0].mxu0
    %1092 = vmatprep.mubr.f32.mxu0 0.0
    %1093 = vmatmul.mubr.f32.gmra.mrb[0].mxu0 %v1021
    %v1094 = vpop.f32.mrb[0].mxu0
    %v1095 = vadd.f32 %v1016, %v1094
    %v1096 = vpop.f32.mrb[0].mxu0
    %1097 = vdwg.mxu0
    %v1098 = vadd.f32 %v1090, %v55
    %v1099 = vadd.f32 %v1095, %v56
    %v1100 = vsel %vm84, %v1098, 0.0
    %1101 = vadd.xlane.f32.xlu0 %v1100
    %v1102 = vpop.xlane.xlu0 %1101
    %v1103 = vsel %vm84, %v1099, 0.0
    %1104 = vadd.xlane.f32.xlu0 %v1103
    %v1105 = vpop.xlane.xlu0 %1104
    %v1106 = vrcp.pop 32.0
    %v1107 = vmul.f32 %v1102, %v1106
    %v1108 = vmul.f32 %v1105, %v1106
    %v1109 = vsub.f32 %v1098, %v1107
    %v1110 = vsub.f32 %v1099, %v1108
    %v1111 = vmul.f32 %v1109, %v1109
    %v1112 = vmul.f32 %v1110, %v1110
    %v1113 = vsel %vm84, %v1111, 0.0
    %1114 = vadd.xlane.f32.xlu0 %v1113
    %v1115 = vpop.xlane.xlu0 %1114
    %v1116 = vsel %vm84, %v1112, 0.0
    %1117 = vadd.xlane.f32.xlu0 %v1116
    %v1118 = vpop.xlane.xlu0 %1117
    %v1119 = vmul.f32 %v1115, %v1106
    %v1120 = vmul.f32 %v1118, %v1106
    %v1121 = vadd.f32 %v1119, 1e-12
    %v1122 = vadd.f32 %v1120, 1e-12
    %v1123 = vrsqrt.pop %v1121
    %v1124 = vrsqrt.pop %v1122
    %v1125 = vmul.f32 %v1109, %v1123
    %v1126 = vmul.f32 %v1110, %v1124
    %v1127 = vlaneseq
    %v1128 = vshrl.u32 %v1127, 7
    %v1129 = vsub.s32 2, %v1128
    %v1130 = vrot.slane %v79, %v1129
    %v1131 = vmul.f32 %v1125, %v1130
    %v1132 = vmul.f32 %v1126, %v1130
    %v1133 = vlaneseq
    %v1134 = vshrl.u32 %v1133, 7
    %v1135 = vsub.s32 3, %v1134
    %v1136 = vrot.slane %v79, %v1135
    %v1137 = vadd.f32 %v1131, %v1136
    %v1138 = vadd.f32 %v1132, %v1136
    %v1139 = vlaneseq
    %v1140 = vshrl.u32 %v1139, 7
    %v1141 = vsub.s32 4, %v1140
    %v1142 = vrot.slane %v79, %v1141
    %v1144 = vsel %vm84, %v1137, 0
    %v1147 = vsel %vm84, %v1138, 0
    %1149 = vmatprep.subr.mxu0 0.0
    %1150 = vmatpush1.msra.mxu0 %v67
    %1151 = vmatprep.subr.mxu0 0.0
    %1152 = vmatpush1.msra.mxu0 %v68
    %1153 = vmatprep.subr.mxu0 0.0
    %1154 = vmatpush1.msra.mxu0 %v69
    %1155 = vmatprep.subr.mxu0 0.0
    %1156 = vmatpush1.msra.mxu0 %v70
    %1157 = vmatprep.subr.mxu0 0.0
    %1158 = vmatpush1.msra.mxu0 0.0
    %1159 = vmatprep.subr.mxu0 0.0
    %1160 = vmatpush1.msra.mxu0 0.0
    %1161 = vmatprep.subr.mxu0 0.0
    %1162 = vmatpush1.msra.mxu0 0.0
    %1163 = vmatprep.subr.mxu0 0.0
    %1164 = vmatpush1.msra.mxu0 0.0
    %1165 = vmatprep.subr.mxu0 0.0
    %1166 = vmatpush1.msra.mxu0 0.0
    %1167 = vmatprep.subr.mxu0 0.0
    %1168 = vmatpush1.msra.mxu0 0.0
    %1169 = vmatprep.subr.mxu0 0.0
    %1170 = vmatpush1.msra.mxu0 0.0
    %1171 = vmatprep.subr.mxu0 0.0
    %1172 = vmatpush1.msra.mxu0 0.0
    %1173 = vmatprep.subr.mxu0 0.0
    %1174 = vmatpush1.msra.mxu0 0.0
    %1175 = vmatprep.subr.mxu0 0.0
    %1176 = vmatpush1.msra.mxu0 0.0
    %1177 = vmatprep.subr.mxu0 0.0
    %1178 = vmatpush1.msra.mxu0 0.0
    %1179 = vmatprep.subr.mxu0 0.0
    %1180 = vmatpush1.msra.mxu0 0.0
    %1181 = vmatprep.subr.mxu0 0.0
    %1182 = vmatpush1.msra.mxu0 0.0
    %1183 = vmatprep.subr.mxu0 0.0
    %1184 = vmatpush1.msra.mxu0 0.0
    %1185 = vmatprep.subr.mxu0 0.0
    %1186 = vmatpush1.msra.mxu0 0.0
    %1187 = vmatprep.subr.mxu0 0.0
    %1188 = vmatpush1.msra.mxu0 0.0
    %1189 = vmatprep.subr.mxu0 0.0
    %1190 = vmatpush1.msra.mxu0 0.0
    %1191 = vmatprep.subr.mxu0 0.0
    %1192 = vmatpush1.msra.mxu0 0.0
    %1193 = vmatprep.subr.mxu0 0.0
    %1194 = vmatpush1.msra.mxu0 0.0
    %1195 = vmatprep.subr.mxu0 0.0
    %1196 = vmatpush1.msra.mxu0 0.0
    %1197 = vmatprep.subr.mxu0 0.0
    %1198 = vmatpush1.msra.mxu0 0.0
    %1199 = vmatprep.subr.mxu0 0.0
    %1200 = vmatpush1.msra.mxu0 0.0
    %1201 = vmatprep.subr.mxu0 0.0
    %1202 = vmatpush1.msra.mxu0 0.0
    %1203 = vmatprep.subr.mxu0 0.0
    %1204 = vmatpush1.msra.mxu0 0.0
    %1205 = vmatprep.subr.mxu0 0.0
    %1206 = vmatpush1.msra.mxu0 0.0
    %1207 = vmatprep.subr.mxu0 0.0
    %1208 = vmatpush1.msra.mxu0 0.0
    %1209 = vmatprep.subr.mxu0 0.0
    %1210 = vmatpush1.msra.mxu0 0.0
    %1211 = vmatprep.subr.mxu0 0.0
    %1212 = vmatpush1.msra.mxu0 0.0
    %1213 = vmatprep.mubr.f32.mxu0 0.0
    %1214 = vmatmul.mubr.f32.gmra.mrb[0].mxu0 %v1144
    %v1215 = vpop.f32.mrb[0].mxu0
    %v1216 = vadd.f32 %v1142, %v1215
    %v1217 = vpop.f32.mrb[0].mxu0
    %1218 = vmatprep.mubr.f32.mxu0 0.0
    %1219 = vmatmul.mubr.f32.gmra.mrb[0].mxu0 %v1147
    %v1220 = vpop.f32.mrb[0].mxu0
    %v1221 = vadd.f32 %v1142, %v1220
    %v1222 = vpop.f32.mrb[0].mxu0
    %1223 = vdwg.mxu0
    %v1224 = vmul.f32 %v1216, 0.5
    %v1225 = vmul.f32 %v1221, 0.5
    %v1226 = vmul.f32 %v1216, 0.70710677
    %v1227 = vmul.f32 %v1221, 0.70710677
    %v1228 = verf.f32.pop %v1226
    %v1229 = verf.f32.pop %v1227
    %v1230 = vadd.f32 %v1228, 1.0
    %v1231 = vadd.f32 %v1229, 1.0
    %v1232 = vmul.f32 %v1224, %v1230
    %v1233 = vmul.f32 %v1225, %v1231
    %v1234 = vlaneseq
    %v1235 = vshrl.u32 %v1234, 7
    %v1236 = vsub.s32 5, %v1235
    %v1237 = vrot.slane %v79, %v1236
    %vm1238 = vcmask 523264
    %v1240 = vsel %vm1238, %v1232, 0
    %v1243 = vsel %vm1238, %v1233, 0
    %1245 = vmatprep.subr.mxu0 0.0
    %1246 = vmatpush1.msra.mxu0 %v71
    %1247 = vmatprep.subr.mxu0 0.0
    %1248 = vmatpush1.msra.mxu0 %v72
    %1249 = vmatprep.subr.mxu0 0.0
    %1250 = vmatpush1.msra.mxu0 %v73
    %1251 = vmatprep.subr.mxu0 0.0
    %1252 = vmatpush1.msra.mxu0 %v74
    %1253 = vmatprep.subr.mxu0 0.0
    %1254 = vmatpush1.msra.mxu0 %v75
    %1255 = vmatprep.subr.mxu0 0.0
    %1256 = vmatpush1.msra.mxu0 %v76
    %1257 = vmatprep.subr.mxu0 0.0
    %1258 = vmatpush1.msra.mxu0 %v77
    %1259 = vmatprep.subr.mxu0 0.0
    %1260 = vmatpush1.msra.mxu0 %v78
    %1261 = vmatprep.subr.mxu0 0.0
    %1262 = vmatpush1.msra.mxu0 0.0
    %1263 = vmatprep.subr.mxu0 0.0
    %1264 = vmatpush1.msra.mxu0 0.0
    %1265 = vmatprep.subr.mxu0 0.0
    %1266 = vmatpush1.msra.mxu0 0.0
    %1267 = vmatprep.subr.mxu0 0.0
    %1268 = vmatpush1.msra.mxu0 0.0
    %1269 = vmatprep.subr.mxu0 0.0
    %1270 = vmatpush1.msra.mxu0 0.0
    %1271 = vmatprep.subr.mxu0 0.0
    %1272 = vmatpush1.msra.mxu0 0.0
    %1273 = vmatprep.subr.mxu0 0.0
    %1274 = vmatpush1.msra.mxu0 0.0
    %1275 = vmatprep.subr.mxu0 0.0
    %1276 = vmatpush1.msra.mxu0 0.0
    %1277 = vmatprep.subr.mxu0 0.0
    %1278 = vmatpush1.msra.mxu0 0.0
    %1279 = vmatprep.subr.mxu0 0.0
    %1280 = vmatpush1.msra.mxu0 0.0
    %1281 = vmatprep.subr.mxu0 0.0
    %1282 = vmatpush1.msra.mxu0 0.0
    %1283 = vmatprep.subr.mxu0 0.0
    %1284 = vmatpush1.msra.mxu0 0.0
    %1285 = vmatprep.subr.mxu0 0.0
    %1286 = vmatpush1.msra.mxu0 0.0
    %1287 = vmatprep.subr.mxu0 0.0
    %1288 = vmatpush1.msra.mxu0 0.0
    %1289 = vmatprep.subr.mxu0 0.0
    %1290 = vmatpush1.msra.mxu0 0.0
    %1291 = vmatprep.subr.mxu0 0.0
    %1292 = vmatpush1.msra.mxu0 0.0
    %1293 = vmatprep.subr.mxu0 0.0
    %1294 = vmatpush1.msra.mxu0 0.0
    %1295 = vmatprep.subr.mxu0 0.0
    %1296 = vmatpush1.msra.mxu0 0.0
    %1297 = vmatprep.subr.mxu0 0.0
    %1298 = vmatpush1.msra.mxu0 0.0
    %1299 = vmatprep.subr.mxu0 0.0
    %1300 = vmatpush1.msra.mxu0 0.0
    %1301 = vmatprep.subr.mxu0 0.0
    %1302 = vmatpush1.msra.mxu0 0.0
    %1303 = vmatprep.subr.mxu0 0.0
    %1304 = vmatpush1.msra.mxu0 0.0
    %1305 = vmatprep.subr.mxu0 0.0
    %1306 = vmatpush1.msra.mxu0 0.0
    %1307 = vmatprep.subr.mxu0 0.0
    %1308 = vmatpush1.msra.mxu0 0.0
    %1309 = vmatprep.mubr.f32.mxu0 0.0
    %1310 = vmatmul.mubr.f32.gmra.mrb[0].mxu0 %v1240
    %v1311 = vpop.f32.mrb[0].mxu0
    %v1312 = vadd.f32 %v1237, %v1311
    %v1313 = vpop.f32.mrb[0].mxu0
    %1314 = vmatprep.mubr.f32.mxu0 0.0
    %1315 = vmatmul.mubr.f32.gmra.mrb[0].mxu0 %v1243
    %v1316 = vpop.f32.mrb[0].mxu0
    %v1317 = vadd.f32 %v1237, %v1316
    %v1318 = vpop.f32.mrb[0].mxu0
    %1319 = vdwg.mxu0
    %v1320 = vadd.f32 %v1312, %v1137
    %v1321 = vadd.f32 %v1317, %v1138
    %v1322 = vsel %vm84, %v1320, 0.0
    %1323 = vadd.xlane.f32.xlu0 %v1322
    %v1324 = vpop.xlane.xlu0 %1323
    %v1325 = vsel %vm84, %v1321, 0.0
    %1326 = vadd.xlane.f32.xlu0 %v1325
    %v1327 = vpop.xlane.xlu0 %1326
    %v1328 = vmul.f32 %v1324, %v1106
    %v1329 = vmul.f32 %v1327, %v1106
    %v1330 = vsub.f32 %v1320, %v1328
    %v1331 = vsub.f32 %v1321, %v1329
    %v1332 = vmul.f32 %v1330, %v1330
    %v1333 = vmul.f32 %v1331, %v1331
    %v1334 = vsel %vm84, %v1332, 0.0
    %1335 = vadd.xlane.f32.xlu0 %v1334
    %v1336 = vpop.xlane.xlu0 %1335
    %v1337 = vsel %vm84, %v1333, 0.0
    %1338 = vadd.xlane.f32.xlu0 %v1337
    %v1339 = vpop.xlane.xlu0 %1338
    %v1340 = vmul.f32 %v1336, %v1106
    %v1341 = vmul.f32 %v1339, %v1106
    %v1342 = vadd.f32 %v1340, 1e-12
    %v1343 = vadd.f32 %v1341, 1e-12
    %v1344 = vrsqrt.pop %v1342
    %v1345 = vrsqrt.pop %v1343
    %v1346 = vmul.f32 %v1330, %v1344
    %v1347 = vmul.f32 %v1331, %v1345
    %v1348 = vlaneseq
    %v1349 = vshrl.u32 %v1348, 7
    %v1350 = vsub.s32 6, %v1349
    %v1351 = vrot.slane %v79, %v1350
    %v1352 = vmul.f32 %v1346, %v1351
    %v1353 = vmul.f32 %v1347, %v1351
    %v1354 = vlaneseq
    %v1355 = vshrl.u32 %v1354, 7
    %v1356 = vsub.s32 7, %v1355
    %v1357 = vrot.slane %v79, %v1356
    %v1358 = vadd.f32 %v1352, %v1357
    %v1359 = vadd.f32 %v1353, %v1357
    %s1360 = scalar_lea.vmem %s2, 32
    %v1361 = vld [vmem:[%s1360] sm:$0xff]
    %v1362 = vld [vmem:[%s1360 + $0x8] sm:$0xff]
    %v1363 = vld [vmem:[%s1360 + $0x10] sm:$0xff]
    %v1364 = vld [vmem:[%s1360 + $0x18] sm:$0xff]
    %s1365 = scalar_lea.vmem %s3, 32
    %v1366 = vld [vmem:[%s1365] sm:$0xff]
    %v1367 = vld [vmem:[%s1365 + $0x8] sm:$0xff]
    %v1368 = vld [vmem:[%s1365 + $0x10] sm:$0xff]
    %v1369 = vld [vmem:[%s1365 + $0x18] sm:$0xff]
    %s1370 = scalar_lea.vmem %s4, 32
    %v1371 = vld [vmem:[%s1370] sm:$0xff]
    %v1372 = vld [vmem:[%s1370 + $0x8] sm:$0xff]
    %v1373 = vld [vmem:[%s1370 + $0x10] sm:$0xff]
    %v1374 = vld [vmem:[%s1370 + $0x18] sm:$0xff]
    %s1375 = scalar_lea.vmem %s5, 64
    %v1376 = vld [vmem:[%s1375] sm:$0xff]
    %v1377 = vld [vmem:[%s1375 + $0x8] sm:$0xff]
    %v1378 = vld [vmem:[%s1375 + $0x10] sm:$0xff]
    %v1379 = vld [vmem:[%s1375 + $0x18] sm:$0xff]
    %v1380 = vld [vmem:[%s1375 + $0x20] sm:$0xff]
    %v1381 = vld [vmem:[%s1375 + $0x28] sm:$0xff]
    %v1382 = vld [vmem:[%s1375 + $0x30] sm:$0xff]
    %v1383 = vld [vmem:[%s1375 + $0x38] sm:$0xff]
    %s1384 = scalar_lea.vmem %s6, 8
    %v1385 = vld [vmem:[%s1384] sm:$0xff]
    %v1386 = vlaneseq
    %v1387 = vshrl.u32 %v1386, 7
    %v1388 = vsub.s32 0, %v1387
    %v1389 = vrot.slane %v1385, %v1388
    %v1391 = vsel %vm84, %v1358, 0
    %v1394 = vsel %vm84, %v1359, 0
    %1396 = vmatprep.subr.mxu0 0.0
    %1397 = vmatpush1.msra.mxu0 %v1361
    %1398 = vmatprep.subr.mxu0 0.0
    %1399 = vmatpush1.msra.mxu0 %v1362
    %1400 = vmatprep.subr.mxu0 0.0
    %1401 = vmatpush1.msra.mxu0 %v1363
    %1402 = vmatprep.subr.mxu0 0.0
    %1403 = vmatpush1.msra.mxu0 %v1364
    %1404 = vmatprep.subr.mxu0 0.0
    %1405 = vmatpush1.msra.mxu0 0.0
    %1406 = vmatprep.subr.mxu0 0.0
    %1407 = vmatpush1.msra.mxu0 0.0
    %1408 = vmatprep.subr.mxu0 0.0
    %1409 = vmatpush1.msra.mxu0 0.0
    %1410 = vmatprep.subr.mxu0 0.0
    %1411 = vmatpush1.msra.mxu0 0.0
    %1412 = vmatprep.subr.mxu0 0.0
    %1413 = vmatpush1.msra.mxu0 0.0
    %1414 = vmatprep.subr.mxu0 0.0
    %1415 = vmatpush1.msra.mxu0 0.0
    %1416 = vmatprep.subr.mxu0 0.0
    %1417 = vmatpush1.msra.mxu0 0.0
    %1418 = vmatprep.subr.mxu0 0.0
    %1419 = vmatpush1.msra.mxu0 0.0
    %1420 = vmatprep.subr.mxu0 0.0
    %1421 = vmatpush1.msra.mxu0 0.0
    %1422 = vmatprep.subr.mxu0 0.0
    %1423 = vmatpush1.msra.mxu0 0.0
    %1424 = vmatprep.subr.mxu0 0.0
    %1425 = vmatpush1.msra.mxu0 0.0
    %1426 = vmatprep.subr.mxu0 0.0
    %1427 = vmatpush1.msra.mxu0 0.0
    %1428 = vmatprep.subr.mxu0 0.0
    %1429 = vmatpush1.msra.mxu0 0.0
    %1430 = vmatprep.subr.mxu0 0.0
    %1431 = vmatpush1.msra.mxu0 0.0
    %1432 = vmatprep.subr.mxu0 0.0
    %1433 = vmatpush1.msra.mxu0 0.0
    %1434 = vmatprep.subr.mxu0 0.0
    %1435 = vmatpush1.msra.mxu0 0.0
    %1436 = vmatprep.subr.mxu0 0.0
    %1437 = vmatpush1.msra.mxu0 0.0
    %1438 = vmatprep.subr.mxu0 0.0
    %1439 = vmatpush1.msra.mxu0 0.0
    %1440 = vmatprep.subr.mxu0 0.0
    %1441 = vmatpush1.msra.mxu0 0.0
    %1442 = vmatprep.subr.mxu0 0.0
    %1443 = vmatpush1.msra.mxu0 0.0
    %1444 = vmatprep.subr.mxu0 0.0
    %1445 = vmatpush1.msra.mxu0 0.0
    %1446 = vmatprep.subr.mxu0 0.0
    %1447 = vmatpush1.msra.mxu0 0.0
    %1448 = vmatprep.subr.mxu0 0.0
    %1449 = vmatpush1.msra.mxu0 0.0
    %1450 = vmatprep.subr.mxu0 0.0
    %1451 = vmatpush1.msra.mxu0 0.0
    %1452 = vmatprep.subr.mxu0 0.0
    %1453 = vmatpush1.msra.mxu0 0.0
    %1454 = vmatprep.subr.mxu0 0.0
    %1455 = vmatpush1.msra.mxu0 0.0
    %1456 = vmatprep.subr.mxu0 0.0
    %1457 = vmatpush1.msra.mxu0 0.0
    %1458 = vmatprep.subr.mxu0 0.0
    %1459 = vmatpush1.msra.mxu0 0.0
    %1460 = vmatprep.mubr.f32.mxu0 0.0
    %1461 = vmatmul.mubr.f32.gmra.mrb[0].mxu0 %v1391
    %v1462 = vpop.f32.mrb[0].mxu0
    %v1463 = vadd.f32 %v1389, %v1462
    %v1464 = vpop.f32.mrb[0].mxu0
    %1465 = vmatprep.mubr.f32.mxu0 0.0
    %1466 = vmatmul.mubr.f32.gmra.mrb[0].mxu0 %v1394
    %v1467 = vpop.f32.mrb[0].mxu0
    %v1468 = vadd.f32 %v1389, %v1467
    %v1469 = vpop.f32.mrb[0].mxu0
    %1470 = vdwg.mxu0
    %1473 = vrot.lane.b32.xlu0 %v1463, 96
    %v1474 = vpop.permute.xlu0 %1473
    %1475 = vrot.lane.b32.xlu0 %v1468, 96
    %v1476 = vpop.permute.xlu0 %1475
    %v1477 = vsel %vm172, %v1463, 0
    %v1479 = vsel %vm172, %v1468, 0
    %v1481 = vsel %vm172, %v1474, 0
    %v1483 = vsel %vm172, %v1476, 0
    %1485 = vmatprep.subr.mxu0 0.0
    %1486 = vmatpush1.xpose.msra.mxu0 %v1481
    %1487 = vmatprep.subr.mxu0 0.0
    %1488 = vmatpush1.xpose.msra.mxu0 %v1483
    %1489 = vmatprep.subr.mxu0 0.0
    %1490 = vmatpush1.xpose.msra.mxu0 0.0
    %1491 = vmatprep.subr.mxu0 0.0
    %1492 = vmatpush1.xpose.msra.mxu0 0.0
    %1493 = vmatprep.subr.mxu0 0.0
    %1494 = vmatpush1.xpose.msra.mxu0 0.0
    %1495 = vmatprep.subr.mxu0 0.0
    %1496 = vmatpush1.xpose.msra.mxu0 0.0
    %1497 = vmatprep.subr.mxu0 0.0
    %1498 = vmatpush1.xpose.msra.mxu0 0.0
    %1499 = vmatprep.subr.mxu0 0.0
    %1500 = vmatpush1.xpose.msra.mxu0 0.0
    %1501 = vmatprep.subr.mxu0 0.0
    %1502 = vmatpush1.xpose.msra.mxu0 0.0
    %1503 = vmatprep.subr.mxu0 0.0
    %1504 = vmatpush1.xpose.msra.mxu0 0.0
    %1505 = vmatprep.subr.mxu0 0.0
    %1506 = vmatpush1.xpose.msra.mxu0 0.0
    %1507 = vmatprep.subr.mxu0 0.0
    %1508 = vmatpush1.xpose.msra.mxu0 0.0
    %1509 = vmatprep.subr.mxu0 0.0
    %1510 = vmatpush1.xpose.msra.mxu0 0.0
    %1511 = vmatprep.subr.mxu0 0.0
    %1512 = vmatpush1.xpose.msra.mxu0 0.0
    %1513 = vmatprep.subr.mxu0 0.0
    %1514 = vmatpush1.xpose.msra.mxu0 0.0
    %1515 = vmatprep.subr.mxu0 0.0
    %1516 = vmatpush1.xpose.msra.mxu0 0.0
    %1517 = vmatprep.subr.mxu0 0.0
    %1518 = vmatpush1.xpose.msra.mxu0 0.0
    %1519 = vmatprep.subr.mxu0 0.0
    %1520 = vmatpush1.xpose.msra.mxu0 0.0
    %1521 = vmatprep.subr.mxu0 0.0
    %1522 = vmatpush1.xpose.msra.mxu0 0.0
    %1523 = vmatprep.subr.mxu0 0.0
    %1524 = vmatpush1.xpose.msra.mxu0 0.0
    %1525 = vmatprep.subr.mxu0 0.0
    %1526 = vmatpush1.xpose.msra.mxu0 0.0
    %1527 = vmatprep.subr.mxu0 0.0
    %1528 = vmatpush1.xpose.msra.mxu0 0.0
    %1529 = vmatprep.subr.mxu0 0.0
    %1530 = vmatpush1.xpose.msra.mxu0 0.0
    %1531 = vmatprep.subr.mxu0 0.0
    %1532 = vmatpush1.xpose.msra.mxu0 0.0
    %1533 = vmatprep.subr.mxu0 0.0
    %1534 = vmatpush1.xpose.msra.mxu0 0.0
    %1535 = vmatprep.subr.mxu0 0.0
    %1536 = vmatpush1.xpose.msra.mxu0 0.0
    %1537 = vmatprep.subr.mxu0 0.0
    %1538 = vmatpush1.xpose.msra.mxu0 0.0
    %1539 = vmatprep.subr.mxu0 0.0
    %1540 = vmatpush1.xpose.msra.mxu0 0.0
    %1541 = vmatprep.subr.mxu0 0.0
    %1542 = vmatpush1.xpose.msra.mxu0 0.0
    %1543 = vmatprep.subr.mxu0 0.0
    %1544 = vmatpush1.xpose.msra.mxu0 0.0
    %1545 = vmatprep.subr.mxu0 0.0
    %1546 = vmatpush1.xpose.msra.mxu0 0.0
    %1547 = vmatprep.subr.mxu0 0.0
    %1548 = vmatpush1.xpose.msra.mxu0 0.0
    %1549 = vmatprep.mubr.f32.mxu0 0.0
    %1550 = vmatmul.mubr.f32.gmra.mrb[0].mxu0 %v1477
    %v1551 = vpop.f32.mrb[0].mxu0
    %v1552 = vadd.f32 0.0, %v1551
    %v1553 = vpop.f32.mrb[0].mxu0
    %1554 = vmatprep.mubr.f32.mxu0 0.0
    %1555 = vmatmul.mubr.f32.gmra.mrb[0].mxu0 %v1479
    %v1556 = vpop.f32.mrb[0].mxu0
    %v1557 = vadd.f32 0.0, %v1556
    %v1558 = vpop.f32.mrb[0].mxu0
    %1559 = vdwg.mxu0
    %v1560 = vmul.f32 %v1552, 0.35355338
    %v1561 = vmul.f32 %v1557, 0.35355338
    %v1562 = vadd.f32 %v1560, %v57
    %v1563 = vadd.f32 %v1561, %v58
    %v1564 = vsel %vm260, %v1562, -inf
    %1565 = vmax.xlane.f32.xlu0 %v1564
    %v1566 = vpop.xlane.xlu0 %1565
    %v1567 = vsel %vm260, %v1563, -inf
    %1568 = vmax.xlane.f32.xlu0 %v1567
    %v1569 = vpop.xlane.xlu0 %1568
    %v1570 = vsub.f32 %v1562, %v1566
    %v1571 = vsub.f32 %v1563, %v1569
    %v1572 = vmul.f32 %v1570, 1.442695
    %v1573 = vpow.pop %v1572
    %v1574 = vmul.f32 %v1571, 1.442695
    %v1575 = vpow.pop %v1574
    %v1576 = vsel %vm260, %v1573, 0.0
    %1577 = vadd.xlane.f32.xlu0 %v1576
    %v1578 = vpop.xlane.xlu0 %1577
    %v1579 = vsel %vm260, %v1575, 0.0
    %1580 = vadd.xlane.f32.xlu0 %v1579
    %v1581 = vpop.xlane.xlu0 %1580
    %v1582 = vrcp.pop %v1578
    %v1583 = vrcp.pop %v1581
    %v1584 = vmul.f32 %v1573, %v1582
    %v1585 = vmul.f32 %v1575, %v1583
    %1586 = vrot.lane.b32.xlu0 %v1463, 64
    %v1587 = vpop.permute.xlu0 %1586
    %1588 = vrot.lane.b32.xlu0 %v1468, 64
    %v1589 = vpop.permute.xlu0 %1588
    %v1593 = vsel %vm260, %v1584, 0
    %v1596 = vsel %vm260, %v1585, 0
    %1598 = vmatprep.subr.mxu0 0.0
    %1599 = vmatpush1.msra.mxu0 %v1587
    %1600 = vmatprep.subr.mxu0 0.0
    %1601 = vmatpush1.msra.mxu0 %v1589
    %1602 = vmatprep.subr.mxu0 0.0
    %1603 = vmatpush1.msra.mxu0 0.0
    %1604 = vmatprep.subr.mxu0 0.0
    %1605 = vmatpush1.msra.mxu0 0.0
    %1606 = vmatprep.subr.mxu0 0.0
    %1607 = vmatpush1.msra.mxu0 0.0
    %1608 = vmatprep.subr.mxu0 0.0
    %1609 = vmatpush1.msra.mxu0 0.0
    %1610 = vmatprep.subr.mxu0 0.0
    %1611 = vmatpush1.msra.mxu0 0.0
    %1612 = vmatprep.subr.mxu0 0.0
    %1613 = vmatpush1.msra.mxu0 0.0
    %1614 = vmatprep.subr.mxu0 0.0
    %1615 = vmatpush1.msra.mxu0 0.0
    %1616 = vmatprep.subr.mxu0 0.0
    %1617 = vmatpush1.msra.mxu0 0.0
    %1618 = vmatprep.subr.mxu0 0.0
    %1619 = vmatpush1.msra.mxu0 0.0
    %1620 = vmatprep.subr.mxu0 0.0
    %1621 = vmatpush1.msra.mxu0 0.0
    %1622 = vmatprep.subr.mxu0 0.0
    %1623 = vmatpush1.msra.mxu0 0.0
    %1624 = vmatprep.subr.mxu0 0.0
    %1625 = vmatpush1.msra.mxu0 0.0
    %1626 = vmatprep.subr.mxu0 0.0
    %1627 = vmatpush1.msra.mxu0 0.0
    %1628 = vmatprep.subr.mxu0 0.0
    %1629 = vmatpush1.msra.mxu0 0.0
    %1630 = vmatprep.subr.mxu0 0.0
    %1631 = vmatpush1.msra.mxu0 0.0
    %1632 = vmatprep.subr.mxu0 0.0
    %1633 = vmatpush1.msra.mxu0 0.0
    %1634 = vmatprep.subr.mxu0 0.0
    %1635 = vmatpush1.msra.mxu0 0.0
    %1636 = vmatprep.subr.mxu0 0.0
    %1637 = vmatpush1.msra.mxu0 0.0
    %1638 = vmatprep.subr.mxu0 0.0
    %1639 = vmatpush1.msra.mxu0 0.0
    %1640 = vmatprep.subr.mxu0 0.0
    %1641 = vmatpush1.msra.mxu0 0.0
    %1642 = vmatprep.subr.mxu0 0.0
    %1643 = vmatpush1.msra.mxu0 0.0
    %1644 = vmatprep.subr.mxu0 0.0
    %1645 = vmatpush1.msra.mxu0 0.0
    %1646 = vmatprep.subr.mxu0 0.0
    %1647 = vmatpush1.msra.mxu0 0.0
    %1648 = vmatprep.subr.mxu0 0.0
    %1649 = vmatpush1.msra.mxu0 0.0
    %1650 = vmatprep.subr.mxu0 0.0
    %1651 = vmatpush1.msra.mxu0 0.0
    %1652 = vmatprep.subr.mxu0 0.0
    %1653 = vmatpush1.msra.mxu0 0.0
    %1654 = vmatprep.subr.mxu0 0.0
    %1655 = vmatpush1.msra.mxu0 0.0
    %1656 = vmatprep.subr.mxu0 0.0
    %1657 = vmatpush1.msra.mxu0 0.0
    %1658 = vmatprep.subr.mxu0 0.0
    %1659 = vmatpush1.msra.mxu0 0.0
    %1660 = vmatprep.subr.mxu0 0.0
    %1661 = vmatpush1.msra.mxu0 0.0
    %1662 = vmatprep.mubr.f32.mxu0 0.0
    %1663 = vmatmul.mubr.f32.gmra.mrb[0].mxu0 %v1593
    %v1664 = vpop.f32.mrb[0].mxu0
    %v1665 = vadd.f32 0.0, %v1664
    %v1666 = vpop.f32.mrb[0].mxu0
    %1667 = vmatprep.mubr.f32.mxu0 0.0
    %1668 = vmatmul.mubr.f32.gmra.mrb[0].mxu0 %v1596
    %v1669 = vpop.f32.mrb[0].mxu0
    %v1670 = vadd.f32 0.0, %v1669
    %v1671 = vpop.f32.mrb[0].mxu0
    %1672 = vdwg.mxu0
    %1673 = vrot.lane.b32.xlu0 %v1463, 120
    %v1674 = vpop.permute.xlu0 %1673
    %1675 = vrot.lane.b32.xlu0 %v1468, 120
    %v1676 = vpop.permute.xlu0 %1675
    %1677 = vrot.lane.b32.xlu0 %v1463, 88
    %v1678 = vpop.permute.xlu0 %1677
    %1679 = vrot.lane.b32.xlu0 %v1468, 88
    %v1680 = vpop.permute.xlu0 %1679
    %v1681 = vsel %vm172, %v1674, 0
    %v1683 = vsel %vm172, %v1676, 0
    %v1685 = vsel %vm172, %v1678, 0
    %v1687 = vsel %vm172, %v1680, 0
    %1689 = vmatprep.subr.mxu0 0.0
    %1690 = vmatpush1.xpose.msra.mxu0 %v1685
    %1691 = vmatprep.subr.mxu0 0.0
    %1692 = vmatpush1.xpose.msra.mxu0 %v1687
    %1693 = vmatprep.subr.mxu0 0.0
    %1694 = vmatpush1.xpose.msra.mxu0 0.0
    %1695 = vmatprep.subr.mxu0 0.0
    %1696 = vmatpush1.xpose.msra.mxu0 0.0
    %1697 = vmatprep.subr.mxu0 0.0
    %1698 = vmatpush1.xpose.msra.mxu0 0.0
    %1699 = vmatprep.subr.mxu0 0.0
    %1700 = vmatpush1.xpose.msra.mxu0 0.0
    %1701 = vmatprep.subr.mxu0 0.0
    %1702 = vmatpush1.xpose.msra.mxu0 0.0
    %1703 = vmatprep.subr.mxu0 0.0
    %1704 = vmatpush1.xpose.msra.mxu0 0.0
    %1705 = vmatprep.subr.mxu0 0.0
    %1706 = vmatpush1.xpose.msra.mxu0 0.0
    %1707 = vmatprep.subr.mxu0 0.0
    %1708 = vmatpush1.xpose.msra.mxu0 0.0
    %1709 = vmatprep.subr.mxu0 0.0
    %1710 = vmatpush1.xpose.msra.mxu0 0.0
    %1711 = vmatprep.subr.mxu0 0.0
    %1712 = vmatpush1.xpose.msra.mxu0 0.0
    %1713 = vmatprep.subr.mxu0 0.0
    %1714 = vmatpush1.xpose.msra.mxu0 0.0
    %1715 = vmatprep.subr.mxu0 0.0
    %1716 = vmatpush1.xpose.msra.mxu0 0.0
    %1717 = vmatprep.subr.mxu0 0.0
    %1718 = vmatpush1.xpose.msra.mxu0 0.0
    %1719 = vmatprep.subr.mxu0 0.0
    %1720 = vmatpush1.xpose.msra.mxu0 0.0
    %1721 = vmatprep.subr.mxu0 0.0
    %1722 = vmatpush1.xpose.msra.mxu0 0.0
    %1723 = vmatprep.subr.mxu0 0.0
    %1724 = vmatpush1.xpose.msra.mxu0 0.0
    %1725 = vmatprep.subr.mxu0 0.0
    %1726 = vmatpush1.xpose.msra.mxu0 0.0
    %1727 = vmatprep.subr.mxu0 0.0
    %1728 = vmatpush1.xpose.msra.mxu0 0.0
    %1729 = vmatprep.subr.mxu0 0.0
    %1730 = vmatpush1.xpose.msra.mxu0 0.0
    %1731 = vmatprep.subr.mxu0 0.0
    %1732 = vmatpush1.xpose.msra.mxu0 0.0
    %1733 = vmatprep.subr.mxu0 0.0
    %1734 = vmatpush1.xpose.msra.mxu0 0.0
    %1735 = vmatprep.subr.mxu0 0.0
    %1736 = vmatpush1.xpose.msra.mxu0 0.0
    %1737 = vmatprep.subr.mxu0 0.0
    %1738 = vmatpush1.xpose.msra.mxu0 0.0
    %1739 = vmatprep.subr.mxu0 0.0
    %1740 = vmatpush1.xpose.msra.mxu0 0.0
    %1741 = vmatprep.subr.mxu0 0.0
    %1742 = vmatpush1.xpose.msra.mxu0 0.0
    %1743 = vmatprep.subr.mxu0 0.0
    %1744 = vmatpush1.xpose.msra.mxu0 0.0
    %1745 = vmatprep.subr.mxu0 0.0
    %1746 = vmatpush1.xpose.msra.mxu0 0.0
    %1747 = vmatprep.subr.mxu0 0.0
    %1748 = vmatpush1.xpose.msra.mxu0 0.0
    %1749 = vmatprep.subr.mxu0 0.0
    %1750 = vmatpush1.xpose.msra.mxu0 0.0
    %1751 = vmatprep.subr.mxu0 0.0
    %1752 = vmatpush1.xpose.msra.mxu0 0.0
    %1753 = vmatprep.mubr.f32.mxu0 0.0
    %1754 = vmatmul.mubr.f32.gmra.mrb[0].mxu0 %v1681
    %v1755 = vpop.f32.mrb[0].mxu0
    %v1756 = vadd.f32 0.0, %v1755
    %v1757 = vpop.f32.mrb[0].mxu0
    %1758 = vmatprep.mubr.f32.mxu0 0.0
    %1759 = vmatmul.mubr.f32.gmra.mrb[0].mxu0 %v1683
    %v1760 = vpop.f32.mrb[0].mxu0
    %v1761 = vadd.f32 0.0, %v1760
    %v1762 = vpop.f32.mrb[0].mxu0
    %1763 = vdwg.mxu0
    %v1764 = vmul.f32 %v1756, 0.35355338
    %v1765 = vmul.f32 %v1761, 0.35355338
    %v1766 = vadd.f32 %v1764, %v57
    %v1767 = vadd.f32 %v1765, %v58
    %v1768 = vsel %vm260, %v1766, -inf
    %1769 = vmax.xlane.f32.xlu0 %v1768
    %v1770 = vpop.xlane.xlu0 %1769
    %v1771 = vsel %vm260, %v1767, -inf
    %1772 = vmax.xlane.f32.xlu0 %v1771
    %v1773 = vpop.xlane.xlu0 %1772
    %v1774 = vsub.f32 %v1766, %v1770
    %v1775 = vsub.f32 %v1767, %v1773
    %v1776 = vmul.f32 %v1774, 1.442695
    %v1777 = vpow.pop %v1776
    %v1778 = vmul.f32 %v1775, 1.442695
    %v1779 = vpow.pop %v1778
    %v1780 = vsel %vm260, %v1777, 0.0
    %1781 = vadd.xlane.f32.xlu0 %v1780
    %v1782 = vpop.xlane.xlu0 %1781
    %v1783 = vsel %vm260, %v1779, 0.0
    %1784 = vadd.xlane.f32.xlu0 %v1783
    %v1785 = vpop.xlane.xlu0 %1784
    %v1786 = vrcp.pop %v1782
    %v1787 = vrcp.pop %v1785
    %v1788 = vmul.f32 %v1777, %v1786
    %v1789 = vmul.f32 %v1779, %v1787
    %1790 = vrot.lane.b32.xlu0 %v1463, 56
    %v1791 = vpop.permute.xlu0 %1790
    %1792 = vrot.lane.b32.xlu0 %v1468, 56
    %v1793 = vpop.permute.xlu0 %1792
    %v1797 = vsel %vm260, %v1788, 0
    %v1800 = vsel %vm260, %v1789, 0
    %1802 = vmatprep.subr.mxu0 0.0
    %1803 = vmatpush1.msra.mxu0 %v1791
    %1804 = vmatprep.subr.mxu0 0.0
    %1805 = vmatpush1.msra.mxu0 %v1793
    %1806 = vmatprep.subr.mxu0 0.0
    %1807 = vmatpush1.msra.mxu0 0.0
    %1808 = vmatprep.subr.mxu0 0.0
    %1809 = vmatpush1.msra.mxu0 0.0
    %1810 = vmatprep.subr.mxu0 0.0
    %1811 = vmatpush1.msra.mxu0 0.0
    %1812 = vmatprep.subr.mxu0 0.0
    %1813 = vmatpush1.msra.mxu0 0.0
    %1814 = vmatprep.subr.mxu0 0.0
    %1815 = vmatpush1.msra.mxu0 0.0
    %1816 = vmatprep.subr.mxu0 0.0
    %1817 = vmatpush1.msra.mxu0 0.0
    %1818 = vmatprep.subr.mxu0 0.0
    %1819 = vmatpush1.msra.mxu0 0.0
    %1820 = vmatprep.subr.mxu0 0.0
    %1821 = vmatpush1.msra.mxu0 0.0
    %1822 = vmatprep.subr.mxu0 0.0
    %1823 = vmatpush1.msra.mxu0 0.0
    %1824 = vmatprep.subr.mxu0 0.0
    %1825 = vmatpush1.msra.mxu0 0.0
    %1826 = vmatprep.subr.mxu0 0.0
    %1827 = vmatpush1.msra.mxu0 0.0
    %1828 = vmatprep.subr.mxu0 0.0
    %1829 = vmatpush1.msra.mxu0 0.0
    %1830 = vmatprep.subr.mxu0 0.0
    %1831 = vmatpush1.msra.mxu0 0.0
    %1832 = vmatprep.subr.mxu0 0.0
    %1833 = vmatpush1.msra.mxu0 0.0
    %1834 = vmatprep.subr.mxu0 0.0
    %1835 = vmatpush1.msra.mxu0 0.0
    %1836 = vmatprep.subr.mxu0 0.0
    %1837 = vmatpush1.msra.mxu0 0.0
    %1838 = vmatprep.subr.mxu0 0.0
    %1839 = vmatpush1.msra.mxu0 0.0
    %1840 = vmatprep.subr.mxu0 0.0
    %1841 = vmatpush1.msra.mxu0 0.0
    %1842 = vmatprep.subr.mxu0 0.0
    %1843 = vmatpush1.msra.mxu0 0.0
    %1844 = vmatprep.subr.mxu0 0.0
    %1845 = vmatpush1.msra.mxu0 0.0
    %1846 = vmatprep.subr.mxu0 0.0
    %1847 = vmatpush1.msra.mxu0 0.0
    %1848 = vmatprep.subr.mxu0 0.0
    %1849 = vmatpush1.msra.mxu0 0.0
    %1850 = vmatprep.subr.mxu0 0.0
    %1851 = vmatpush1.msra.mxu0 0.0
    %1852 = vmatprep.subr.mxu0 0.0
    %1853 = vmatpush1.msra.mxu0 0.0
    %1854 = vmatprep.subr.mxu0 0.0
    %1855 = vmatpush1.msra.mxu0 0.0
    %1856 = vmatprep.subr.mxu0 0.0
    %1857 = vmatpush1.msra.mxu0 0.0
    %1858 = vmatprep.subr.mxu0 0.0
    %1859 = vmatpush1.msra.mxu0 0.0
    %1860 = vmatprep.subr.mxu0 0.0
    %1861 = vmatpush1.msra.mxu0 0.0
    %1862 = vmatprep.subr.mxu0 0.0
    %1863 = vmatpush1.msra.mxu0 0.0
    %1864 = vmatprep.subr.mxu0 0.0
    %1865 = vmatpush1.msra.mxu0 0.0
    %1866 = vmatprep.mubr.f32.mxu0 0.0
    %1867 = vmatmul.mubr.f32.gmra.mrb[0].mxu0 %v1797
    %v1868 = vpop.f32.mrb[0].mxu0
    %v1869 = vadd.f32 0.0, %v1868
    %v1870 = vpop.f32.mrb[0].mxu0
    %1871 = vmatprep.mubr.f32.mxu0 0.0
    %1872 = vmatmul.mubr.f32.gmra.mrb[0].mxu0 %v1800
    %v1873 = vpop.f32.mrb[0].mxu0
    %v1874 = vadd.f32 0.0, %v1873
    %v1875 = vpop.f32.mrb[0].mxu0
    %1876 = vdwg.mxu0
    %1877 = vrot.lane.b32.xlu0 %v1463, 112
    %v1878 = vpop.permute.xlu0 %1877
    %1879 = vrot.lane.b32.xlu0 %v1468, 112
    %v1880 = vpop.permute.xlu0 %1879
    %1881 = vrot.lane.b32.xlu0 %v1463, 80
    %v1882 = vpop.permute.xlu0 %1881
    %1883 = vrot.lane.b32.xlu0 %v1468, 80
    %v1884 = vpop.permute.xlu0 %1883
    %v1885 = vsel %vm172, %v1878, 0
    %v1887 = vsel %vm172, %v1880, 0
    %v1889 = vsel %vm172, %v1882, 0
    %v1891 = vsel %vm172, %v1884, 0
    %1893 = vmatprep.subr.mxu0 0.0
    %1894 = vmatpush1.xpose.msra.mxu0 %v1889
    %1895 = vmatprep.subr.mxu0 0.0
    %1896 = vmatpush1.xpose.msra.mxu0 %v1891
    %1897 = vmatprep.subr.mxu0 0.0
    %1898 = vmatpush1.xpose.msra.mxu0 0.0
    %1899 = vmatprep.subr.mxu0 0.0
    %1900 = vmatpush1.xpose.msra.mxu0 0.0
    %1901 = vmatprep.subr.mxu0 0.0
    %1902 = vmatpush1.xpose.msra.mxu0 0.0
    %1903 = vmatprep.subr.mxu0 0.0
    %1904 = vmatpush1.xpose.msra.mxu0 0.0
    %1905 = vmatprep.subr.mxu0 0.0
    %1906 = vmatpush1.xpose.msra.mxu0 0.0
    %1907 = vmatprep.subr.mxu0 0.0
    %1908 = vmatpush1.xpose.msra.mxu0 0.0
    %1909 = vmatprep.subr.mxu0 0.0
    %1910 = vmatpush1.xpose.msra.mxu0 0.0
    %1911 = vmatprep.subr.mxu0 0.0
    %1912 = vmatpush1.xpose.msra.mxu0 0.0
    %1913 = vmatprep.subr.mxu0 0.0
    %1914 = vmatpush1.xpose.msra.mxu0 0.0
    %1915 = vmatprep.subr.mxu0 0.0
    %1916 = vmatpush1.xpose.msra.mxu0 0.0
    %1917 = vmatprep.subr.mxu0 0.0
    %1918 = vmatpush1.xpose.msra.mxu0 0.0
    %1919 = vmatprep.subr.mxu0 0.0
    %1920 = vmatpush1.xpose.msra.mxu0 0.0
    %1921 = vmatprep.subr.mxu0 0.0
    %1922 = vmatpush1.xpose.msra.mxu0 0.0
    %1923 = vmatprep.subr.mxu0 0.0
    %1924 = vmatpush1.xpose.msra.mxu0 0.0
    %1925 = vmatprep.subr.mxu0 0.0
    %1926 = vmatpush1.xpose.msra.mxu0 0.0
    %1927 = vmatprep.subr.mxu0 0.0
    %1928 = vmatpush1.xpose.msra.mxu0 0.0
    %1929 = vmatprep.subr.mxu0 0.0
    %1930 = vmatpush1.xpose.msra.mxu0 0.0
    %1931 = vmatprep.subr.mxu0 0.0
    %1932 = vmatpush1.xpose.msra.mxu0 0.0
    %1933 = vmatprep.subr.mxu0 0.0
    %1934 = vmatpush1.xpose.msra.mxu0 0.0
    %1935 = vmatprep.subr.mxu0 0.0
    %1936 = vmatpush1.xpose.msra.mxu0 0.0
    %1937 = vmatprep.subr.mxu0 0.0
    %1938 = vmatpush1.xpose.msra.mxu0 0.0
    %1939 = vmatprep.subr.mxu0 0.0
    %1940 = vmatpush1.xpose.msra.mxu0 0.0
    %1941 = vmatprep.subr.mxu0 0.0
    %1942 = vmatpush1.xpose.msra.mxu0 0.0
    %1943 = vmatprep.subr.mxu0 0.0
    %1944 = vmatpush1.xpose.msra.mxu0 0.0
    %1945 = vmatprep.subr.mxu0 0.0
    %1946 = vmatpush1.xpose.msra.mxu0 0.0
    %1947 = vmatprep.subr.mxu0 0.0
    %1948 = vmatpush1.xpose.msra.mxu0 0.0
    %1949 = vmatprep.subr.mxu0 0.0
    %1950 = vmatpush1.xpose.msra.mxu0 0.0
    %1951 = vmatprep.subr.mxu0 0.0
    %1952 = vmatpush1.xpose.msra.mxu0 0.0
    %1953 = vmatprep.subr.mxu0 0.0
    %1954 = vmatpush1.xpose.msra.mxu0 0.0
    %1955 = vmatprep.subr.mxu0 0.0
    %1956 = vmatpush1.xpose.msra.mxu0 0.0
    %1957 = vmatprep.mubr.f32.mxu0 0.0
    %1958 = vmatmul.mubr.f32.gmra.mrb[0].mxu0 %v1885
    %v1959 = vpop.f32.mrb[0].mxu0
    %v1960 = vadd.f32 0.0, %v1959
    %v1961 = vpop.f32.mrb[0].mxu0
    %1962 = vmatprep.mubr.f32.mxu0 0.0
    %1963 = vmatmul.mubr.f32.gmra.mrb[0].mxu0 %v1887
    %v1964 = vpop.f32.mrb[0].mxu0
    %v1965 = vadd.f32 0.0, %v1964
    %v1966 = vpop.f32.mrb[0].mxu0
    %1967 = vdwg.mxu0
    %v1968 = vmul.f32 %v1960, 0.35355338
    %v1969 = vmul.f32 %v1965, 0.35355338
    %v1970 = vadd.f32 %v1968, %v57
    %v1971 = vadd.f32 %v1969, %v58
    %v1972 = vsel %vm260, %v1970, -inf
    %1973 = vmax.xlane.f32.xlu0 %v1972
    %v1974 = vpop.xlane.xlu0 %1973
    %v1975 = vsel %vm260, %v1971, -inf
    %1976 = vmax.xlane.f32.xlu0 %v1975
    %v1977 = vpop.xlane.xlu0 %1976
    %v1978 = vsub.f32 %v1970, %v1974
    %v1979 = vsub.f32 %v1971, %v1977
    %v1980 = vmul.f32 %v1978, 1.442695
    %v1981 = vpow.pop %v1980
    %v1982 = vmul.f32 %v1979, 1.442695
    %v1983 = vpow.pop %v1982
    %v1984 = vsel %vm260, %v1981, 0.0
    %1985 = vadd.xlane.f32.xlu0 %v1984
    %v1986 = vpop.xlane.xlu0 %1985
    %v1987 = vsel %vm260, %v1983, 0.0
    %1988 = vadd.xlane.f32.xlu0 %v1987
    %v1989 = vpop.xlane.xlu0 %1988
    %v1990 = vrcp.pop %v1986
    %v1991 = vrcp.pop %v1989
    %v1992 = vmul.f32 %v1981, %v1990
    %v1993 = vmul.f32 %v1983, %v1991
    %1994 = vrot.lane.b32.xlu0 %v1463, 48
    %v1995 = vpop.permute.xlu0 %1994
    %1996 = vrot.lane.b32.xlu0 %v1468, 48
    %v1997 = vpop.permute.xlu0 %1996
    %v2001 = vsel %vm260, %v1992, 0
    %v2004 = vsel %vm260, %v1993, 0
    %2006 = vmatprep.subr.mxu0 0.0
    %2007 = vmatpush1.msra.mxu0 %v1995
    %2008 = vmatprep.subr.mxu0 0.0
    %2009 = vmatpush1.msra.mxu0 %v1997
    %2010 = vmatprep.subr.mxu0 0.0
    %2011 = vmatpush1.msra.mxu0 0.0
    %2012 = vmatprep.subr.mxu0 0.0
    %2013 = vmatpush1.msra.mxu0 0.0
    %2014 = vmatprep.subr.mxu0 0.0
    %2015 = vmatpush1.msra.mxu0 0.0
    %2016 = vmatprep.subr.mxu0 0.0
    %2017 = vmatpush1.msra.mxu0 0.0
    %2018 = vmatprep.subr.mxu0 0.0
    %2019 = vmatpush1.msra.mxu0 0.0
    %2020 = vmatprep.subr.mxu0 0.0
    %2021 = vmatpush1.msra.mxu0 0.0
    %2022 = vmatprep.subr.mxu0 0.0
    %2023 = vmatpush1.msra.mxu0 0.0
    %2024 = vmatprep.subr.mxu0 0.0
    %2025 = vmatpush1.msra.mxu0 0.0
    %2026 = vmatprep.subr.mxu0 0.0
    %2027 = vmatpush1.msra.mxu0 0.0
    %2028 = vmatprep.subr.mxu0 0.0
    %2029 = vmatpush1.msra.mxu0 0.0
    %2030 = vmatprep.subr.mxu0 0.0
    %2031 = vmatpush1.msra.mxu0 0.0
    %2032 = vmatprep.subr.mxu0 0.0
    %2033 = vmatpush1.msra.mxu0 0.0
    %2034 = vmatprep.subr.mxu0 0.0
    %2035 = vmatpush1.msra.mxu0 0.0
    %2036 = vmatprep.subr.mxu0 0.0
    %2037 = vmatpush1.msra.mxu0 0.0
    %2038 = vmatprep.subr.mxu0 0.0
    %2039 = vmatpush1.msra.mxu0 0.0
    %2040 = vmatprep.subr.mxu0 0.0
    %2041 = vmatpush1.msra.mxu0 0.0
    %2042 = vmatprep.subr.mxu0 0.0
    %2043 = vmatpush1.msra.mxu0 0.0
    %2044 = vmatprep.subr.mxu0 0.0
    %2045 = vmatpush1.msra.mxu0 0.0
    %2046 = vmatprep.subr.mxu0 0.0
    %2047 = vmatpush1.msra.mxu0 0.0
    %2048 = vmatprep.subr.mxu0 0.0
    %2049 = vmatpush1.msra.mxu0 0.0
    %2050 = vmatprep.subr.mxu0 0.0
    %2051 = vmatpush1.msra.mxu0 0.0
    %2052 = vmatprep.subr.mxu0 0.0
    %2053 = vmatpush1.msra.mxu0 0.0
    %2054 = vmatprep.subr.mxu0 0.0
    %2055 = vmatpush1.msra.mxu0 0.0
    %2056 = vmatprep.subr.mxu0 0.0
    %2057 = vmatpush1.msra.mxu0 0.0
    %2058 = vmatprep.subr.mxu0 0.0
    %2059 = vmatpush1.msra.mxu0 0.0
    %2060 = vmatprep.subr.mxu0 0.0
    %2061 = vmatpush1.msra.mxu0 0.0
    %2062 = vmatprep.subr.mxu0 0.0
    %2063 = vmatpush1.msra.mxu0 0.0
    %2064 = vmatprep.subr.mxu0 0.0
    %2065 = vmatpush1.msra.mxu0 0.0
    %2066 = vmatprep.subr.mxu0 0.0
    %2067 = vmatpush1.msra.mxu0 0.0
    %2068 = vmatprep.subr.mxu0 0.0
    %2069 = vmatpush1.msra.mxu0 0.0
    %2070 = vmatprep.mubr.f32.mxu0 0.0
    %2071 = vmatmul.mubr.f32.gmra.mrb[0].mxu0 %v2001
    %v2072 = vpop.f32.mrb[0].mxu0
    %v2073 = vadd.f32 0.0, %v2072
    %v2074 = vpop.f32.mrb[0].mxu0
    %2075 = vmatprep.mubr.f32.mxu0 0.0
    %2076 = vmatmul.mubr.f32.gmra.mrb[0].mxu0 %v2004
    %v2077 = vpop.f32.mrb[0].mxu0
    %v2078 = vadd.f32 0.0, %v2077
    %v2079 = vpop.f32.mrb[0].mxu0
    %2080 = vdwg.mxu0
    %2081 = vrot.lane.b32.xlu0 %v1463, 104
    %v2082 = vpop.permute.xlu0 %2081
    %2083 = vrot.lane.b32.xlu0 %v1468, 104
    %v2084 = vpop.permute.xlu0 %2083
    %2085 = vrot.lane.b32.xlu0 %v1463, 72
    %v2086 = vpop.permute.xlu0 %2085
    %2087 = vrot.lane.b32.xlu0 %v1468, 72
    %v2088 = vpop.permute.xlu0 %2087
    %v2089 = vsel %vm172, %v2082, 0
    %v2091 = vsel %vm172, %v2084, 0
    %v2093 = vsel %vm172, %v2086, 0
    %v2095 = vsel %vm172, %v2088, 0
    %2097 = vmatprep.subr.mxu0 0.0
    %2098 = vmatpush1.xpose.msra.mxu0 %v2093
    %2099 = vmatprep.subr.mxu0 0.0
    %2100 = vmatpush1.xpose.msra.mxu0 %v2095
    %2101 = vmatprep.subr.mxu0 0.0
    %2102 = vmatpush1.xpose.msra.mxu0 0.0
    %2103 = vmatprep.subr.mxu0 0.0
    %2104 = vmatpush1.xpose.msra.mxu0 0.0
    %2105 = vmatprep.subr.mxu0 0.0
    %2106 = vmatpush1.xpose.msra.mxu0 0.0
    %2107 = vmatprep.subr.mxu0 0.0
    %2108 = vmatpush1.xpose.msra.mxu0 0.0
    %2109 = vmatprep.subr.mxu0 0.0
    %2110 = vmatpush1.xpose.msra.mxu0 0.0
    %2111 = vmatprep.subr.mxu0 0.0
    %2112 = vmatpush1.xpose.msra.mxu0 0.0
    %2113 = vmatprep.subr.mxu0 0.0
    %2114 = vmatpush1.xpose.msra.mxu0 0.0
    %2115 = vmatprep.subr.mxu0 0.0
    %2116 = vmatpush1.xpose.msra.mxu0 0.0
    %2117 = vmatprep.subr.mxu0 0.0
    %2118 = vmatpush1.xpose.msra.mxu0 0.0
    %2119 = vmatprep.subr.mxu0 0.0
    %2120 = vmatpush1.xpose.msra.mxu0 0.0
    %2121 = vmatprep.subr.mxu0 0.0
    %2122 = vmatpush1.xpose.msra.mxu0 0.0
    %2123 = vmatprep.subr.mxu0 0.0
    %2124 = vmatpush1.xpose.msra.mxu0 0.0
    %2125 = vmatprep.subr.mxu0 0.0
    %2126 = vmatpush1.xpose.msra.mxu0 0.0
    %2127 = vmatprep.subr.mxu0 0.0
    %2128 = vmatpush1.xpose.msra.mxu0 0.0
    %2129 = vmatprep.subr.mxu0 0.0
    %2130 = vmatpush1.xpose.msra.mxu0 0.0
    %2131 = vmatprep.subr.mxu0 0.0
    %2132 = vmatpush1.xpose.msra.mxu0 0.0
    %2133 = vmatprep.subr.mxu0 0.0
    %2134 = vmatpush1.xpose.msra.mxu0 0.0
    %2135 = vmatprep.subr.mxu0 0.0
    %2136 = vmatpush1.xpose.msra.mxu0 0.0
    %2137 = vmatprep.subr.mxu0 0.0
    %2138 = vmatpush1.xpose.msra.mxu0 0.0
    %2139 = vmatprep.subr.mxu0 0.0
    %2140 = vmatpush1.xpose.msra.mxu0 0.0
    %2141 = vmatprep.subr.mxu0 0.0
    %2142 = vmatpush1.xpose.msra.mxu0 0.0
    %2143 = vmatprep.subr.mxu0 0.0
    %2144 = vmatpush1.xpose.msra.mxu0 0.0
    %2145 = vmatprep.subr.mxu0 0.0
    %2146 = vmatpush1.xpose.msra.mxu0 0.0
    %2147 = vmatprep.subr.mxu0 0.0
    %2148 = vmatpush1.xpose.msra.mxu0 0.0
    %2149 = vmatprep.subr.mxu0 0.0
    %2150 = vmatpush1.xpose.msra.mxu0 0.0
    %2151 = vmatprep.subr.mxu0 0.0
    %2152 = vmatpush1.xpose.msra.mxu0 0.0
    %2153 = vmatprep.subr.mxu0 0.0
    %2154 = vmatpush1.xpose.msra.mxu0 0.0
    %2155 = vmatprep.subr.mxu0 0.0
    %2156 = vmatpush1.xpose.msra.mxu0 0.0
    %2157 = vmatprep.subr.mxu0 0.0
    %2158 = vmatpush1.xpose.msra.mxu0 0.0
    %2159 = vmatprep.subr.mxu0 0.0
    %2160 = vmatpush1.xpose.msra.mxu0 0.0
    %2161 = vmatprep.mubr.f32.mxu0 0.0
    %2162 = vmatmul.mubr.f32.gmra.mrb[0].mxu0 %v2089
    %v2163 = vpop.f32.mrb[0].mxu0
    %v2164 = vadd.f32 0.0, %v2163
    %v2165 = vpop.f32.mrb[0].mxu0
    %2166 = vmatprep.mubr.f32.mxu0 0.0
    %2167 = vmatmul.mubr.f32.gmra.mrb[0].mxu0 %v2091
    %v2168 = vpop.f32.mrb[0].mxu0
    %v2169 = vadd.f32 0.0, %v2168
    %v2170 = vpop.f32.mrb[0].mxu0
    %2171 = vdwg.mxu0
    %v2172 = vmul.f32 %v2164, 0.35355338
    %v2173 = vmul.f32 %v2169, 0.35355338
    %v2174 = vadd.f32 %v2172, %v57
    %v2175 = vadd.f32 %v2173, %v58
    %v2176 = vsel %vm260, %v2174, -inf
    %2177 = vmax.xlane.f32.xlu0 %v2176
    %v2178 = vpop.xlane.xlu0 %2177
    %v2179 = vsel %vm260, %v2175, -inf
    %2180 = vmax.xlane.f32.xlu0 %v2179
    %v2181 = vpop.xlane.xlu0 %2180
    %v2182 = vsub.f32 %v2174, %v2178
    %v2183 = vsub.f32 %v2175, %v2181
    %v2184 = vmul.f32 %v2182, 1.442695
    %v2185 = vpow.pop %v2184
    %v2186 = vmul.f32 %v2183, 1.442695
    %v2187 = vpow.pop %v2186
    %v2188 = vsel %vm260, %v2185, 0.0
    %2189 = vadd.xlane.f32.xlu0 %v2188
    %v2190 = vpop.xlane.xlu0 %2189
    %v2191 = vsel %vm260, %v2187, 0.0
    %2192 = vadd.xlane.f32.xlu0 %v2191
    %v2193 = vpop.xlane.xlu0 %2192
    %v2194 = vrcp.pop %v2190
    %v2195 = vrcp.pop %v2193
    %v2196 = vmul.f32 %v2185, %v2194
    %v2197 = vmul.f32 %v2187, %v2195
    %2198 = vrot.lane.b32.xlu0 %v1463, 40
    %v2199 = vpop.permute.xlu0 %2198
    %2200 = vrot.lane.b32.xlu0 %v1468, 40
    %v2201 = vpop.permute.xlu0 %2200
    %v2205 = vsel %vm260, %v2196, 0
    %v2208 = vsel %vm260, %v2197, 0
    %2210 = vmatprep.subr.mxu0 0.0
    %2211 = vmatpush1.msra.mxu0 %v2199
    %2212 = vmatprep.subr.mxu0 0.0
    %2213 = vmatpush1.msra.mxu0 %v2201
    %2214 = vmatprep.subr.mxu0 0.0
    %2215 = vmatpush1.msra.mxu0 0.0
    %2216 = vmatprep.subr.mxu0 0.0
    %2217 = vmatpush1.msra.mxu0 0.0
    %2218 = vmatprep.subr.mxu0 0.0
    %2219 = vmatpush1.msra.mxu0 0.0
    %2220 = vmatprep.subr.mxu0 0.0
    %2221 = vmatpush1.msra.mxu0 0.0
    %2222 = vmatprep.subr.mxu0 0.0
    %2223 = vmatpush1.msra.mxu0 0.0
    %2224 = vmatprep.subr.mxu0 0.0
    %2225 = vmatpush1.msra.mxu0 0.0
    %2226 = vmatprep.subr.mxu0 0.0
    %2227 = vmatpush1.msra.mxu0 0.0
    %2228 = vmatprep.subr.mxu0 0.0
    %2229 = vmatpush1.msra.mxu0 0.0
    %2230 = vmatprep.subr.mxu0 0.0
    %2231 = vmatpush1.msra.mxu0 0.0
    %2232 = vmatprep.subr.mxu0 0.0
    %2233 = vmatpush1.msra.mxu0 0.0
    %2234 = vmatprep.subr.mxu0 0.0
    %2235 = vmatpush1.msra.mxu0 0.0
    %2236 = vmatprep.subr.mxu0 0.0
    %2237 = vmatpush1.msra.mxu0 0.0
    %2238 = vmatprep.subr.mxu0 0.0
    %2239 = vmatpush1.msra.mxu0 0.0
    %2240 = vmatprep.subr.mxu0 0.0
    %2241 = vmatpush1.msra.mxu0 0.0
    %2242 = vmatprep.subr.mxu0 0.0
    %2243 = vmatpush1.msra.mxu0 0.0
    %2244 = vmatprep.subr.mxu0 0.0
    %2245 = vmatpush1.msra.mxu0 0.0
    %2246 = vmatprep.subr.mxu0 0.0
    %2247 = vmatpush1.msra.mxu0 0.0
    %2248 = vmatprep.subr.mxu0 0.0
    %2249 = vmatpush1.msra.mxu0 0.0
    %2250 = vmatprep.subr.mxu0 0.0
    %2251 = vmatpush1.msra.mxu0 0.0
    %2252 = vmatprep.subr.mxu0 0.0
    %2253 = vmatpush1.msra.mxu0 0.0
    %2254 = vmatprep.subr.mxu0 0.0
    %2255 = vmatpush1.msra.mxu0 0.0
    %2256 = vmatprep.subr.mxu0 0.0
    %2257 = vmatpush1.msra.mxu0 0.0
    %2258 = vmatprep.subr.mxu0 0.0
    %2259 = vmatpush1.msra.mxu0 0.0
    %2260 = vmatprep.subr.mxu0 0.0
    %2261 = vmatpush1.msra.mxu0 0.0
    %2262 = vmatprep.subr.mxu0 0.0
    %2263 = vmatpush1.msra.mxu0 0.0
    %2264 = vmatprep.subr.mxu0 0.0
    %2265 = vmatpush1.msra.mxu0 0.0
    %2266 = vmatprep.subr.mxu0 0.0
    %2267 = vmatpush1.msra.mxu0 0.0
    %2268 = vmatprep.subr.mxu0 0.0
    %2269 = vmatpush1.msra.mxu0 0.0
    %2270 = vmatprep.subr.mxu0 0.0
    %2271 = vmatpush1.msra.mxu0 0.0
    %2272 = vmatprep.subr.mxu0 0.0
    %2273 = vmatpush1.msra.mxu0 0.0
    %2274 = vmatprep.mubr.f32.mxu0 0.0
    %2275 = vmatmul.mubr.f32.gmra.mrb[0].mxu0 %v2205
    %v2276 = vpop.f32.mrb[0].mxu0
    %v2277 = vadd.f32 0.0, %v2276
    %v2278 = vpop.f32.mrb[0].mxu0
    %2279 = vmatprep.mubr.f32.mxu0 0.0
    %2280 = vmatmul.mubr.f32.gmra.mrb[0].mxu0 %v2208
    %v2281 = vpop.f32.mrb[0].mxu0
    %v2282 = vadd.f32 0.0, %v2281
    %v2283 = vpop.f32.mrb[0].mxu0
    %2284 = vdwg.mxu0
    %2287 = vrot.lane.b32.xlu0 %v1869, 8
    %v2288 = vpop.permute.xlu0 %2287
    %2289 = vrot.lane.b32.xlu0 %v1874, 8
    %v2290 = vpop.permute.xlu0 %2289
    %2295 = vrot.lane.b32.xlu0 %v2073, 16
    %v2296 = vpop.permute.xlu0 %2295
    %2297 = vrot.lane.b32.xlu0 %v2078, 16
    %v2298 = vpop.permute.xlu0 %2297
    %2303 = vrot.lane.b32.xlu0 %v2277, 24
    %v2304 = vpop.permute.xlu0 %2303
    %2305 = vrot.lane.b32.xlu0 %v2282, 24
    %v2306 = vpop.permute.xlu0 %2305
    %v2309 = vsel %vm172, %v1665, %v2288
    %v2310 = vsel %vm172, %v1670, %v2290
    %v2311 = vsel %vm260, %v2309, %v2296
    %v2312 = vsel %vm260, %v2310, %v2298
    %v2313 = vsel %vm1010, %v2311, %v2304
    %v2314 = vsel %vm1010, %v2312, %v2306
    %v2315 = vlaneseq
    %v2316 = vshrl.u32 %v2315, 7
    %v2317 = vsub.s32 1, %v2316
    %v2318 = vrot.slane %v1385, %v2317
    %v2320 = vsel %vm84, %v2313, 0
    %v2323 = vsel %vm84, %v2314, 0
    %2325 = vmatprep.subr.mxu0 0.0
    %2326 = vmatpush1.msra.mxu0 %v1366
    %2327 = vmatprep.subr.mxu0 0.0
    %2328 = vmatpush1.msra.mxu0 %v1367
    %2329 = vmatprep.subr.mxu0 0.0
    %2330 = vmatpush1.msra.mxu0 %v1368
    %2331 = vmatprep.subr.mxu0 0.0
    %2332 = vmatpush1.msra.mxu0 %v1369
    %2333 = vmatprep.subr.mxu0 0.0
    %2334 = vmatpush1.msra.mxu0 0.0
    %2335 = vmatprep.subr.mxu0 0.0
    %2336 = vmatpush1.msra.mxu0 0.0
    %2337 = vmatprep.subr.mxu0 0.0
    %2338 = vmatpush1.msra.mxu0 0.0
    %2339 = vmatprep.subr.mxu0 0.0
    %2340 = vmatpush1.msra.mxu0 0.0
    %2341 = vmatprep.subr.mxu0 0.0
    %2342 = vmatpush1.msra.mxu0 0.0
    %2343 = vmatprep.subr.mxu0 0.0
    %2344 = vmatpush1.msra.mxu0 0.0
    %2345 = vmatprep.subr.mxu0 0.0
    %2346 = vmatpush1.msra.mxu0 0.0
    %2347 = vmatprep.subr.mxu0 0.0
    %2348 = vmatpush1.msra.mxu0 0.0
    %2349 = vmatprep.subr.mxu0 0.0
    %2350 = vmatpush1.msra.mxu0 0.0
    %2351 = vmatprep.subr.mxu0 0.0
    %2352 = vmatpush1.msra.mxu0 0.0
    %2353 = vmatprep.subr.mxu0 0.0
    %2354 = vmatpush1.msra.mxu0 0.0
    %2355 = vmatprep.subr.mxu0 0.0
    %2356 = vmatpush1.msra.mxu0 0.0
    %2357 = vmatprep.subr.mxu0 0.0
    %2358 = vmatpush1.msra.mxu0 0.0
    %2359 = vmatprep.subr.mxu0 0.0
    %2360 = vmatpush1.msra.mxu0 0.0
    %2361 = vmatprep.subr.mxu0 0.0
    %2362 = vmatpush1.msra.mxu0 0.0
    %2363 = vmatprep.subr.mxu0 0.0
    %2364 = vmatpush1.msra.mxu0 0.0
    %2365 = vmatprep.subr.mxu0 0.0
    %2366 = vmatpush1.msra.mxu0 0.0
    %2367 = vmatprep.subr.mxu0 0.0
    %2368 = vmatpush1.msra.mxu0 0.0
    %2369 = vmatprep.subr.mxu0 0.0
    %2370 = vmatpush1.msra.mxu0 0.0
    %2371 = vmatprep.subr.mxu0 0.0
    %2372 = vmatpush1.msra.mxu0 0.0
    %2373 = vmatprep.subr.mxu0 0.0
    %2374 = vmatpush1.msra.mxu0 0.0
    %2375 = vmatprep.subr.mxu0 0.0
    %2376 = vmatpush1.msra.mxu0 0.0
    %2377 = vmatprep.subr.mxu0 0.0
    %2378 = vmatpush1.msra.mxu0 0.0
    %2379 = vmatprep.subr.mxu0 0.0
    %2380 = vmatpush1.msra.mxu0 0.0
    %2381 = vmatprep.subr.mxu0 0.0
    %2382 = vmatpush1.msra.mxu0 0.0
    %2383 = vmatprep.subr.mxu0 0.0
    %2384 = vmatpush1.msra.mxu0 0.0
    %2385 = vmatprep.subr.mxu0 0.0
    %2386 = vmatpush1.msra.mxu0 0.0
    %2387 = vmatprep.subr.mxu0 0.0
    %2388 = vmatpush1.msra.mxu0 0.0
    %2389 = vmatprep.mubr.f32.mxu0 0.0
    %2390 = vmatmul.mubr.f32.gmra.mrb[0].mxu0 %v2320
    %v2391 = vpop.f32.mrb[0].mxu0
    %v2392 = vadd.f32 %v2318, %v2391
    %v2393 = vpop.f32.mrb[0].mxu0
    %2394 = vmatprep.mubr.f32.mxu0 0.0
    %2395 = vmatmul.mubr.f32.gmra.mrb[0].mxu0 %v2323
    %v2396 = vpop.f32.mrb[0].mxu0
    %v2397 = vadd.f32 %v2318, %v2396
    %v2398 = vpop.f32.mrb[0].mxu0
    %2399 = vdwg.mxu0
    %v2400 = vadd.f32 %v2392, %v1358
    %v2401 = vadd.f32 %v2397, %v1359
    %v2402 = vsel %vm84, %v2400, 0.0
    %2403 = vadd.xlane.f32.xlu0 %v2402
    %v2404 = vpop.xlane.xlu0 %2403
    %v2405 = vsel %vm84, %v2401, 0.0
    %2406 = vadd.xlane.f32.xlu0 %v2405
    %v2407 = vpop.xlane.xlu0 %2406
    %v2408 = vmul.f32 %v2404, %v1106
    %v2409 = vmul.f32 %v2407, %v1106
    %v2410 = vsub.f32 %v2400, %v2408
    %v2411 = vsub.f32 %v2401, %v2409
    %v2412 = vmul.f32 %v2410, %v2410
    %v2413 = vmul.f32 %v2411, %v2411
    %v2414 = vsel %vm84, %v2412, 0.0
    %2415 = vadd.xlane.f32.xlu0 %v2414
    %v2416 = vpop.xlane.xlu0 %2415
    %v2417 = vsel %vm84, %v2413, 0.0
    %2418 = vadd.xlane.f32.xlu0 %v2417
    %v2419 = vpop.xlane.xlu0 %2418
    %v2420 = vmul.f32 %v2416, %v1106
    %v2421 = vmul.f32 %v2419, %v1106
    %v2422 = vadd.f32 %v2420, 1e-12
    %v2423 = vadd.f32 %v2421, 1e-12
    %v2424 = vrsqrt.pop %v2422
    %v2425 = vrsqrt.pop %v2423
    %v2426 = vmul.f32 %v2410, %v2424
    %v2427 = vmul.f32 %v2411, %v2425
    %v2428 = vlaneseq
    %v2429 = vshrl.u32 %v2428, 7
    %v2430 = vsub.s32 2, %v2429
    %v2431 = vrot.slane %v1385, %v2430
    %v2432 = vmul.f32 %v2426, %v2431
    %v2433 = vmul.f32 %v2427, %v2431
    %v2434 = vlaneseq
    %v2435 = vshrl.u32 %v2434, 7
    %v2436 = vsub.s32 3, %v2435
    %v2437 = vrot.slane %v1385, %v2436
    %v2438 = vadd.f32 %v2432, %v2437
    %v2439 = vadd.f32 %v2433, %v2437
    %v2440 = vlaneseq
    %v2441 = vshrl.u32 %v2440, 7
    %v2442 = vsub.s32 4, %v2441
    %v2443 = vrot.slane %v1385, %v2442
    %v2445 = vsel %vm84, %v2438, 0
    %v2448 = vsel %vm84, %v2439, 0
    %2450 = vmatprep.subr.mxu0 0.0
    %2451 = vmatpush1.msra.mxu0 %v1371
    %2452 = vmatprep.subr.mxu0 0.0
    %2453 = vmatpush1.msra.mxu0 %v1372
    %2454 = vmatprep.subr.mxu0 0.0
    %2455 = vmatpush1.msra.mxu0 %v1373
    %2456 = vmatprep.subr.mxu0 0.0
    %2457 = vmatpush1.msra.mxu0 %v1374
    %2458 = vmatprep.subr.mxu0 0.0
    %2459 = vmatpush1.msra.mxu0 0.0
    %2460 = vmatprep.subr.mxu0 0.0
    %2461 = vmatpush1.msra.mxu0 0.0
    %2462 = vmatprep.subr.mxu0 0.0
    %2463 = vmatpush1.msra.mxu0 0.0
    %2464 = vmatprep.subr.mxu0 0.0
    %2465 = vmatpush1.msra.mxu0 0.0
    %2466 = vmatprep.subr.mxu0 0.0
    %2467 = vmatpush1.msra.mxu0 0.0
    %2468 = vmatprep.subr.mxu0 0.0
    %2469 = vmatpush1.msra.mxu0 0.0
    %2470 = vmatprep.subr.mxu0 0.0
    %2471 = vmatpush1.msra.mxu0 0.0
    %2472 = vmatprep.subr.mxu0 0.0
    %2473 = vmatpush1.msra.mxu0 0.0
    %2474 = vmatprep.subr.mxu0 0.0
    %2475 = vmatpush1.msra.mxu0 0.0
    %2476 = vmatprep.subr.mxu0 0.0
    %2477 = vmatpush1.msra.mxu0 0.0
    %2478 = vmatprep.subr.mxu0 0.0
    %2479 = vmatpush1.msra.mxu0 0.0
    %2480 = vmatprep.subr.mxu0 0.0
    %2481 = vmatpush1.msra.mxu0 0.0
    %2482 = vmatprep.subr.mxu0 0.0
    %2483 = vmatpush1.msra.mxu0 0.0
    %2484 = vmatprep.subr.mxu0 0.0
    %2485 = vmatpush1.msra.mxu0 0.0
    %2486 = vmatprep.subr.mxu0 0.0
    %2487 = vmatpush1.msra.mxu0 0.0
    %2488 = vmatprep.subr.mxu0 0.0
    %2489 = vmatpush1.msra.mxu0 0.0
    %2490 = vmatprep.subr.mxu0 0.0
    %2491 = vmatpush1.msra.mxu0 0.0
    %2492 = vmatprep.subr.mxu0 0.0
    %2493 = vmatpush1.msra.mxu0 0.0
    %2494 = vmatprep.subr.mxu0 0.0
    %2495 = vmatpush1.msra.mxu0 0.0
    %2496 = vmatprep.subr.mxu0 0.0
    %2497 = vmatpush1.msra.mxu0 0.0
    %2498 = vmatprep.subr.mxu0 0.0
    %2499 = vmatpush1.msra.mxu0 0.0
    %2500 = vmatprep.subr.mxu0 0.0
    %2501 = vmatpush1.msra.mxu0 0.0
    %2502 = vmatprep.subr.mxu0 0.0
    %2503 = vmatpush1.msra.mxu0 0.0
    %2504 = vmatprep.subr.mxu0 0.0
    %2505 = vmatpush1.msra.mxu0 0.0
    %2506 = vmatprep.subr.mxu0 0.0
    %2507 = vmatpush1.msra.mxu0 0.0
    %2508 = vmatprep.subr.mxu0 0.0
    %2509 = vmatpush1.msra.mxu0 0.0
    %2510 = vmatprep.subr.mxu0 0.0
    %2511 = vmatpush1.msra.mxu0 0.0
    %2512 = vmatprep.subr.mxu0 0.0
    %2513 = vmatpush1.msra.mxu0 0.0
    %2514 = vmatprep.mubr.f32.mxu0 0.0
    %2515 = vmatmul.mubr.f32.gmra.mrb[0].mxu0 %v2445
    %v2516 = vpop.f32.mrb[0].mxu0
    %v2517 = vadd.f32 %v2443, %v2516
    %v2518 = vpop.f32.mrb[0].mxu0
    %2519 = vmatprep.mubr.f32.mxu0 0.0
    %2520 = vmatmul.mubr.f32.gmra.mrb[0].mxu0 %v2448
    %v2521 = vpop.f32.mrb[0].mxu0
    %v2522 = vadd.f32 %v2443, %v2521
    %v2523 = vpop.f32.mrb[0].mxu0
    %2524 = vdwg.mxu0
    %v2525 = vmul.f32 %v2517, 0.5
    %v2526 = vmul.f32 %v2522, 0.5
    %v2527 = vmul.f32 %v2517, 0.70710677
    %v2528 = vmul.f32 %v2522, 0.70710677
    %v2529 = verf.f32.pop %v2527
    %v2530 = verf.f32.pop %v2528
    %v2531 = vadd.f32 %v2529, 1.0
    %v2532 = vadd.f32 %v2530, 1.0
    %v2533 = vmul.f32 %v2525, %v2531
    %v2534 = vmul.f32 %v2526, %v2532
    %v2535 = vlaneseq
    %v2536 = vshrl.u32 %v2535, 7
    %v2537 = vsub.s32 5, %v2536
    %v2538 = vrot.slane %v1385, %v2537
    %v2540 = vsel %vm1238, %v2533, 0
    %v2543 = vsel %vm1238, %v2534, 0
    %2545 = vmatprep.subr.mxu0 0.0
    %2546 = vmatpush1.msra.mxu0 %v1376
    %2547 = vmatprep.subr.mxu0 0.0
    %2548 = vmatpush1.msra.mxu0 %v1377
    %2549 = vmatprep.subr.mxu0 0.0
    %2550 = vmatpush1.msra.mxu0 %v1378
    %2551 = vmatprep.subr.mxu0 0.0
    %2552 = vmatpush1.msra.mxu0 %v1379
    %2553 = vmatprep.subr.mxu0 0.0
    %2554 = vmatpush1.msra.mxu0 %v1380
    %2555 = vmatprep.subr.mxu0 0.0
    %2556 = vmatpush1.msra.mxu0 %v1381
    %2557 = vmatprep.subr.mxu0 0.0
    %2558 = vmatpush1.msra.mxu0 %v1382
    %2559 = vmatprep.subr.mxu0 0.0
    %2560 = vmatpush1.msra.mxu0 %v1383
    %2561 = vmatprep.subr.mxu0 0.0
    %2562 = vmatpush1.msra.mxu0 0.0
    %2563 = vmatprep.subr.mxu0 0.0
    %2564 = vmatpush1.msra.mxu0 0.0
    %2565 = vmatprep.subr.mxu0 0.0
    %2566 = vmatpush1.msra.mxu0 0.0
    %2567 = vmatprep.subr.mxu0 0.0
    %2568 = vmatpush1.msra.mxu0 0.0
    %2569 = vmatprep.subr.mxu0 0.0
    %2570 = vmatpush1.msra.mxu0 0.0
    %2571 = vmatprep.subr.mxu0 0.0
    %2572 = vmatpush1.msra.mxu0 0.0
    %2573 = vmatprep.subr.mxu0 0.0
    %2574 = vmatpush1.msra.mxu0 0.0
    %2575 = vmatprep.subr.mxu0 0.0
    %2576 = vmatpush1.msra.mxu0 0.0
    %2577 = vmatprep.subr.mxu0 0.0
    %2578 = vmatpush1.msra.mxu0 0.0
    %2579 = vmatprep.subr.mxu0 0.0
    %2580 = vmatpush1.msra.mxu0 0.0
    %2581 = vmatprep.subr.mxu0 0.0
    %2582 = vmatpush1.msra.mxu0 0.0
    %2583 = vmatprep.subr.mxu0 0.0
    %2584 = vmatpush1.msra.mxu0 0.0
    %2585 = vmatprep.subr.mxu0 0.0
    %2586 = vmatpush1.msra.mxu0 0.0
    %2587 = vmatprep.subr.mxu0 0.0
    %2588 = vmatpush1.msra.mxu0 0.0
    %2589 = vmatprep.subr.mxu0 0.0
    %2590 = vmatpush1.msra.mxu0 0.0
    %2591 = vmatprep.subr.mxu0 0.0
    %2592 = vmatpush1.msra.mxu0 0.0
    %2593 = vmatprep.subr.mxu0 0.0
    %2594 = vmatpush1.msra.mxu0 0.0
    %2595 = vmatprep.subr.mxu0 0.0
    %2596 = vmatpush1.msra.mxu0 0.0
    %2597 = vmatprep.subr.mxu0 0.0
    %2598 = vmatpush1.msra.mxu0 0.0
    %2599 = vmatprep.subr.mxu0 0.0
    %2600 = vmatpush1.msra.mxu0 0.0
    %2601 = vmatprep.subr.mxu0 0.0
    %2602 = vmatpush1.msra.mxu0 0.0
    %2603 = vmatprep.subr.mxu0 0.0
    %2604 = vmatpush1.msra.mxu0 0.0
    %2605 = vmatprep.subr.mxu0 0.0
    %2606 = vmatpush1.msra.mxu0 0.0
    %2607 = vmatprep.subr.mxu0 0.0
    %2608 = vmatpush1.msra.mxu0 0.0
    %2609 = vmatprep.mubr.f32.mxu0 0.0
    %2610 = vmatmul.mubr.f32.gmra.mrb[0].mxu0 %v2540
    %v2611 = vpop.f32.mrb[0].mxu0
    %v2612 = vadd.f32 %v2538, %v2611
    %v2613 = vpop.f32.mrb[0].mxu0
    %2614 = vmatprep.mubr.f32.mxu0 0.0
    %2615 = vmatmul.mubr.f32.gmra.mrb[0].mxu0 %v2543
    %v2616 = vpop.f32.mrb[0].mxu0
    %v2617 = vadd.f32 %v2538, %v2616
    %v2618 = vpop.f32.mrb[0].mxu0
    %2619 = vdwg.mxu0
    %v2620 = vadd.f32 %v2612, %v2438
    %v2621 = vadd.f32 %v2617, %v2439
    %v2622 = vsel %vm84, %v2620, 0.0
    %2623 = vadd.xlane.f32.xlu0 %v2622
    %v2624 = vpop.xlane.xlu0 %2623
    %v2625 = vsel %vm84, %v2621, 0.0
    %2626 = vadd.xlane.f32.xlu0 %v2625
    %v2627 = vpop.xlane.xlu0 %2626
    %v2628 = vmul.f32 %v2624, %v1106
    %v2629 = vmul.f32 %v2627, %v1106
    %v2630 = vsub.f32 %v2620, %v2628
    %v2631 = vsub.f32 %v2621, %v2629
    %v2632 = vmul.f32 %v2630, %v2630
    %v2633 = vmul.f32 %v2631, %v2631
    %v2634 = vsel %vm84, %v2632, 0.0
    %2635 = vadd.xlane.f32.xlu0 %v2634
    %v2636 = vpop.xlane.xlu0 %2635
    %v2637 = vsel %vm84, %v2633, 0.0
    %2638 = vadd.xlane.f32.xlu0 %v2637
    %v2639 = vpop.xlane.xlu0 %2638
    %v2640 = vmul.f32 %v2636, %v1106
    %v2641 = vmul.f32 %v2639, %v1106
    %v2642 = vadd.f32 %v2640, 1e-12
    %v2643 = vadd.f32 %v2641, 1e-12
    %v2644 = vrsqrt.pop %v2642
    %v2645 = vrsqrt.pop %v2643
    %v2646 = vmul.f32 %v2630, %v2644
    %v2647 = vmul.f32 %v2631, %v2645
    %v2648 = vlaneseq
    %v2649 = vshrl.u32 %v2648, 7
    %v2650 = vsub.s32 6, %v2649
    %v2651 = vrot.slane %v1385, %v2650
    %v2652 = vmul.f32 %v2646, %v2651
    %v2653 = vmul.f32 %v2647, %v2651
    %v2654 = vlaneseq
    %v2655 = vshrl.u32 %v2654, 7
    %v2656 = vsub.s32 7, %v2655
    %v2657 = vrot.slane %v1385, %v2656
    %v2658 = vadd.f32 %v2652, %v2657
    %v2659 = vadd.f32 %v2653, %v2657
    %2660 = vst.msk [vmem:[#allocation7] sm:$0xff] %vm84, %v2658
    %2661 = vst.msk [vmem:[#allocation7 + $0x8] sm:$0xff] %vm84, %v2659
    // Predicated region
    $region38: #{tpu_custom_call.1} parent=1 // pred_check
      _
    $region39: #{tpu_custom_call.1} parent=1 // pred_check_branch
      %2663 = sbr.rel (0) target = $region41
    $region40: #{tpu_custom_call.1} parent=1 // pred_region
      %s2665 = ssub.s32 256, 256
      %2666 = vsyncadd [#allocation4], %s2665
      %s2667 = sshll.u32 [#allocation7], 4
      %s2668 = int_to_ptr.vmem [resolvable:$true] %s2667
      %2673 = dma.vmem_to_hbm [thread:$0]  %s2668, 256, %s7, [#allocation4], 128, 128, 8
    $region41: #{tpu_custom_call.1} parent=1 // pred_fallthru
      _
    // Predicated region
    $region42: #{tpu_custom_call.1} parent=1 // pred_check
      _
    $region43: #{tpu_custom_call.1} parent=1 // pred_check_branch
      %2675 = sbr.rel (0) target = $region45
    $region44: #{tpu_custom_call.1} parent=1 // pred_region
      %2676 = dma.done [#allocation4], 256
    $region45: #{tpu_custom_call.1} parent=1 // pred_fallthru
      _
    %2677 = vsyncpa [#allocation3], 1
    %2678 = vsyncpa [#allocation6], 1
    %2679 = vsyncpa [#allocation4], 1

</llo_original>
